<compile_context>
chip_gen: v6e
topology: v6e:2x2x1
jax: 0.10.0
libtpu: 0.0.40
codegen_flags: <defaults>
</compile_context>

<pallas_src>
import jax
import jax.numpy as jnp
from jax.experimental import pallas as pl
from jax.experimental.pallas import tpu as pltpu

# ---- LSNNParameters defaults (from myelin/norse LSNNParameters) ----
TAU_SYN_INV = 1.0 / 5e-3      # 200.0
TAU_MEM_INV = 1.0 / 1e-2      # 100.0
TAU_ADAPT_INV = 1.0 / 700.0
V_LEAK = 0.0
V_TH = 1.0
V_RESET = 0.0
BETA = 1.8
DT = 0.001


def _lsnn_seq_kernel(x_ref, z0_ref, v0_ref, i0_ref, b0_ref,
                     w_in_ref, w_rec_ref,
                     z_seq_ref, z_ref, v_ref, i_ref, b_ref):
    """One grid step == TT Euler sub-steps; state carried in registers."""
    tb = pl.program_id(0)

    # Seed the resident state from the provided initial state (first block only).
    @pl.when(tb == 0)
    def _():
        z_ref[...] = z0_ref[...]
        v_ref[...] = v0_ref[...]
        i_ref[...] = i0_ref[...]
        b_ref[...] = b0_ref[...]

    # Weights are VMEM-resident for the whole sequence; load to vregs once.
    w_in = w_in_ref[...]      # (F_in, N) bf16
    w_rec = w_rec_ref[...]    # (N, N)   bf16

    # State carried in registers (4 vregs) across the TT sub-steps.
    z = z_ref[...]            # z_{t-1}
    v = v_ref[...]
    i = i_ref[...]
    b = b_ref[...]

    tt = x_ref.shape[0]       # static sub-step count
    for t in range(tt):       # small static unroll -> LLO scheduler visibility
        # Euler-integration decays (f32 on the VPU).
        v_dec = v + DT * TAU_MEM_INV * ((V_LEAK - v) + i)
        i_dec = i - DT * TAU_SYN_INV * i
        b_dec = b - DT * TAU_ADAPT_INV * b

        # Jump condition z = Theta(v - v_th + b); reset via a single select.
        spike = (v_dec - V_TH + b_dec) > 0.0
        z_new = spike.astype(v.dtype)
        v_new = jnp.where(spike, V_RESET, v_dec)

        # Input + recurrent currents: two MXU dots, f32 accumulation.
        # bf16 operands are exact for 0/1 spikes; recurrence uses OLD z.
        x_t = x_ref[t].astype(w_in.dtype)                     # (B, F_in)
        i_new = (i_dec
                 + jnp.dot(x_t, w_in, preferred_element_type=jnp.float32)
                 + jnp.dot(z.astype(w_rec.dtype), w_rec,
                           preferred_element_type=jnp.float32))

        b_new = b_dec + BETA * z_new

        # Per-step spike-train writeback (bf16, lossless for 0/1).
        z_seq_ref[t] = z_new.astype(z_seq_ref.dtype)

        z, v, i, b = z_new, v_new, i_new, b_new

    # Write the carried state back to the resident refs once per block.
    z_ref[...] = z
    v_ref[...] = v
    i_ref[...] = i
    b_ref[...] = b


def prepare_lsnn_weights(input_weights, recurrent_weights,
                         compute_dtype=jnp.bfloat16):
    """One-time weight prep (hoisted off the step path).

    input_weights: (N, F_in), recurrent_weights: (N, N) (PyTorch linear layout).
    Returns (W_in^T, W_rec^T) cast to `compute_dtype`; no activation padding
    is needed since the kernel does two separate dots.
    """
    return (jnp.asarray(input_weights).T.astype(compute_dtype),
            jnp.asarray(recurrent_weights).T.astype(compute_dtype))


def _pick_time_block(t, max_tt=16):
    """Largest divisor of T that is <= max_tt (static, trace-time)."""
    tt = min(t, max_tt)
    while t % tt:
        tt -= 1
    return tt


@jax.jit
def lsnn_sequence(x_seq, state0, w_in_t, w_rec_t):
    """Run T LSNN Euler steps inside a single pallas_call (time-blocked).

    x_seq: (T, B, F_in) input spikes (native f32).  state0: (z, v, i, b),
    each (B, N) f32.  w_in_t/w_rec_t: output of prepare_lsnn_weights.
    Returns (z_seq[bf16, (T, B, N)], (z_T, v_T, i_T, b_T)).
    """
    z0, v0, i0, b0 = state0
    T, B, f_in = x_seq.shape
    n = w_rec_t.shape[0]
    state_dtype = v0.dtype
    tt = _pick_time_block(T)

    state_spec = pl.BlockSpec((B, n), lambda tb: (0, 0))
    state_shape = jax.ShapeDtypeStruct((B, n), state_dtype)

    z_seq, z_f, v_f, i_f, b_f = pl.pallas_call(
        _lsnn_seq_kernel,
        grid=(T // tt,),
        in_specs=[
            pl.BlockSpec((tt, B, f_in), lambda tb: (tb, 0, 0)),   # x block (native dtype)
            state_spec, state_spec, state_spec, state_spec,       # z0, v0, i0, b0
            pl.BlockSpec((f_in, n), lambda tb: (0, 0)),           # W_in^T  (resident)
            pl.BlockSpec((n, n), lambda tb: (0, 0)),              # W_rec^T (resident)
        ],
        out_specs=(
            pl.BlockSpec((tt, B, n), lambda tb: (tb, 0, 0)),      # spike-train block
            state_spec, state_spec, state_spec, state_spec,       # carried/final state
        ),
        out_shape=(
            jax.ShapeDtypeStruct((T, B, n), jnp.bfloat16),        # spikes: exactly 0/1
            state_shape, state_shape, state_shape, state_shape,
        ),
        compiler_params=pltpu.CompilerParams(
            dimension_semantics=("arbitrary",)),                  # recurrence serializes T
    )(x_seq, z0, v0, i0, b0, w_in_t, w_rec_t)

    return z_seq, (z_f, v_f, i_f, b_f)


def lsnn_step(x, state, w_in_t, w_rec_t):
    """Single-step API matching LSNNCell.forward: returns (z_new, new_state)."""
    _, new_state = lsnn_sequence(x[None], state, w_in_t, w_rec_t)
    return new_state[0], new_state


# ---------------------------- references ----------------------------
def _lsnn_step_module_ref(x, state, input_weights, recurrent_weights):
    """Pure-JAX single step in the original module formulation."""
    z, v, i, b = state
    v_dec = v + DT * TAU_MEM_INV * ((V_LEAK - v) + i)
    i_dec = i - DT * TAU_SYN_INV * i
    b_dec = b - DT * TAU_ADAPT_INV * b
    z_new = (v_dec - V_TH + b_dec > 0.0).astype(v.dtype)
    v_new = (1.0 - z_new) * v_dec + z_new * V_RESET
    i_new = i_dec + x @ input_weights.T + z @ recurrent_weights.T
    b_new = b_dec + BETA * z_new
    return z_new, (z_new, v_new, i_new, b_new)


def _lsnn_sequence_ref(x_seq, state0, w_in_t, w_rec_t):
    """Pure-JAX scan reference mirroring the kernel's two-dot formulation."""
    def step(carry, x):
        z, v, i, b = carry
        v_dec = v + DT * TAU_MEM_INV * ((V_LEAK - v) + i)
        i_dec = i - DT * TAU_SYN_INV * i
        b_dec = b - DT * TAU_ADAPT_INV * b
        spike = (v_dec - V_TH + b_dec) > 0.0
        z_new = spike.astype(v.dtype)
        v_new = jnp.where(spike, V_RESET, v_dec)
        i_new = (i_dec
                 + jnp.dot(x.astype(w_in_t.dtype), w_in_t,
                           preferred_element_type=jnp.float32)
                 + jnp.dot(z.astype(w_rec_t.dtype), w_rec_t,
                           preferred_element_type=jnp.float32))
        b_new = b_dec + BETA * z_new
        return (z_new, v_new, i_new, b_new), z_new

    carry, zs = jax.lax.scan(step, state0, x_seq)
    return zs, carry


if __name__ == "__main__":
    T, B, F_IN, N = 32, 16, 64, 128

    key = jax.random.PRNGKey(0)
    k_win, k_wrec, k_x, k_v, k_i = jax.random.split(key, 5)

    # Parameter init (matches the module's shapes & scaling).
    input_weights = jax.random.normal(k_win, (N, F_IN), jnp.float32) / jnp.sqrt(
        jnp.float32(F_IN))
    recurrent_weights = jax.random.normal(k_wrec, (N, N), jnp.float32)

    # One-time weight prep (bf16, pre-transposed).
    w_in_t, w_rec_t = prepare_lsnn_weights(input_weights, recurrent_weights)
    # bf16-rounded weight copies so the references see the same weight values.
    w_in_r = input_weights.astype(jnp.bfloat16).astype(jnp.float32)
    w_rec_r = recurrent_weights.astype(jnp.bfloat16).astype(jnp.float32)

    # Input spike train and a non-trivial initial state.
    x_seq = (jax.random.uniform(k_x, (T, B, F_IN)) < 0.3).astype(jnp.float32)
    v0 = jax.random.normal(k_v, (B, N), jnp.float32)
    i0 = jax.random.normal(k_i, (B, N), jnp.float32)
    z0 = (v0 > 0.5).astype(jnp.float32)
    b0 = 0.1 * jnp.abs(i0)
    state0 = (z0, v0, i0, b0)

    # --- run the fused time-blocked kernel ---
    z_seq, final_state = lsnn_sequence(x_seq, state0, w_in_t, w_rec_t)
    jax.block_until_ready(final_state)

    # Check 1: single-step parity against the original module formulation
    # (separate W_in / W_rec matmuls, bf16-rounded weights; 0/1 spikes make the
    # bf16 products exact, so only fp summation order differs).
    _, (z1k, v1k, i1k, b1k) = lsnn_step(x_seq[0], state0, w_in_t, w_rec_t)
    _, (z1r, v1r, i1r, b1r) = _lsnn_step_module_ref(
        x_seq[0], state0, w_in_r, w_rec_r)
    assert jnp.array_equal(z1k, z1r), "step-0 spikes mismatch vs module ref"
    for got, want in ((v1k, v1r), (i1k, i1r), (b1k, b1r)):
        assert jnp.allclose(got, want, atol=1e-3, rtol=1e-3), \
            "step-0 state mismatch vs module ref"

    # Check 2: full sequence against a pure-JAX scan using the same bf16
    # weights and two-dot formulation (only fp summation order may differ).
    z_ref, state_ref = _lsnn_sequence_ref(x_seq, state0, w_in_t, w_rec_t)
    assert jnp.allclose(z_seq.astype(jnp.float32), z_ref, atol=1e-3), \
        "spike train mismatch vs sequence reference"
    for got, want in zip(final_state, state_ref):
        assert jnp.allclose(got, want, atol=1e-3, rtol=1e-3), \
            "final state mismatch vs sequence reference"

    print("KERNEL_OK")
</pallas_src>

<mosaic_0001>
module attributes {stable_mosaic.version = 11 : i64} {
  func.func @_lsnn_seq_kernel(%arg0: i32, %arg1: memref<16x16x64xf32, #tpu.memory_space<vmem>>, %arg2: memref<16x128xf32, #tpu.memory_space<vmem>>, %arg3: memref<16x128xf32, #tpu.memory_space<vmem>>, %arg4: memref<16x128xf32, #tpu.memory_space<vmem>>, %arg5: memref<16x128xf32, #tpu.memory_space<vmem>>, %arg6: memref<64x128xbf16, #tpu.memory_space<vmem>>, %arg7: memref<128x128xbf16, #tpu.memory_space<vmem>>, %arg8: memref<16x16x128xbf16, #tpu.memory_space<vmem>>, %arg9: memref<16x128xf32, #tpu.memory_space<vmem>>, %arg10: memref<16x128xf32, #tpu.memory_space<vmem>>, %arg11: memref<16x128xf32, #tpu.memory_space<vmem>>, %arg12: memref<16x128xf32, #tpu.memory_space<vmem>>) attributes {dimension_semantics = [#tpu.dimension_semantics<arbitrary>], iteration_bounds = array<i64: 2>, scalar_prefetch = 0 : i64, scratch_operands = 0 : i64, tpu.core_type = #tpu.core_type<tc>, window_params = [{transform_indices = @transform_0, window_bounds = array<i64: 16, 16, 64>}, {pipeline_mode = #tpu.pipeline_mode<synchronous>, transform_indices = @transform_1, window_bounds = array<i64: 16, 128>}, {pipeline_mode = #tpu.pipeline_mode<synchronous>, transform_indices = @transform_2, window_bounds = array<i64: 16, 128>}, {pipeline_mode = #tpu.pipeline_mode<synchronous>, transform_indices = @transform_3, window_bounds = array<i64: 16, 128>}, {pipeline_mode = #tpu.pipeline_mode<synchronous>, transform_indices = @transform_4, window_bounds = array<i64: 16, 128>}, {pipeline_mode = #tpu.pipeline_mode<synchronous>, transform_indices = @transform_5, window_bounds = array<i64: 64, 128>}, {pipeline_mode = #tpu.pipeline_mode<synchronous>, transform_indices = @transform_6, window_bounds = array<i64: 128, 128>}, {transform_indices = @transform_7, window_bounds = array<i64: 16, 16, 128>}, {pipeline_mode = #tpu.pipeline_mode<synchronous>, transform_indices = @transform_8, window_bounds = array<i64: 16, 128>}, {pipeline_mode = #tpu.pipeline_mode<synchronous>, transform_indices = @transform_9, window_bounds = array<i64: 16, 128>}, {pipeline_mode = #tpu.pipeline_mode<synchronous>, transform_indices = @transform_10, window_bounds = array<i64: 16, 128>}, {pipeline_mode = #tpu.pipeline_mode<synchronous>, transform_indices = @transform_11, window_bounds = array<i64: 16, 128>}]} {
    %c0_i32 = arith.constant 0 : i32
    %0 = arith.cmpi eq, %arg0, %c0_i32 : i32
    %1 = arith.extui %0 : i1 to i32
    %c0_i32_0 = arith.constant 0 : i32
    %2 = arith.cmpi ne, %1, %c0_i32_0 : i32
    scf.if %2 {
      %c0_260 = arith.constant 0 : index
      %c0_261 = arith.constant 0 : index
      %589 = vector.load %arg2[%c0_260, %c0_261] : memref<16x128xf32, #tpu.memory_space<vmem>>, vector<16x128xf32>
      %c0_262 = arith.constant 0 : index
      %c0_263 = arith.constant 0 : index
      %590 = vector.load %arg9[%c0_262, %c0_263] : memref<16x128xf32, #tpu.memory_space<vmem>>, vector<16x128xf32>
      tpu.vector_store %arg9[%c0_262, %c0_263], %589 {strides = array<i32>} : memref<16x128xf32, #tpu.memory_space<vmem>>, vector<16x128xf32>,
      %c0_264 = arith.constant 0 : index
      %c0_265 = arith.constant 0 : index
      %591 = vector.load %arg3[%c0_264, %c0_265] : memref<16x128xf32, #tpu.memory_space<vmem>>, vector<16x128xf32>
      %c0_266 = arith.constant 0 : index
      %c0_267 = arith.constant 0 : index
      %592 = vector.load %arg10[%c0_266, %c0_267] : memref<16x128xf32, #tpu.memory_space<vmem>>, vector<16x128xf32>
      tpu.vector_store %arg10[%c0_266, %c0_267], %591 {strides = array<i32>} : memref<16x128xf32, #tpu.memory_space<vmem>>, vector<16x128xf32>,
      %c0_268 = arith.constant 0 : index
      %c0_269 = arith.constant 0 : index
      %593 = vector.load %arg4[%c0_268, %c0_269] : memref<16x128xf32, #tpu.memory_space<vmem>>, vector<16x128xf32>
      %c0_270 = arith.constant 0 : index
      %c0_271 = arith.constant 0 : index
      %594 = vector.load %arg11[%c0_270, %c0_271] : memref<16x128xf32, #tpu.memory_space<vmem>>, vector<16x128xf32>
      tpu.vector_store %arg11[%c0_270, %c0_271], %593 {strides = array<i32>} : memref<16x128xf32, #tpu.memory_space<vmem>>, vector<16x128xf32>,
      %c0_272 = arith.constant 0 : index
      %c0_273 = arith.constant 0 : index
      %595 = vector.load %arg5[%c0_272, %c0_273] : memref<16x128xf32, #tpu.memory_space<vmem>>, vector<16x128xf32>
      %c0_274 = arith.constant 0 : index
      %c0_275 = arith.constant 0 : index
      %596 = vector.load %arg12[%c0_274, %c0_275] : memref<16x128xf32, #tpu.memory_space<vmem>>, vector<16x128xf32>
      tpu.vector_store %arg12[%c0_274, %c0_275], %595 {strides = array<i32>} : memref<16x128xf32, #tpu.memory_space<vmem>>, vector<16x128xf32>,
    } else {
    }
    %c0 = arith.constant 0 : index
    %c0_1 = arith.constant 0 : index
    %3 = vector.load %arg6[%c0, %c0_1] : memref<64x128xbf16, #tpu.memory_space<vmem>>, vector<64x128xbf16>
    %c0_2 = arith.constant 0 : index
    %c0_3 = arith.constant 0 : index
    %4 = vector.load %arg7[%c0_2, %c0_3] : memref<128x128xbf16, #tpu.memory_space<vmem>>, vector<128x128xbf16>
    %c0_4 = arith.constant 0 : index
    %c0_5 = arith.constant 0 : index
    %5 = vector.load %arg9[%c0_4, %c0_5] : memref<16x128xf32, #tpu.memory_space<vmem>>, vector<16x128xf32>
    %c0_6 = arith.constant 0 : index
    %c0_7 = arith.constant 0 : index
    %6 = vector.load %arg10[%c0_6, %c0_7] : memref<16x128xf32, #tpu.memory_space<vmem>>, vector<16x128xf32>
    %c0_8 = arith.constant 0 : index
    %c0_9 = arith.constant 0 : index
    %7 = vector.load %arg11[%c0_8, %c0_9] : memref<16x128xf32, #tpu.memory_space<vmem>>, vector<16x128xf32>
    %c0_10 = arith.constant 0 : index
    %c0_11 = arith.constant 0 : index
    %8 = vector.load %arg12[%c0_10, %c0_11] : memref<16x128xf32, #tpu.memory_space<vmem>>, vector<16x128xf32>
    %cst = arith.constant 0.000000e+00 : f32
    %9 = vector.broadcast %cst : f32 to vector<16x128xf32>
    %10 = arith.subf %9, %6 : vector<16x128xf32>
    %11 = arith.addf %10, %7 : vector<16x128xf32>
    %cst_12 = arith.constant 1.000000e-01 : f32
    %12 = vector.broadcast %cst_12 : f32 to vector<16x128xf32>
    %13 = arith.mulf %12, %11 : vector<16x128xf32>
    %14 = arith.addf %6, %13 : vector<16x128xf32>
    %cst_13 = arith.constant 2.000000e-01 : f32
    %15 = vector.broadcast %cst_13 : f32 to vector<16x128xf32>
    %16 = arith.mulf %15, %7 : vector<16x128xf32>
    %17 = arith.subf %7, %16 : vector<16x128xf32>
    %cst_14 = arith.constant 1.42857141E-6 : f32
    %18 = vector.broadcast %cst_14 : f32 to vector<16x128xf32>
    %19 = arith.mulf %18, %8 : vector<16x128xf32>
    %20 = arith.subf %8, %19 : vector<16x128xf32>
    %cst_15 = arith.constant 1.000000e+00 : f32
    %21 = vector.broadcast %cst_15 : f32 to vector<16x128xf32>
    %22 = arith.subf %14, %21 : vector<16x128xf32>
    %23 = arith.addf %22, %20 : vector<16x128xf32>
    %cst_16 = arith.constant 0.000000e+00 : f32
    %24 = vector.broadcast %cst_16 : f32 to vector<16x128xf32>
    %25 = arith.cmpf ogt, %23, %24 : vector<16x128xf32>
    %26 = arith.extui %25 : vector<16x128xi1> to vector<16x128xi32>
    %27 = arith.sitofp %26 : vector<16x128xi32> to vector<16x128xf32>
    %cst_17 = arith.constant 0.000000e+00 : f32
    %28 = vector.broadcast %cst_17 : f32 to vector<16x128xf32>
    %29 = arith.select %25, %28, %14 : vector<16x128xi1>, vector<16x128xf32>
    %c0_18 = arith.constant 0 : index
    %c0_19 = arith.constant 0 : index
    %c0_20 = arith.constant 0 : index
    %30 = vector.load %arg1[%c0_18, %c0_19, %c0_20] : memref<16x16x64xf32, #tpu.memory_space<vmem>>, vector<1x16x64xf32>
    %31 = vector.shape_cast %30 : vector<1x16x64xf32> to vector<16x64xf32>
    %32 = arith.truncf %31 : vector<16x64xf32> to vector<16x64xbf16>
    %cst_21 = arith.constant dense<0.000000e+00> : vector<16x128xf32>
    %33 = tpu.matmul %32, %3, %cst_21 {dimension_numbers = #tpu.dot_dimension_numbers<[1], [0], [0], [1], [0, 0, 1, 1], [], []>} : vector<16x64xbf16>, vector<64x128xbf16>, vector<16x128xf32> -> vector<16x128xf32>
    %34 = arith.addf %17, %33 : vector<16x128xf32>
    %35 = arith.truncf %5 : vector<16x128xf32> to vector<16x128xbf16>
    %cst_22 = arith.constant dense<0.000000e+00> : vector<16x128xf32>
    %36 = tpu.matmul %35, %4, %cst_22 {dimension_numbers = #tpu.dot_dimension_numbers<[1], [0], [0], [1], [0, 0, 1, 1], [], []>} : vector<16x128xbf16>, vector<128x128xbf16>, vector<16x128xf32> -> vector<16x128xf32>
    %37 = arith.addf %34, %36 : vector<16x128xf32>
    %cst_23 = arith.constant 1.800000e+00 : f32
    %38 = vector.broadcast %cst_23 : f32 to vector<16x128xf32>
    %39 = arith.mulf %38, %27 : vector<16x128xf32>
    %40 = arith.addf %20, %39 : vector<16x128xf32>
    %41 = arith.truncf %27 : vector<16x128xf32> to vector<16x128xbf16>
    %c0_24 = arith.constant 0 : index
    %c0_25 = arith.constant 0 : index
    %c0_26 = arith.constant 0 : index
    %42 = vector.load %arg8[%c0_24, %c0_25, %c0_26] : memref<16x16x128xbf16, #tpu.memory_space<vmem>>, vector<1x16x128xbf16>
    %43 = vector.shape_cast %42 : vector<1x16x128xbf16> to vector<16x128xbf16>
    %44 = vector.shape_cast %41 : vector<16x128xbf16> to vector<1x16x128xbf16>
    tpu.vector_store %arg8[%c0_24, %c0_25, %c0_26], %44 {strides = array<i32>} : memref<16x16x128xbf16, #tpu.memory_space<vmem>>, vector<1x16x128xbf16>,
    %cst_27 = arith.constant 0.000000e+00 : f32
    %45 = vector.broadcast %cst_27 : f32 to vector<16x128xf32>
    %46 = arith.subf %45, %29 : vector<16x128xf32>
    %47 = arith.addf %46, %37 : vector<16x128xf32>
    %cst_28 = arith.constant 1.000000e-01 : f32
    %48 = vector.broadcast %cst_28 : f32 to vector<16x128xf32>
    %49 = arith.mulf %48, %47 : vector<16x128xf32>
    %50 = arith.addf %29, %49 : vector<16x128xf32>
    %cst_29 = arith.constant 2.000000e-01 : f32
    %51 = vector.broadcast %cst_29 : f32 to vector<16x128xf32>
    %52 = arith.mulf %51, %37 : vector<16x128xf32>
    %53 = arith.subf %37, %52 : vector<16x128xf32>
    %cst_30 = arith.constant 1.42857141E-6 : f32
    %54 = vector.broadcast %cst_30 : f32 to vector<16x128xf32>
    %55 = arith.mulf %54, %40 : vector<16x128xf32>
    %56 = arith.subf %40, %55 : vector<16x128xf32>
    %cst_31 = arith.constant 1.000000e+00 : f32
    %57 = vector.broadcast %cst_31 : f32 to vector<16x128xf32>
    %58 = arith.subf %50, %57 : vector<16x128xf32>
    %59 = arith.addf %58, %56 : vector<16x128xf32>
    %cst_32 = arith.constant 0.000000e+00 : f32
    %60 = vector.broadcast %cst_32 : f32 to vector<16x128xf32>
    %61 = arith.cmpf ogt, %59, %60 : vector<16x128xf32>
    %62 = arith.extui %61 : vector<16x128xi1> to vector<16x128xi32>
    %63 = arith.sitofp %62 : vector<16x128xi32> to vector<16x128xf32>
    %cst_33 = arith.constant 0.000000e+00 : f32
    %64 = vector.broadcast %cst_33 : f32 to vector<16x128xf32>
    %65 = arith.select %61, %64, %50 : vector<16x128xi1>, vector<16x128xf32>
    %c1 = arith.constant 1 : index
    %c0_34 = arith.constant 0 : index
    %c0_35 = arith.constant 0 : index
    %66 = vector.load %arg1[%c1, %c0_34, %c0_35] : memref<16x16x64xf32, #tpu.memory_space<vmem>>, vector<1x16x64xf32>
    %67 = vector.shape_cast %66 : vector<1x16x64xf32> to vector<16x64xf32>
    %68 = arith.truncf %67 : vector<16x64xf32> to vector<16x64xbf16>
    %cst_36 = arith.constant dense<0.000000e+00> : vector<16x128xf32>
    %69 = tpu.matmul %68, %3, %cst_36 {dimension_numbers = #tpu.dot_dimension_numbers<[1], [0], [0], [1], [0, 0, 1, 1], [], []>} : vector<16x64xbf16>, vector<64x128xbf16>, vector<16x128xf32> -> vector<16x128xf32>
    %70 = arith.addf %53, %69 : vector<16x128xf32>
    %71 = arith.truncf %27 : vector<16x128xf32> to vector<16x128xbf16>
    %cst_37 = arith.constant dense<0.000000e+00> : vector<16x128xf32>
    %72 = tpu.matmul %71, %4, %cst_37 {dimension_numbers = #tpu.dot_dimension_numbers<[1], [0], [0], [1], [0, 0, 1, 1], [], []>} : vector<16x128xbf16>, vector<128x128xbf16>, vector<16x128xf32> -> vector<16x128xf32>
    %73 = arith.addf %70, %72 : vector<16x128xf32>
    %cst_38 = arith.constant 1.800000e+00 : f32
    %74 = vector.broadcast %cst_38 : f32 to vector<16x128xf32>
    %75 = arith.mulf %74, %63 : vector<16x128xf32>
    %76 = arith.addf %56, %75 : vector<16x128xf32>
    %77 = arith.truncf %63 : vector<16x128xf32> to vector<16x128xbf16>
    %c1_39 = arith.constant 1 : index
    %c0_40 = arith.constant 0 : index
    %c0_41 = arith.constant 0 : index
    %78 = vector.load %arg8[%c1_39, %c0_40, %c0_41] : memref<16x16x128xbf16, #tpu.memory_space<vmem>>, vector<1x16x128xbf16>
    %79 = vector.shape_cast %78 : vector<1x16x128xbf16> to vector<16x128xbf16>
    %80 = vector.shape_cast %77 : vector<16x128xbf16> to vector<1x16x128xbf16>
    tpu.vector_store %arg8[%c1_39, %c0_40, %c0_41], %80 {strides = array<i32>} : memref<16x16x128xbf16, #tpu.memory_space<vmem>>, vector<1x16x128xbf16>,
    %cst_42 = arith.constant 0.000000e+00 : f32
    %81 = vector.broadcast %cst_42 : f32 to vector<16x128xf32>
    %82 = arith.subf %81, %65 : vector<16x128xf32>
    %83 = arith.addf %82, %73 : vector<16x128xf32>
    %cst_43 = arith.constant 1.000000e-01 : f32
    %84 = vector.broadcast %cst_43 : f32 to vector<16x128xf32>
    %85 = arith.mulf %84, %83 : vector<16x128xf32>
    %86 = arith.addf %65, %85 : vector<16x128xf32>
    %cst_44 = arith.constant 2.000000e-01 : f32
    %87 = vector.broadcast %cst_44 : f32 to vector<16x128xf32>
    %88 = arith.mulf %87, %73 : vector<16x128xf32>
    %89 = arith.subf %73, %88 : vector<16x128xf32>
    %cst_45 = arith.constant 1.42857141E-6 : f32
    %90 = vector.broadcast %cst_45 : f32 to vector<16x128xf32>
    %91 = arith.mulf %90, %76 : vector<16x128xf32>
    %92 = arith.subf %76, %91 : vector<16x128xf32>
    %cst_46 = arith.constant 1.000000e+00 : f32
    %93 = vector.broadcast %cst_46 : f32 to vector<16x128xf32>
    %94 = arith.subf %86, %93 : vector<16x128xf32>
    %95 = arith.addf %94, %92 : vector<16x128xf32>
    %cst_47 = arith.constant 0.000000e+00 : f32
    %96 = vector.broadcast %cst_47 : f32 to vector<16x128xf32>
    %97 = arith.cmpf ogt, %95, %96 : vector<16x128xf32>
    %98 = arith.extui %97 : vector<16x128xi1> to vector<16x128xi32>
    %99 = arith.sitofp %98 : vector<16x128xi32> to vector<16x128xf32>
    %cst_48 = arith.constant 0.000000e+00 : f32
    %100 = vector.broadcast %cst_48 : f32 to vector<16x128xf32>
    %101 = arith.select %97, %100, %86 : vector<16x128xi1>, vector<16x128xf32>
    %c2 = arith.constant 2 : index
    %c0_49 = arith.constant 0 : index
    %c0_50 = arith.constant 0 : index
    %102 = vector.load %arg1[%c2, %c0_49, %c0_50] : memref<16x16x64xf32, #tpu.memory_space<vmem>>, vector<1x16x64xf32>
    %103 = vector.shape_cast %102 : vector<1x16x64xf32> to vector<16x64xf32>
    %104 = arith.truncf %103 : vector<16x64xf32> to vector<16x64xbf16>
    %cst_51 = arith.constant dense<0.000000e+00> : vector<16x128xf32>
    %105 = tpu.matmul %104, %3, %cst_51 {dimension_numbers = #tpu.dot_dimension_numbers<[1], [0], [0], [1], [0, 0, 1, 1], [], []>} : vector<16x64xbf16>, vector<64x128xbf16>, vector<16x128xf32> -> vector<16x128xf32>
    %106 = arith.addf %89, %105 : vector<16x128xf32>
    %107 = arith.truncf %63 : vector<16x128xf32> to vector<16x128xbf16>
    %cst_52 = arith.constant dense<0.000000e+00> : vector<16x128xf32>
    %108 = tpu.matmul %107, %4, %cst_52 {dimension_numbers = #tpu.dot_dimension_numbers<[1], [0], [0], [1], [0, 0, 1, 1], [], []>} : vector<16x128xbf16>, vector<128x128xbf16>, vector<16x128xf32> -> vector<16x128xf32>
    %109 = arith.addf %106, %108 : vector<16x128xf32>
    %cst_53 = arith.constant 1.800000e+00 : f32
    %110 = vector.broadcast %cst_53 : f32 to vector<16x128xf32>
    %111 = arith.mulf %110, %99 : vector<16x128xf32>
    %112 = arith.addf %92, %111 : vector<16x128xf32>
    %113 = arith.truncf %99 : vector<16x128xf32> to vector<16x128xbf16>
    %c2_54 = arith.constant 2 : index
    %c0_55 = arith.constant 0 : index
    %c0_56 = arith.constant 0 : index
    %114 = vector.load %arg8[%c2_54, %c0_55, %c0_56] : memref<16x16x128xbf16, #tpu.memory_space<vmem>>, vector<1x16x128xbf16>
    %115 = vector.shape_cast %114 : vector<1x16x128xbf16> to vector<16x128xbf16>
    %116 = vector.shape_cast %113 : vector<16x128xbf16> to vector<1x16x128xbf16>
    tpu.vector_store %arg8[%c2_54, %c0_55, %c0_56], %116 {strides = array<i32>} : memref<16x16x128xbf16, #tpu.memory_space<vmem>>, vector<1x16x128xbf16>,
    %cst_57 = arith.constant 0.000000e+00 : f32
    %117 = vector.broadcast %cst_57 : f32 to vector<16x128xf32>
    %118 = arith.subf %117, %101 : vector<16x128xf32>
    %119 = arith.addf %118, %109 : vector<16x128xf32>
    %cst_58 = arith.constant 1.000000e-01 : f32
    %120 = vector.broadcast %cst_58 : f32 to vector<16x128xf32>
    %121 = arith.mulf %120, %119 : vector<16x128xf32>
    %122 = arith.addf %101, %121 : vector<16x128xf32>
    %cst_59 = arith.constant 2.000000e-01 : f32
    %123 = vector.broadcast %cst_59 : f32 to vector<16x128xf32>
    %124 = arith.mulf %123, %109 : vector<16x128xf32>
    %125 = arith.subf %109, %124 : vector<16x128xf32>
    %cst_60 = arith.constant 1.42857141E-6 : f32
    %126 = vector.broadcast %cst_60 : f32 to vector<16x128xf32>
    %127 = arith.mulf %126, %112 : vector<16x128xf32>
    %128 = arith.subf %112, %127 : vector<16x128xf32>
    %cst_61 = arith.constant 1.000000e+00 : f32
    %129 = vector.broadcast %cst_61 : f32 to vector<16x128xf32>
    %130 = arith.subf %122, %129 : vector<16x128xf32>
    %131 = arith.addf %130, %128 : vector<16x128xf32>
    %cst_62 = arith.constant 0.000000e+00 : f32
    %132 = vector.broadcast %cst_62 : f32 to vector<16x128xf32>
    %133 = arith.cmpf ogt, %131, %132 : vector<16x128xf32>
    %134 = arith.extui %133 : vector<16x128xi1> to vector<16x128xi32>
    %135 = arith.sitofp %134 : vector<16x128xi32> to vector<16x128xf32>
    %cst_63 = arith.constant 0.000000e+00 : f32
    %136 = vector.broadcast %cst_63 : f32 to vector<16x128xf32>
    %137 = arith.select %133, %136, %122 : vector<16x128xi1>, vector<16x128xf32>
    %c3 = arith.constant 3 : index
    %c0_64 = arith.constant 0 : index
    %c0_65 = arith.constant 0 : index
    %138 = vector.load %arg1[%c3, %c0_64, %c0_65] : memref<16x16x64xf32, #tpu.memory_space<vmem>>, vector<1x16x64xf32>
    %139 = vector.shape_cast %138 : vector<1x16x64xf32> to vector<16x64xf32>
    %140 = arith.truncf %139 : vector<16x64xf32> to vector<16x64xbf16>
    %cst_66 = arith.constant dense<0.000000e+00> : vector<16x128xf32>
    %141 = tpu.matmul %140, %3, %cst_66 {dimension_numbers = #tpu.dot_dimension_numbers<[1], [0], [0], [1], [0, 0, 1, 1], [], []>} : vector<16x64xbf16>, vector<64x128xbf16>, vector<16x128xf32> -> vector<16x128xf32>
    %142 = arith.addf %125, %141 : vector<16x128xf32>
    %143 = arith.truncf %99 : vector<16x128xf32> to vector<16x128xbf16>
    %cst_67 = arith.constant dense<0.000000e+00> : vector<16x128xf32>
    %144 = tpu.matmul %143, %4, %cst_67 {dimension_numbers = #tpu.dot_dimension_numbers<[1], [0], [0], [1], [0, 0, 1, 1], [], []>} : vector<16x128xbf16>, vector<128x128xbf16>, vector<16x128xf32> -> vector<16x128xf32>
    %145 = arith.addf %142, %144 : vector<16x128xf32>
    %cst_68 = arith.constant 1.800000e+00 : f32
    %146 = vector.broadcast %cst_68 : f32 to vector<16x128xf32>
    %147 = arith.mulf %146, %135 : vector<16x128xf32>
    %148 = arith.addf %128, %147 : vector<16x128xf32>
    %149 = arith.truncf %135 : vector<16x128xf32> to vector<16x128xbf16>
    %c3_69 = arith.constant 3 : index
    %c0_70 = arith.constant 0 : index
    %c0_71 = arith.constant 0 : index
    %150 = vector.load %arg8[%c3_69, %c0_70, %c0_71] : memref<16x16x128xbf16, #tpu.memory_space<vmem>>, vector<1x16x128xbf16>
    %151 = vector.shape_cast %150 : vector<1x16x128xbf16> to vector<16x128xbf16>
    %152 = vector.shape_cast %149 : vector<16x128xbf16> to vector<1x16x128xbf16>
    tpu.vector_store %arg8[%c3_69, %c0_70, %c0_71], %152 {strides = array<i32>} : memref<16x16x128xbf16, #tpu.memory_space<vmem>>, vector<1x16x128xbf16>,
    %cst_72 = arith.constant 0.000000e+00 : f32
    %153 = vector.broadcast %cst_72 : f32 to vector<16x128xf32>
    %154 = arith.subf %153, %137 : vector<16x128xf32>
    %155 = arith.addf %154, %145 : vector<16x128xf32>
    %cst_73 = arith.constant 1.000000e-01 : f32
    %156 = vector.broadcast %cst_73 : f32 to vector<16x128xf32>
    %157 = arith.mulf %156, %155 : vector<16x128xf32>
    %158 = arith.addf %137, %157 : vector<16x128xf32>
    %cst_74 = arith.constant 2.000000e-01 : f32
    %159 = vector.broadcast %cst_74 : f32 to vector<16x128xf32>
    %160 = arith.mulf %159, %145 : vector<16x128xf32>
    %161 = arith.subf %145, %160 : vector<16x128xf32>
    %cst_75 = arith.constant 1.42857141E-6 : f32
    %162 = vector.broadcast %cst_75 : f32 to vector<16x128xf32>
    %163 = arith.mulf %162, %148 : vector<16x128xf32>
    %164 = arith.subf %148, %163 : vector<16x128xf32>
    %cst_76 = arith.constant 1.000000e+00 : f32
    %165 = vector.broadcast %cst_76 : f32 to vector<16x128xf32>
    %166 = arith.subf %158, %165 : vector<16x128xf32>
    %167 = arith.addf %166, %164 : vector<16x128xf32>
    %cst_77 = arith.constant 0.000000e+00 : f32
    %168 = vector.broadcast %cst_77 : f32 to vector<16x128xf32>
    %169 = arith.cmpf ogt, %167, %168 : vector<16x128xf32>
    %170 = arith.extui %169 : vector<16x128xi1> to vector<16x128xi32>
    %171 = arith.sitofp %170 : vector<16x128xi32> to vector<16x128xf32>
    %cst_78 = arith.constant 0.000000e+00 : f32
    %172 = vector.broadcast %cst_78 : f32 to vector<16x128xf32>
    %173 = arith.select %169, %172, %158 : vector<16x128xi1>, vector<16x128xf32>
    %c4 = arith.constant 4 : index
    %c0_79 = arith.constant 0 : index
    %c0_80 = arith.constant 0 : index
    %174 = vector.load %arg1[%c4, %c0_79, %c0_80] : memref<16x16x64xf32, #tpu.memory_space<vmem>>, vector<1x16x64xf32>
    %175 = vector.shape_cast %174 : vector<1x16x64xf32> to vector<16x64xf32>
    %176 = arith.truncf %175 : vector<16x64xf32> to vector<16x64xbf16>
    %cst_81 = arith.constant dense<0.000000e+00> : vector<16x128xf32>
    %177 = tpu.matmul %176, %3, %cst_81 {dimension_numbers = #tpu.dot_dimension_numbers<[1], [0], [0], [1], [0, 0, 1, 1], [], []>} : vector<16x64xbf16>, vector<64x128xbf16>, vector<16x128xf32> -> vector<16x128xf32>
    %178 = arith.addf %161, %177 : vector<16x128xf32>
    %179 = arith.truncf %135 : vector<16x128xf32> to vector<16x128xbf16>
    %cst_82 = arith.constant dense<0.000000e+00> : vector<16x128xf32>
    %180 = tpu.matmul %179, %4, %cst_82 {dimension_numbers = #tpu.dot_dimension_numbers<[1], [0], [0], [1], [0, 0, 1, 1], [], []>} : vector<16x128xbf16>, vector<128x128xbf16>, vector<16x128xf32> -> vector<16x128xf32>
    %181 = arith.addf %178, %180 : vector<16x128xf32>
    %cst_83 = arith.constant 1.800000e+00 : f32
    %182 = vector.broadcast %cst_83 : f32 to vector<16x128xf32>
    %183 = arith.mulf %182, %171 : vector<16x128xf32>
    %184 = arith.addf %164, %183 : vector<16x128xf32>
    %185 = arith.truncf %171 : vector<16x128xf32> to vector<16x128xbf16>
    %c4_84 = arith.constant 4 : index
    %c0_85 = arith.constant 0 : index
    %c0_86 = arith.constant 0 : index
    %186 = vector.load %arg8[%c4_84, %c0_85, %c0_86] : memref<16x16x128xbf16, #tpu.memory_space<vmem>>, vector<1x16x128xbf16>
    %187 = vector.shape_cast %186 : vector<1x16x128xbf16> to vector<16x128xbf16>
    %188 = vector.shape_cast %185 : vector<16x128xbf16> to vector<1x16x128xbf16>
    tpu.vector_store %arg8[%c4_84, %c0_85, %c0_86], %188 {strides = array<i32>} : memref<16x16x128xbf16, #tpu.memory_space<vmem>>, vector<1x16x128xbf16>,
    %cst_87 = arith.constant 0.000000e+00 : f32
    %189 = vector.broadcast %cst_87 : f32 to vector<16x128xf32>
    %190 = arith.subf %189, %173 : vector<16x128xf32>
    %191 = arith.addf %190, %181 : vector<16x128xf32>
    %cst_88 = arith.constant 1.000000e-01 : f32
    %192 = vector.broadcast %cst_88 : f32 to vector<16x128xf32>
    %193 = arith.mulf %192, %191 : vector<16x128xf32>
    %194 = arith.addf %173, %193 : vector<16x128xf32>
    %cst_89 = arith.constant 2.000000e-01 : f32
    %195 = vector.broadcast %cst_89 : f32 to vector<16x128xf32>
    %196 = arith.mulf %195, %181 : vector<16x128xf32>
    %197 = arith.subf %181, %196 : vector<16x128xf32>
    %cst_90 = arith.constant 1.42857141E-6 : f32
    %198 = vector.broadcast %cst_90 : f32 to vector<16x128xf32>
    %199 = arith.mulf %198, %184 : vector<16x128xf32>
    %200 = arith.subf %184, %199 : vector<16x128xf32>
    %cst_91 = arith.constant 1.000000e+00 : f32
    %201 = vector.broadcast %cst_91 : f32 to vector<16x128xf32>
    %202 = arith.subf %194, %201 : vector<16x128xf32>
    %203 = arith.addf %202, %200 : vector<16x128xf32>
    %cst_92 = arith.constant 0.000000e+00 : f32
    %204 = vector.broadcast %cst_92 : f32 to vector<16x128xf32>
    %205 = arith.cmpf ogt, %203, %204 : vector<16x128xf32>
    %206 = arith.extui %205 : vector<16x128xi1> to vector<16x128xi32>
    %207 = arith.sitofp %206 : vector<16x128xi32> to vector<16x128xf32>
    %cst_93 = arith.constant 0.000000e+00 : f32
    %208 = vector.broadcast %cst_93 : f32 to vector<16x128xf32>
    %209 = arith.select %205, %208, %194 : vector<16x128xi1>, vector<16x128xf32>
    %c5 = arith.constant 5 : index
    %c0_94 = arith.constant 0 : index
    %c0_95 = arith.constant 0 : index
    %210 = vector.load %arg1[%c5, %c0_94, %c0_95] : memref<16x16x64xf32, #tpu.memory_space<vmem>>, vector<1x16x64xf32>
    %211 = vector.shape_cast %210 : vector<1x16x64xf32> to vector<16x64xf32>
    %212 = arith.truncf %211 : vector<16x64xf32> to vector<16x64xbf16>
    %cst_96 = arith.constant dense<0.000000e+00> : vector<16x128xf32>
    %213 = tpu.matmul %212, %3, %cst_96 {dimension_numbers = #tpu.dot_dimension_numbers<[1], [0], [0], [1], [0, 0, 1, 1], [], []>} : vector<16x64xbf16>, vector<64x128xbf16>, vector<16x128xf32> -> vector<16x128xf32>
    %214 = arith.addf %197, %213 : vector<16x128xf32>
    %215 = arith.truncf %171 : vector<16x128xf32> to vector<16x128xbf16>
    %cst_97 = arith.constant dense<0.000000e+00> : vector<16x128xf32>
    %216 = tpu.matmul %215, %4, %cst_97 {dimension_numbers = #tpu.dot_dimension_numbers<[1], [0], [0], [1], [0, 0, 1, 1], [], []>} : vector<16x128xbf16>, vector<128x128xbf16>, vector<16x128xf32> -> vector<16x128xf32>
    %217 = arith.addf %214, %216 : vector<16x128xf32>
    %cst_98 = arith.constant 1.800000e+00 : f32
    %218 = vector.broadcast %cst_98 : f32 to vector<16x128xf32>
    %219 = arith.mulf %218, %207 : vector<16x128xf32>
    %220 = arith.addf %200, %219 : vector<16x128xf32>
    %221 = arith.truncf %207 : vector<16x128xf32> to vector<16x128xbf16>
    %c5_99 = arith.constant 5 : index
    %c0_100 = arith.constant 0 : index
    %c0_101 = arith.constant 0 : index
    %222 = vector.load %arg8[%c5_99, %c0_100, %c0_101] : memref<16x16x128xbf16, #tpu.memory_space<vmem>>, vector<1x16x128xbf16>
    %223 = vector.shape_cast %222 : vector<1x16x128xbf16> to vector<16x128xbf16>
    %224 = vector.shape_cast %221 : vector<16x128xbf16> to vector<1x16x128xbf16>
    tpu.vector_store %arg8[%c5_99, %c0_100, %c0_101], %224 {strides = array<i32>} : memref<16x16x128xbf16, #tpu.memory_space<vmem>>, vector<1x16x128xbf16>,
    %cst_102 = arith.constant 0.000000e+00 : f32
    %225 = vector.broadcast %cst_102 : f32 to vector<16x128xf32>
    %226 = arith.subf %225, %209 : vector<16x128xf32>
    %227 = arith.addf %226, %217 : vector<16x128xf32>
    %cst_103 = arith.constant 1.000000e-01 : f32
    %228 = vector.broadcast %cst_103 : f32 to vector<16x128xf32>
    %229 = arith.mulf %228, %227 : vector<16x128xf32>
    %230 = arith.addf %209, %229 : vector<16x128xf32>
    %cst_104 = arith.constant 2.000000e-01 : f32
    %231 = vector.broadcast %cst_104 : f32 to vector<16x128xf32>
    %232 = arith.mulf %231, %217 : vector<16x128xf32>
    %233 = arith.subf %217, %232 : vector<16x128xf32>
    %cst_105 = arith.constant 1.42857141E-6 : f32
    %234 = vector.broadcast %cst_105 : f32 to vector<16x128xf32>
    %235 = arith.mulf %234, %220 : vector<16x128xf32>
    %236 = arith.subf %220, %235 : vector<16x128xf32>
    %cst_106 = arith.constant 1.000000e+00 : f32
    %237 = vector.broadcast %cst_106 : f32 to vector<16x128xf32>
    %238 = arith.subf %230, %237 : vector<16x128xf32>
    %239 = arith.addf %238, %236 : vector<16x128xf32>
    %cst_107 = arith.constant 0.000000e+00 : f32
    %240 = vector.broadcast %cst_107 : f32 to vector<16x128xf32>
    %241 = arith.cmpf ogt, %239, %240 : vector<16x128xf32>
    %242 = arith.extui %241 : vector<16x128xi1> to vector<16x128xi32>
    %243 = arith.sitofp %242 : vector<16x128xi32> to vector<16x128xf32>
    %cst_108 = arith.constant 0.000000e+00 : f32
    %244 = vector.broadcast %cst_108 : f32 to vector<16x128xf32>
    %245 = arith.select %241, %244, %230 : vector<16x128xi1>, vector<16x128xf32>
    %c6 = arith.constant 6 : index
    %c0_109 = arith.constant 0 : index
    %c0_110 = arith.constant 0 : index
    %246 = vector.load %arg1[%c6, %c0_109, %c0_110] : memref<16x16x64xf32, #tpu.memory_space<vmem>>, vector<1x16x64xf32>
    %247 = vector.shape_cast %246 : vector<1x16x64xf32> to vector<16x64xf32>
    %248 = arith.truncf %247 : vector<16x64xf32> to vector<16x64xbf16>
    %cst_111 = arith.constant dense<0.000000e+00> : vector<16x128xf32>
    %249 = tpu.matmul %248, %3, %cst_111 {dimension_numbers = #tpu.dot_dimension_numbers<[1], [0], [0], [1], [0, 0, 1, 1], [], []>} : vector<16x64xbf16>, vector<64x128xbf16>, vector<16x128xf32> -> vector<16x128xf32>
    %250 = arith.addf %233, %249 : vector<16x128xf32>
    %251 = arith.truncf %207 : vector<16x128xf32> to vector<16x128xbf16>
    %cst_112 = arith.constant dense<0.000000e+00> : vector<16x128xf32>
    %252 = tpu.matmul %251, %4, %cst_112 {dimension_numbers = #tpu.dot_dimension_numbers<[1], [0], [0], [1], [0, 0, 1, 1], [], []>} : vector<16x128xbf16>, vector<128x128xbf16>, vector<16x128xf32> -> vector<16x128xf32>
    %253 = arith.addf %250, %252 : vector<16x128xf32>
    %cst_113 = arith.constant 1.800000e+00 : f32
    %254 = vector.broadcast %cst_113 : f32 to vector<16x128xf32>
    %255 = arith.mulf %254, %243 : vector<16x128xf32>
    %256 = arith.addf %236, %255 : vector<16x128xf32>
    %257 = arith.truncf %243 : vector<16x128xf32> to vector<16x128xbf16>
    %c6_114 = arith.constant 6 : index
    %c0_115 = arith.constant 0 : index
    %c0_116 = arith.constant 0 : index
    %258 = vector.load %arg8[%c6_114, %c0_115, %c0_116] : memref<16x16x128xbf16, #tpu.memory_space<vmem>>, vector<1x16x128xbf16>
    %259 = vector.shape_cast %258 : vector<1x16x128xbf16> to vector<16x128xbf16>
    %260 = vector.shape_cast %257 : vector<16x128xbf16> to vector<1x16x128xbf16>
    tpu.vector_store %arg8[%c6_114, %c0_115, %c0_116], %260 {strides = array<i32>} : memref<16x16x128xbf16, #tpu.memory_space<vmem>>, vector<1x16x128xbf16>,
    %cst_117 = arith.constant 0.000000e+00 : f32
    %261 = vector.broadcast %cst_117 : f32 to vector<16x128xf32>
    %262 = arith.subf %261, %245 : vector<16x128xf32>
    %263 = arith.addf %262, %253 : vector<16x128xf32>
    %cst_118 = arith.constant 1.000000e-01 : f32
    %264 = vector.broadcast %cst_118 : f32 to vector<16x128xf32>
    %265 = arith.mulf %264, %263 : vector<16x128xf32>
    %266 = arith.addf %245, %265 : vector<16x128xf32>
    %cst_119 = arith.constant 2.000000e-01 : f32
    %267 = vector.broadcast %cst_119 : f32 to vector<16x128xf32>
    %268 = arith.mulf %267, %253 : vector<16x128xf32>
    %269 = arith.subf %253, %268 : vector<16x128xf32>
    %cst_120 = arith.constant 1.42857141E-6 : f32
    %270 = vector.broadcast %cst_120 : f32 to vector<16x128xf32>
    %271 = arith.mulf %270, %256 : vector<16x128xf32>
    %272 = arith.subf %256, %271 : vector<16x128xf32>
    %cst_121 = arith.constant 1.000000e+00 : f32
    %273 = vector.broadcast %cst_121 : f32 to vector<16x128xf32>
    %274 = arith.subf %266, %273 : vector<16x128xf32>
    %275 = arith.addf %274, %272 : vector<16x128xf32>
    %cst_122 = arith.constant 0.000000e+00 : f32
    %276 = vector.broadcast %cst_122 : f32 to vector<16x128xf32>
    %277 = arith.cmpf ogt, %275, %276 : vector<16x128xf32>
    %278 = arith.extui %277 : vector<16x128xi1> to vector<16x128xi32>
    %279 = arith.sitofp %278 : vector<16x128xi32> to vector<16x128xf32>
    %cst_123 = arith.constant 0.000000e+00 : f32
    %280 = vector.broadcast %cst_123 : f32 to vector<16x128xf32>
    %281 = arith.select %277, %280, %266 : vector<16x128xi1>, vector<16x128xf32>
    %c7 = arith.constant 7 : index
    %c0_124 = arith.constant 0 : index
    %c0_125 = arith.constant 0 : index
    %282 = vector.load %arg1[%c7, %c0_124, %c0_125] : memref<16x16x64xf32, #tpu.memory_space<vmem>>, vector<1x16x64xf32>
    %283 = vector.shape_cast %282 : vector<1x16x64xf32> to vector<16x64xf32>
    %284 = arith.truncf %283 : vector<16x64xf32> to vector<16x64xbf16>
    %cst_126 = arith.constant dense<0.000000e+00> : vector<16x128xf32>
    %285 = tpu.matmul %284, %3, %cst_126 {dimension_numbers = #tpu.dot_dimension_numbers<[1], [0], [0], [1], [0, 0, 1, 1], [], []>} : vector<16x64xbf16>, vector<64x128xbf16>, vector<16x128xf32> -> vector<16x128xf32>
    %286 = arith.addf %269, %285 : vector<16x128xf32>
    %287 = arith.truncf %243 : vector<16x128xf32> to vector<16x128xbf16>
    %cst_127 = arith.constant dense<0.000000e+00> : vector<16x128xf32>
    %288 = tpu.matmul %287, %4, %cst_127 {dimension_numbers = #tpu.dot_dimension_numbers<[1], [0], [0], [1], [0, 0, 1, 1], [], []>} : vector<16x128xbf16>, vector<128x128xbf16>, vector<16x128xf32> -> vector<16x128xf32>
    %289 = arith.addf %286, %288 : vector<16x128xf32>
    %cst_128 = arith.constant 1.800000e+00 : f32
    %290 = vector.broadcast %cst_128 : f32 to vector<16x128xf32>
    %291 = arith.mulf %290, %279 : vector<16x128xf32>
    %292 = arith.addf %272, %291 : vector<16x128xf32>
    %293 = arith.truncf %279 : vector<16x128xf32> to vector<16x128xbf16>
    %c7_129 = arith.constant 7 : index
    %c0_130 = arith.constant 0 : index
    %c0_131 = arith.constant 0 : index
    %294 = vector.load %arg8[%c7_129, %c0_130, %c0_131] : memref<16x16x128xbf16, #tpu.memory_space<vmem>>, vector<1x16x128xbf16>
    %295 = vector.shape_cast %294 : vector<1x16x128xbf16> to vector<16x128xbf16>
    %296 = vector.shape_cast %293 : vector<16x128xbf16> to vector<1x16x128xbf16>
    tpu.vector_store %arg8[%c7_129, %c0_130, %c0_131], %296 {strides = array<i32>} : memref<16x16x128xbf16, #tpu.memory_space<vmem>>, vector<1x16x128xbf16>,
    %cst_132 = arith.constant 0.000000e+00 : f32
    %297 = vector.broadcast %cst_132 : f32 to vector<16x128xf32>
    %298 = arith.subf %297, %281 : vector<16x128xf32>
    %299 = arith.addf %298, %289 : vector<16x128xf32>
    %cst_133 = arith.constant 1.000000e-01 : f32
    %300 = vector.broadcast %cst_133 : f32 to vector<16x128xf32>
    %301 = arith.mulf %300, %299 : vector<16x128xf32>
    %302 = arith.addf %281, %301 : vector<16x128xf32>
    %cst_134 = arith.constant 2.000000e-01 : f32
    %303 = vector.broadcast %cst_134 : f32 to vector<16x128xf32>
    %304 = arith.mulf %303, %289 : vector<16x128xf32>
    %305 = arith.subf %289, %304 : vector<16x128xf32>
    %cst_135 = arith.constant 1.42857141E-6 : f32
    %306 = vector.broadcast %cst_135 : f32 to vector<16x128xf32>
    %307 = arith.mulf %306, %292 : vector<16x128xf32>
    %308 = arith.subf %292, %307 : vector<16x128xf32>
    %cst_136 = arith.constant 1.000000e+00 : f32
    %309 = vector.broadcast %cst_136 : f32 to vector<16x128xf32>
    %310 = arith.subf %302, %309 : vector<16x128xf32>
    %311 = arith.addf %310, %308 : vector<16x128xf32>
    %cst_137 = arith.constant 0.000000e+00 : f32
    %312 = vector.broadcast %cst_137 : f32 to vector<16x128xf32>
    %313 = arith.cmpf ogt, %311, %312 : vector<16x128xf32>
    %314 = arith.extui %313 : vector<16x128xi1> to vector<16x128xi32>
    %315 = arith.sitofp %314 : vector<16x128xi32> to vector<16x128xf32>
    %cst_138 = arith.constant 0.000000e+00 : f32
    %316 = vector.broadcast %cst_138 : f32 to vector<16x128xf32>
    %317 = arith.select %313, %316, %302 : vector<16x128xi1>, vector<16x128xf32>
    %c8 = arith.constant 8 : index
    %c0_139 = arith.constant 0 : index
    %c0_140 = arith.constant 0 : index
    %318 = vector.load %arg1[%c8, %c0_139, %c0_140] : memref<16x16x64xf32, #tpu.memory_space<vmem>>, vector<1x16x64xf32>
    %319 = vector.shape_cast %318 : vector<1x16x64xf32> to vector<16x64xf32>
    %320 = arith.truncf %319 : vector<16x64xf32> to vector<16x64xbf16>
    %cst_141 = arith.constant dense<0.000000e+00> : vector<16x128xf32>
    %321 = tpu.matmul %320, %3, %cst_141 {dimension_numbers = #tpu.dot_dimension_numbers<[1], [0], [0], [1], [0, 0, 1, 1], [], []>} : vector<16x64xbf16>, vector<64x128xbf16>, vector<16x128xf32> -> vector<16x128xf32>
    %322 = arith.addf %305, %321 : vector<16x128xf32>
    %323 = arith.truncf %279 : vector<16x128xf32> to vector<16x128xbf16>
    %cst_142 = arith.constant dense<0.000000e+00> : vector<16x128xf32>
    %324 = tpu.matmul %323, %4, %cst_142 {dimension_numbers = #tpu.dot_dimension_numbers<[1], [0], [0], [1], [0, 0, 1, 1], [], []>} : vector<16x128xbf16>, vector<128x128xbf16>, vector<16x128xf32> -> vector<16x128xf32>
    %325 = arith.addf %322, %324 : vector<16x128xf32>
    %cst_143 = arith.constant 1.800000e+00 : f32
    %326 = vector.broadcast %cst_143 : f32 to vector<16x128xf32>
    %327 = arith.mulf %326, %315 : vector<16x128xf32>
    %328 = arith.addf %308, %327 : vector<16x128xf32>
    %329 = arith.truncf %315 : vector<16x128xf32> to vector<16x128xbf16>
    %c8_144 = arith.constant 8 : index
    %c0_145 = arith.constant 0 : index
    %c0_146 = arith.constant 0 : index
    %330 = vector.load %arg8[%c8_144, %c0_145, %c0_146] : memref<16x16x128xbf16, #tpu.memory_space<vmem>>, vector<1x16x128xbf16>
    %331 = vector.shape_cast %330 : vector<1x16x128xbf16> to vector<16x128xbf16>
    %332 = vector.shape_cast %329 : vector<16x128xbf16> to vector<1x16x128xbf16>
    tpu.vector_store %arg8[%c8_144, %c0_145, %c0_146], %332 {strides = array<i32>} : memref<16x16x128xbf16, #tpu.memory_space<vmem>>, vector<1x16x128xbf16>,
    %cst_147 = arith.constant 0.000000e+00 : f32
    %333 = vector.broadcast %cst_147 : f32 to vector<16x128xf32>
    %334 = arith.subf %333, %317 : vector<16x128xf32>
    %335 = arith.addf %334, %325 : vector<16x128xf32>
    %cst_148 = arith.constant 1.000000e-01 : f32
    %336 = vector.broadcast %cst_148 : f32 to vector<16x128xf32>
    %337 = arith.mulf %336, %335 : vector<16x128xf32>
    %338 = arith.addf %317, %337 : vector<16x128xf32>
    %cst_149 = arith.constant 2.000000e-01 : f32
    %339 = vector.broadcast %cst_149 : f32 to vector<16x128xf32>
    %340 = arith.mulf %339, %325 : vector<16x128xf32>
    %341 = arith.subf %325, %340 : vector<16x128xf32>
    %cst_150 = arith.constant 1.42857141E-6 : f32
    %342 = vector.broadcast %cst_150 : f32 to vector<16x128xf32>
    %343 = arith.mulf %342, %328 : vector<16x128xf32>
    %344 = arith.subf %328, %343 : vector<16x128xf32>
    %cst_151 = arith.constant 1.000000e+00 : f32
    %345 = vector.broadcast %cst_151 : f32 to vector<16x128xf32>
    %346 = arith.subf %338, %345 : vector<16x128xf32>
    %347 = arith.addf %346, %344 : vector<16x128xf32>
    %cst_152 = arith.constant 0.000000e+00 : f32
    %348 = vector.broadcast %cst_152 : f32 to vector<16x128xf32>
    %349 = arith.cmpf ogt, %347, %348 : vector<16x128xf32>
    %350 = arith.extui %349 : vector<16x128xi1> to vector<16x128xi32>
    %351 = arith.sitofp %350 : vector<16x128xi32> to vector<16x128xf32>
    %cst_153 = arith.constant 0.000000e+00 : f32
    %352 = vector.broadcast %cst_153 : f32 to vector<16x128xf32>
    %353 = arith.select %349, %352, %338 : vector<16x128xi1>, vector<16x128xf32>
    %c9 = arith.constant 9 : index
    %c0_154 = arith.constant 0 : index
    %c0_155 = arith.constant 0 : index
    %354 = vector.load %arg1[%c9, %c0_154, %c0_155] : memref<16x16x64xf32, #tpu.memory_space<vmem>>, vector<1x16x64xf32>
    %355 = vector.shape_cast %354 : vector<1x16x64xf32> to vector<16x64xf32>
    %356 = arith.truncf %355 : vector<16x64xf32> to vector<16x64xbf16>
    %cst_156 = arith.constant dense<0.000000e+00> : vector<16x128xf32>
    %357 = tpu.matmul %356, %3, %cst_156 {dimension_numbers = #tpu.dot_dimension_numbers<[1], [0], [0], [1], [0, 0, 1, 1], [], []>} : vector<16x64xbf16>, vector<64x128xbf16>, vector<16x128xf32> -> vector<16x128xf32>
    %358 = arith.addf %341, %357 : vector<16x128xf32>
    %359 = arith.truncf %315 : vector<16x128xf32> to vector<16x128xbf16>
    %cst_157 = arith.constant dense<0.000000e+00> : vector<16x128xf32>
    %360 = tpu.matmul %359, %4, %cst_157 {dimension_numbers = #tpu.dot_dimension_numbers<[1], [0], [0], [1], [0, 0, 1, 1], [], []>} : vector<16x128xbf16>, vector<128x128xbf16>, vector<16x128xf32> -> vector<16x128xf32>
    %361 = arith.addf %358, %360 : vector<16x128xf32>
    %cst_158 = arith.constant 1.800000e+00 : f32
    %362 = vector.broadcast %cst_158 : f32 to vector<16x128xf32>
    %363 = arith.mulf %362, %351 : vector<16x128xf32>
    %364 = arith.addf %344, %363 : vector<16x128xf32>
    %365 = arith.truncf %351 : vector<16x128xf32> to vector<16x128xbf16>
    %c9_159 = arith.constant 9 : index
    %c0_160 = arith.constant 0 : index
    %c0_161 = arith.constant 0 : index
    %366 = vector.load %arg8[%c9_159, %c0_160, %c0_161] : memref<16x16x128xbf16, #tpu.memory_space<vmem>>, vector<1x16x128xbf16>
    %367 = vector.shape_cast %366 : vector<1x16x128xbf16> to vector<16x128xbf16>
    %368 = vector.shape_cast %365 : vector<16x128xbf16> to vector<1x16x128xbf16>
    tpu.vector_store %arg8[%c9_159, %c0_160, %c0_161], %368 {strides = array<i32>} : memref<16x16x128xbf16, #tpu.memory_space<vmem>>, vector<1x16x128xbf16>,
    %cst_162 = arith.constant 0.000000e+00 : f32
    %369 = vector.broadcast %cst_162 : f32 to vector<16x128xf32>
    %370 = arith.subf %369, %353 : vector<16x128xf32>
    %371 = arith.addf %370, %361 : vector<16x128xf32>
    %cst_163 = arith.constant 1.000000e-01 : f32
    %372 = vector.broadcast %cst_163 : f32 to vector<16x128xf32>
    %373 = arith.mulf %372, %371 : vector<16x128xf32>
    %374 = arith.addf %353, %373 : vector<16x128xf32>
    %cst_164 = arith.constant 2.000000e-01 : f32
    %375 = vector.broadcast %cst_164 : f32 to vector<16x128xf32>
    %376 = arith.mulf %375, %361 : vector<16x128xf32>
    %377 = arith.subf %361, %376 : vector<16x128xf32>
    %cst_165 = arith.constant 1.42857141E-6 : f32
    %378 = vector.broadcast %cst_165 : f32 to vector<16x128xf32>
    %379 = arith.mulf %378, %364 : vector<16x128xf32>
    %380 = arith.subf %364, %379 : vector<16x128xf32>
    %cst_166 = arith.constant 1.000000e+00 : f32
    %381 = vector.broadcast %cst_166 : f32 to vector<16x128xf32>
    %382 = arith.subf %374, %381 : vector<16x128xf32>
    %383 = arith.addf %382, %380 : vector<16x128xf32>
    %cst_167 = arith.constant 0.000000e+00 : f32
    %384 = vector.broadcast %cst_167 : f32 to vector<16x128xf32>
    %385 = arith.cmpf ogt, %383, %384 : vector<16x128xf32>
    %386 = arith.extui %385 : vector<16x128xi1> to vector<16x128xi32>
    %387 = arith.sitofp %386 : vector<16x128xi32> to vector<16x128xf32>
    %cst_168 = arith.constant 0.000000e+00 : f32
    %388 = vector.broadcast %cst_168 : f32 to vector<16x128xf32>
    %389 = arith.select %385, %388, %374 : vector<16x128xi1>, vector<16x128xf32>
    %c10 = arith.constant 10 : index
    %c0_169 = arith.constant 0 : index
    %c0_170 = arith.constant 0 : index
    %390 = vector.load %arg1[%c10, %c0_169, %c0_170] : memref<16x16x64xf32, #tpu.memory_space<vmem>>, vector<1x16x64xf32>
    %391 = vector.shape_cast %390 : vector<1x16x64xf32> to vector<16x64xf32>
    %392 = arith.truncf %391 : vector<16x64xf32> to vector<16x64xbf16>
    %cst_171 = arith.constant dense<0.000000e+00> : vector<16x128xf32>
    %393 = tpu.matmul %392, %3, %cst_171 {dimension_numbers = #tpu.dot_dimension_numbers<[1], [0], [0], [1], [0, 0, 1, 1], [], []>} : vector<16x64xbf16>, vector<64x128xbf16>, vector<16x128xf32> -> vector<16x128xf32>
    %394 = arith.addf %377, %393 : vector<16x128xf32>
    %395 = arith.truncf %351 : vector<16x128xf32> to vector<16x128xbf16>
    %cst_172 = arith.constant dense<0.000000e+00> : vector<16x128xf32>
    %396 = tpu.matmul %395, %4, %cst_172 {dimension_numbers = #tpu.dot_dimension_numbers<[1], [0], [0], [1], [0, 0, 1, 1], [], []>} : vector<16x128xbf16>, vector<128x128xbf16>, vector<16x128xf32> -> vector<16x128xf32>
    %397 = arith.addf %394, %396 : vector<16x128xf32>
    %cst_173 = arith.constant 1.800000e+00 : f32
    %398 = vector.broadcast %cst_173 : f32 to vector<16x128xf32>
    %399 = arith.mulf %398, %387 : vector<16x128xf32>
    %400 = arith.addf %380, %399 : vector<16x128xf32>
    %401 = arith.truncf %387 : vector<16x128xf32> to vector<16x128xbf16>
    %c10_174 = arith.constant 10 : index
    %c0_175 = arith.constant 0 : index
    %c0_176 = arith.constant 0 : index
    %402 = vector.load %arg8[%c10_174, %c0_175, %c0_176] : memref<16x16x128xbf16, #tpu.memory_space<vmem>>, vector<1x16x128xbf16>
    %403 = vector.shape_cast %402 : vector<1x16x128xbf16> to vector<16x128xbf16>
    %404 = vector.shape_cast %401 : vector<16x128xbf16> to vector<1x16x128xbf16>
    tpu.vector_store %arg8[%c10_174, %c0_175, %c0_176], %404 {strides = array<i32>} : memref<16x16x128xbf16, #tpu.memory_space<vmem>>, vector<1x16x128xbf16>,
    %cst_177 = arith.constant 0.000000e+00 : f32
    %405 = vector.broadcast %cst_177 : f32 to vector<16x128xf32>
    %406 = arith.subf %405, %389 : vector<16x128xf32>
    %407 = arith.addf %406, %397 : vector<16x128xf32>
    %cst_178 = arith.constant 1.000000e-01 : f32
    %408 = vector.broadcast %cst_178 : f32 to vector<16x128xf32>
    %409 = arith.mulf %408, %407 : vector<16x128xf32>
    %410 = arith.addf %389, %409 : vector<16x128xf32>
    %cst_179 = arith.constant 2.000000e-01 : f32
    %411 = vector.broadcast %cst_179 : f32 to vector<16x128xf32>
    %412 = arith.mulf %411, %397 : vector<16x128xf32>
    %413 = arith.subf %397, %412 : vector<16x128xf32>
    %cst_180 = arith.constant 1.42857141E-6 : f32
    %414 = vector.broadcast %cst_180 : f32 to vector<16x128xf32>
    %415 = arith.mulf %414, %400 : vector<16x128xf32>
    %416 = arith.subf %400, %415 : vector<16x128xf32>
    %cst_181 = arith.constant 1.000000e+00 : f32
    %417 = vector.broadcast %cst_181 : f32 to vector<16x128xf32>
    %418 = arith.subf %410, %417 : vector<16x128xf32>
    %419 = arith.addf %418, %416 : vector<16x128xf32>
    %cst_182 = arith.constant 0.000000e+00 : f32
    %420 = vector.broadcast %cst_182 : f32 to vector<16x128xf32>
    %421 = arith.cmpf ogt, %419, %420 : vector<16x128xf32>
    %422 = arith.extui %421 : vector<16x128xi1> to vector<16x128xi32>
    %423 = arith.sitofp %422 : vector<16x128xi32> to vector<16x128xf32>
    %cst_183 = arith.constant 0.000000e+00 : f32
    %424 = vector.broadcast %cst_183 : f32 to vector<16x128xf32>
    %425 = arith.select %421, %424, %410 : vector<16x128xi1>, vector<16x128xf32>
    %c11 = arith.constant 11 : index
    %c0_184 = arith.constant 0 : index
    %c0_185 = arith.constant 0 : index
    %426 = vector.load %arg1[%c11, %c0_184, %c0_185] : memref<16x16x64xf32, #tpu.memory_space<vmem>>, vector<1x16x64xf32>
    %427 = vector.shape_cast %426 : vector<1x16x64xf32> to vector<16x64xf32>
    %428 = arith.truncf %427 : vector<16x64xf32> to vector<16x64xbf16>
    %cst_186 = arith.constant dense<0.000000e+00> : vector<16x128xf32>
    %429 = tpu.matmul %428, %3, %cst_186 {dimension_numbers = #tpu.dot_dimension_numbers<[1], [0], [0], [1], [0, 0, 1, 1], [], []>} : vector<16x64xbf16>, vector<64x128xbf16>, vector<16x128xf32> -> vector<16x128xf32>
    %430 = arith.addf %413, %429 : vector<16x128xf32>
    %431 = arith.truncf %387 : vector<16x128xf32> to vector<16x128xbf16>
    %cst_187 = arith.constant dense<0.000000e+00> : vector<16x128xf32>
    %432 = tpu.matmul %431, %4, %cst_187 {dimension_numbers = #tpu.dot_dimension_numbers<[1], [0], [0], [1], [0, 0, 1, 1], [], []>} : vector<16x128xbf16>, vector<128x128xbf16>, vector<16x128xf32> -> vector<16x128xf32>
    %433 = arith.addf %430, %432 : vector<16x128xf32>
    %cst_188 = arith.constant 1.800000e+00 : f32
    %434 = vector.broadcast %cst_188 : f32 to vector<16x128xf32>
    %435 = arith.mulf %434, %423 : vector<16x128xf32>
    %436 = arith.addf %416, %435 : vector<16x128xf32>
    %437 = arith.truncf %423 : vector<16x128xf32> to vector<16x128xbf16>
    %c11_189 = arith.constant 11 : index
    %c0_190 = arith.constant 0 : index
    %c0_191 = arith.constant 0 : index
    %438 = vector.load %arg8[%c11_189, %c0_190, %c0_191] : memref<16x16x128xbf16, #tpu.memory_space<vmem>>, vector<1x16x128xbf16>
    %439 = vector.shape_cast %438 : vector<1x16x128xbf16> to vector<16x128xbf16>
    %440 = vector.shape_cast %437 : vector<16x128xbf16> to vector<1x16x128xbf16>
    tpu.vector_store %arg8[%c11_189, %c0_190, %c0_191], %440 {strides = array<i32>} : memref<16x16x128xbf16, #tpu.memory_space<vmem>>, vector<1x16x128xbf16>,
    %cst_192 = arith.constant 0.000000e+00 : f32
    %441 = vector.broadcast %cst_192 : f32 to vector<16x128xf32>
    %442 = arith.subf %441, %425 : vector<16x128xf32>
    %443 = arith.addf %442, %433 : vector<16x128xf32>
    %cst_193 = arith.constant 1.000000e-01 : f32
    %444 = vector.broadcast %cst_193 : f32 to vector<16x128xf32>
    %445 = arith.mulf %444, %443 : vector<16x128xf32>
    %446 = arith.addf %425, %445 : vector<16x128xf32>
    %cst_194 = arith.constant 2.000000e-01 : f32
    %447 = vector.broadcast %cst_194 : f32 to vector<16x128xf32>
    %448 = arith.mulf %447, %433 : vector<16x128xf32>
    %449 = arith.subf %433, %448 : vector<16x128xf32>
    %cst_195 = arith.constant 1.42857141E-6 : f32
    %450 = vector.broadcast %cst_195 : f32 to vector<16x128xf32>
    %451 = arith.mulf %450, %436 : vector<16x128xf32>
    %452 = arith.subf %436, %451 : vector<16x128xf32>
    %cst_196 = arith.constant 1.000000e+00 : f32
    %453 = vector.broadcast %cst_196 : f32 to vector<16x128xf32>
    %454 = arith.subf %446, %453 : vector<16x128xf32>
    %455 = arith.addf %454, %452 : vector<16x128xf32>
    %cst_197 = arith.constant 0.000000e+00 : f32
    %456 = vector.broadcast %cst_197 : f32 to vector<16x128xf32>
    %457 = arith.cmpf ogt, %455, %456 : vector<16x128xf32>
    %458 = arith.extui %457 : vector<16x128xi1> to vector<16x128xi32>
    %459 = arith.sitofp %458 : vector<16x128xi32> to vector<16x128xf32>
    %cst_198 = arith.constant 0.000000e+00 : f32
    %460 = vector.broadcast %cst_198 : f32 to vector<16x128xf32>
    %461 = arith.select %457, %460, %446 : vector<16x128xi1>, vector<16x128xf32>
    %c12 = arith.constant 12 : index
    %c0_199 = arith.constant 0 : index
    %c0_200 = arith.constant 0 : index
    %462 = vector.load %arg1[%c12, %c0_199, %c0_200] : memref<16x16x64xf32, #tpu.memory_space<vmem>>, vector<1x16x64xf32>
    %463 = vector.shape_cast %462 : vector<1x16x64xf32> to vector<16x64xf32>
    %464 = arith.truncf %463 : vector<16x64xf32> to vector<16x64xbf16>
    %cst_201 = arith.constant dense<0.000000e+00> : vector<16x128xf32>
    %465 = tpu.matmul %464, %3, %cst_201 {dimension_numbers = #tpu.dot_dimension_numbers<[1], [0], [0], [1], [0, 0, 1, 1], [], []>} : vector<16x64xbf16>, vector<64x128xbf16>, vector<16x128xf32> -> vector<16x128xf32>
    %466 = arith.addf %449, %465 : vector<16x128xf32>
    %467 = arith.truncf %423 : vector<16x128xf32> to vector<16x128xbf16>
    %cst_202 = arith.constant dense<0.000000e+00> : vector<16x128xf32>
    %468 = tpu.matmul %467, %4, %cst_202 {dimension_numbers = #tpu.dot_dimension_numbers<[1], [0], [0], [1], [0, 0, 1, 1], [], []>} : vector<16x128xbf16>, vector<128x128xbf16>, vector<16x128xf32> -> vector<16x128xf32>
    %469 = arith.addf %466, %468 : vector<16x128xf32>
    %cst_203 = arith.constant 1.800000e+00 : f32
    %470 = vector.broadcast %cst_203 : f32 to vector<16x128xf32>
    %471 = arith.mulf %470, %459 : vector<16x128xf32>
    %472 = arith.addf %452, %471 : vector<16x128xf32>
    %473 = arith.truncf %459 : vector<16x128xf32> to vector<16x128xbf16>
    %c12_204 = arith.constant 12 : index
    %c0_205 = arith.constant 0 : index
    %c0_206 = arith.constant 0 : index
    %474 = vector.load %arg8[%c12_204, %c0_205, %c0_206] : memref<16x16x128xbf16, #tpu.memory_space<vmem>>, vector<1x16x128xbf16>
    %475 = vector.shape_cast %474 : vector<1x16x128xbf16> to vector<16x128xbf16>
    %476 = vector.shape_cast %473 : vector<16x128xbf16> to vector<1x16x128xbf16>
    tpu.vector_store %arg8[%c12_204, %c0_205, %c0_206], %476 {strides = array<i32>} : memref<16x16x128xbf16, #tpu.memory_space<vmem>>, vector<1x16x128xbf16>,
    %cst_207 = arith.constant 0.000000e+00 : f32
    %477 = vector.broadcast %cst_207 : f32 to vector<16x128xf32>
    %478 = arith.subf %477, %461 : vector<16x128xf32>
    %479 = arith.addf %478, %469 : vector<16x128xf32>
    %cst_208 = arith.constant 1.000000e-01 : f32
    %480 = vector.broadcast %cst_208 : f32 to vector<16x128xf32>
    %481 = arith.mulf %480, %479 : vector<16x128xf32>
    %482 = arith.addf %461, %481 : vector<16x128xf32>
    %cst_209 = arith.constant 2.000000e-01 : f32
    %483 = vector.broadcast %cst_209 : f32 to vector<16x128xf32>
    %484 = arith.mulf %483, %469 : vector<16x128xf32>
    %485 = arith.subf %469, %484 : vector<16x128xf32>
    %cst_210 = arith.constant 1.42857141E-6 : f32
    %486 = vector.broadcast %cst_210 : f32 to vector<16x128xf32>
    %487 = arith.mulf %486, %472 : vector<16x128xf32>
    %488 = arith.subf %472, %487 : vector<16x128xf32>
    %cst_211 = arith.constant 1.000000e+00 : f32
    %489 = vector.broadcast %cst_211 : f32 to vector<16x128xf32>
    %490 = arith.subf %482, %489 : vector<16x128xf32>
    %491 = arith.addf %490, %488 : vector<16x128xf32>
    %cst_212 = arith.constant 0.000000e+00 : f32
    %492 = vector.broadcast %cst_212 : f32 to vector<16x128xf32>
    %493 = arith.cmpf ogt, %491, %492 : vector<16x128xf32>
    %494 = arith.extui %493 : vector<16x128xi1> to vector<16x128xi32>
    %495 = arith.sitofp %494 : vector<16x128xi32> to vector<16x128xf32>
    %cst_213 = arith.constant 0.000000e+00 : f32
    %496 = vector.broadcast %cst_213 : f32 to vector<16x128xf32>
    %497 = arith.select %493, %496, %482 : vector<16x128xi1>, vector<16x128xf32>
    %c13 = arith.constant 13 : index
    %c0_214 = arith.constant 0 : index
    %c0_215 = arith.constant 0 : index
    %498 = vector.load %arg1[%c13, %c0_214, %c0_215] : memref<16x16x64xf32, #tpu.memory_space<vmem>>, vector<1x16x64xf32>
    %499 = vector.shape_cast %498 : vector<1x16x64xf32> to vector<16x64xf32>
    %500 = arith.truncf %499 : vector<16x64xf32> to vector<16x64xbf16>
    %cst_216 = arith.constant dense<0.000000e+00> : vector<16x128xf32>
    %501 = tpu.matmul %500, %3, %cst_216 {dimension_numbers = #tpu.dot_dimension_numbers<[1], [0], [0], [1], [0, 0, 1, 1], [], []>} : vector<16x64xbf16>, vector<64x128xbf16>, vector<16x128xf32> -> vector<16x128xf32>
    %502 = arith.addf %485, %501 : vector<16x128xf32>
    %503 = arith.truncf %459 : vector<16x128xf32> to vector<16x128xbf16>
    %cst_217 = arith.constant dense<0.000000e+00> : vector<16x128xf32>
    %504 = tpu.matmul %503, %4, %cst_217 {dimension_numbers = #tpu.dot_dimension_numbers<[1], [0], [0], [1], [0, 0, 1, 1], [], []>} : vector<16x128xbf16>, vector<128x128xbf16>, vector<16x128xf32> -> vector<16x128xf32>
    %505 = arith.addf %502, %504 : vector<16x128xf32>
    %cst_218 = arith.constant 1.800000e+00 : f32
    %506 = vector.broadcast %cst_218 : f32 to vector<16x128xf32>
    %507 = arith.mulf %506, %495 : vector<16x128xf32>
    %508 = arith.addf %488, %507 : vector<16x128xf32>
    %509 = arith.truncf %495 : vector<16x128xf32> to vector<16x128xbf16>
    %c13_219 = arith.constant 13 : index
    %c0_220 = arith.constant 0 : index
    %c0_221 = arith.constant 0 : index
    %510 = vector.load %arg8[%c13_219, %c0_220, %c0_221] : memref<16x16x128xbf16, #tpu.memory_space<vmem>>, vector<1x16x128xbf16>
    %511 = vector.shape_cast %510 : vector<1x16x128xbf16> to vector<16x128xbf16>
    %512 = vector.shape_cast %509 : vector<16x128xbf16> to vector<1x16x128xbf16>
    tpu.vector_store %arg8[%c13_219, %c0_220, %c0_221], %512 {strides = array<i32>} : memref<16x16x128xbf16, #tpu.memory_space<vmem>>, vector<1x16x128xbf16>,
    %cst_222 = arith.constant 0.000000e+00 : f32
    %513 = vector.broadcast %cst_222 : f32 to vector<16x128xf32>
    %514 = arith.subf %513, %497 : vector<16x128xf32>
    %515 = arith.addf %514, %505 : vector<16x128xf32>
    %cst_223 = arith.constant 1.000000e-01 : f32
    %516 = vector.broadcast %cst_223 : f32 to vector<16x128xf32>
    %517 = arith.mulf %516, %515 : vector<16x128xf32>
    %518 = arith.addf %497, %517 : vector<16x128xf32>
    %cst_224 = arith.constant 2.000000e-01 : f32
    %519 = vector.broadcast %cst_224 : f32 to vector<16x128xf32>
    %520 = arith.mulf %519, %505 : vector<16x128xf32>
    %521 = arith.subf %505, %520 : vector<16x128xf32>
    %cst_225 = arith.constant 1.42857141E-6 : f32
    %522 = vector.broadcast %cst_225 : f32 to vector<16x128xf32>
    %523 = arith.mulf %522, %508 : vector<16x128xf32>
    %524 = arith.subf %508, %523 : vector<16x128xf32>
    %cst_226 = arith.constant 1.000000e+00 : f32
    %525 = vector.broadcast %cst_226 : f32 to vector<16x128xf32>
    %526 = arith.subf %518, %525 : vector<16x128xf32>
    %527 = arith.addf %526, %524 : vector<16x128xf32>
    %cst_227 = arith.constant 0.000000e+00 : f32
    %528 = vector.broadcast %cst_227 : f32 to vector<16x128xf32>
    %529 = arith.cmpf ogt, %527, %528 : vector<16x128xf32>
    %530 = arith.extui %529 : vector<16x128xi1> to vector<16x128xi32>
    %531 = arith.sitofp %530 : vector<16x128xi32> to vector<16x128xf32>
    %cst_228 = arith.constant 0.000000e+00 : f32
    %532 = vector.broadcast %cst_228 : f32 to vector<16x128xf32>
    %533 = arith.select %529, %532, %518 : vector<16x128xi1>, vector<16x128xf32>
    %c14 = arith.constant 14 : index
    %c0_229 = arith.constant 0 : index
    %c0_230 = arith.constant 0 : index
    %534 = vector.load %arg1[%c14, %c0_229, %c0_230] : memref<16x16x64xf32, #tpu.memory_space<vmem>>, vector<1x16x64xf32>
    %535 = vector.shape_cast %534 : vector<1x16x64xf32> to vector<16x64xf32>
    %536 = arith.truncf %535 : vector<16x64xf32> to vector<16x64xbf16>
    %cst_231 = arith.constant dense<0.000000e+00> : vector<16x128xf32>
    %537 = tpu.matmul %536, %3, %cst_231 {dimension_numbers = #tpu.dot_dimension_numbers<[1], [0], [0], [1], [0, 0, 1, 1], [], []>} : vector<16x64xbf16>, vector<64x128xbf16>, vector<16x128xf32> -> vector<16x128xf32>
    %538 = arith.addf %521, %537 : vector<16x128xf32>
    %539 = arith.truncf %495 : vector<16x128xf32> to vector<16x128xbf16>
    %cst_232 = arith.constant dense<0.000000e+00> : vector<16x128xf32>
    %540 = tpu.matmul %539, %4, %cst_232 {dimension_numbers = #tpu.dot_dimension_numbers<[1], [0], [0], [1], [0, 0, 1, 1], [], []>} : vector<16x128xbf16>, vector<128x128xbf16>, vector<16x128xf32> -> vector<16x128xf32>
    %541 = arith.addf %538, %540 : vector<16x128xf32>
    %cst_233 = arith.constant 1.800000e+00 : f32
    %542 = vector.broadcast %cst_233 : f32 to vector<16x128xf32>
    %543 = arith.mulf %542, %531 : vector<16x128xf32>
    %544 = arith.addf %524, %543 : vector<16x128xf32>
    %545 = arith.truncf %531 : vector<16x128xf32> to vector<16x128xbf16>
    %c14_234 = arith.constant 14 : index
    %c0_235 = arith.constant 0 : index
    %c0_236 = arith.constant 0 : index
    %546 = vector.load %arg8[%c14_234, %c0_235, %c0_236] : memref<16x16x128xbf16, #tpu.memory_space<vmem>>, vector<1x16x128xbf16>
    %547 = vector.shape_cast %546 : vector<1x16x128xbf16> to vector<16x128xbf16>
    %548 = vector.shape_cast %545 : vector<16x128xbf16> to vector<1x16x128xbf16>
    tpu.vector_store %arg8[%c14_234, %c0_235, %c0_236], %548 {strides = array<i32>} : memref<16x16x128xbf16, #tpu.memory_space<vmem>>, vector<1x16x128xbf16>,
    %cst_237 = arith.constant 0.000000e+00 : f32
    %549 = vector.broadcast %cst_237 : f32 to vector<16x128xf32>
    %550 = arith.subf %549, %533 : vector<16x128xf32>
    %551 = arith.addf %550, %541 : vector<16x128xf32>
    %cst_238 = arith.constant 1.000000e-01 : f32
    %552 = vector.broadcast %cst_238 : f32 to vector<16x128xf32>
    %553 = arith.mulf %552, %551 : vector<16x128xf32>
    %554 = arith.addf %533, %553 : vector<16x128xf32>
    %cst_239 = arith.constant 2.000000e-01 : f32
    %555 = vector.broadcast %cst_239 : f32 to vector<16x128xf32>
    %556 = arith.mulf %555, %541 : vector<16x128xf32>
    %557 = arith.subf %541, %556 : vector<16x128xf32>
    %cst_240 = arith.constant 1.42857141E-6 : f32
    %558 = vector.broadcast %cst_240 : f32 to vector<16x128xf32>
    %559 = arith.mulf %558, %544 : vector<16x128xf32>
    %560 = arith.subf %544, %559 : vector<16x128xf32>
    %cst_241 = arith.constant 1.000000e+00 : f32
    %561 = vector.broadcast %cst_241 : f32 to vector<16x128xf32>
    %562 = arith.subf %554, %561 : vector<16x128xf32>
    %563 = arith.addf %562, %560 : vector<16x128xf32>
    %cst_242 = arith.constant 0.000000e+00 : f32
    %564 = vector.broadcast %cst_242 : f32 to vector<16x128xf32>
    %565 = arith.cmpf ogt, %563, %564 : vector<16x128xf32>
    %566 = arith.extui %565 : vector<16x128xi1> to vector<16x128xi32>
    %567 = arith.sitofp %566 : vector<16x128xi32> to vector<16x128xf32>
    %cst_243 = arith.constant 0.000000e+00 : f32
    %568 = vector.broadcast %cst_243 : f32 to vector<16x128xf32>
    %569 = arith.select %565, %568, %554 : vector<16x128xi1>, vector<16x128xf32>
    %c15 = arith.constant 15 : index
    %c0_244 = arith.constant 0 : index
    %c0_245 = arith.constant 0 : index
    %570 = vector.load %arg1[%c15, %c0_244, %c0_245] : memref<16x16x64xf32, #tpu.memory_space<vmem>>, vector<1x16x64xf32>
    %571 = vector.shape_cast %570 : vector<1x16x64xf32> to vector<16x64xf32>
    %572 = arith.truncf %571 : vector<16x64xf32> to vector<16x64xbf16>
    %cst_246 = arith.constant dense<0.000000e+00> : vector<16x128xf32>
    %573 = tpu.matmul %572, %3, %cst_246 {dimension_numbers = #tpu.dot_dimension_numbers<[1], [0], [0], [1], [0, 0, 1, 1], [], []>} : vector<16x64xbf16>, vector<64x128xbf16>, vector<16x128xf32> -> vector<16x128xf32>
    %574 = arith.addf %557, %573 : vector<16x128xf32>
    %575 = arith.truncf %531 : vector<16x128xf32> to vector<16x128xbf16>
    %cst_247 = arith.constant dense<0.000000e+00> : vector<16x128xf32>
    %576 = tpu.matmul %575, %4, %cst_247 {dimension_numbers = #tpu.dot_dimension_numbers<[1], [0], [0], [1], [0, 0, 1, 1], [], []>} : vector<16x128xbf16>, vector<128x128xbf16>, vector<16x128xf32> -> vector<16x128xf32>
    %577 = arith.addf %574, %576 : vector<16x128xf32>
    %cst_248 = arith.constant 1.800000e+00 : f32
    %578 = vector.broadcast %cst_248 : f32 to vector<16x128xf32>
    %579 = arith.mulf %578, %567 : vector<16x128xf32>
    %580 = arith.addf %560, %579 : vector<16x128xf32>
    %581 = arith.truncf %567 : vector<16x128xf32> to vector<16x128xbf16>
    %c15_249 = arith.constant 15 : index
    %c0_250 = arith.constant 0 : index
    %c0_251 = arith.constant 0 : index
    %582 = vector.load %arg8[%c15_249, %c0_250, %c0_251] : memref<16x16x128xbf16, #tpu.memory_space<vmem>>, vector<1x16x128xbf16>
    %583 = vector.shape_cast %582 : vector<1x16x128xbf16> to vector<16x128xbf16>
    %584 = vector.shape_cast %581 : vector<16x128xbf16> to vector<1x16x128xbf16>
    tpu.vector_store %arg8[%c15_249, %c0_250, %c0_251], %584 {strides = array<i32>} : memref<16x16x128xbf16, #tpu.memory_space<vmem>>, vector<1x16x128xbf16>,
    %c0_252 = arith.constant 0 : index
    %c0_253 = arith.constant 0 : index
    %585 = vector.load %arg9[%c0_252, %c0_253] : memref<16x128xf32, #tpu.memory_space<vmem>>, vector<16x128xf32>
    tpu.vector_store %arg9[%c0_252, %c0_253], %567 {strides = array<i32>} : memref<16x128xf32, #tpu.memory_space<vmem>>, vector<16x128xf32>,
    %c0_254 = arith.constant 0 : index
    %c0_255 = arith.constant 0 : index
    %586 = vector.load %arg10[%c0_254, %c0_255] : memref<16x128xf32, #tpu.memory_space<vmem>>, vector<16x128xf32>
    tpu.vector_store %arg10[%c0_254, %c0_255], %569 {strides = array<i32>} : memref<16x128xf32, #tpu.memory_space<vmem>>, vector<16x128xf32>,
    %c0_256 = arith.constant 0 : index
    %c0_257 = arith.constant 0 : index
    %587 = vector.load %arg11[%c0_256, %c0_257] : memref<16x128xf32, #tpu.memory_space<vmem>>, vector<16x128xf32>
    tpu.vector_store %arg11[%c0_256, %c0_257], %577 {strides = array<i32>} : memref<16x128xf32, #tpu.memory_space<vmem>>, vector<16x128xf32>,
    %c0_258 = arith.constant 0 : index
    %c0_259 = arith.constant 0 : index
    %588 = vector.load %arg12[%c0_258, %c0_259] : memref<16x128xf32, #tpu.memory_space<vmem>>, vector<16x128xf32>
    tpu.vector_store %arg12[%c0_258, %c0_259], %580 {strides = array<i32>} : memref<16x128xf32, #tpu.memory_space<vmem>>, vector<16x128xf32>,
    return
  }
  func.func @transform_0(%arg0: i32) -> (i32, i32, i32) {
    %c0_i32 = arith.constant 0 : i32
    %c0_i32_0 = arith.constant 0 : i32
    %c0_i32_1 = arith.constant 0 : i32
    return %arg0, %c0_i32, %c0_i32_0 : i32, i32, i32
  }
  func.func @transform_1(%arg0: i32) -> (i32, i32) {
    %c0_i32 = arith.constant 0 : i32
    %c0_i32_0 = arith.constant 0 : i32
    %c0_i32_1 = arith.constant 0 : i32
    return %c0_i32, %c0_i32_0 : i32, i32
  }
  func.func @transform_2(%arg0: i32) -> (i32, i32) {
    %c0_i32 = arith.constant 0 : i32
    %c0_i32_0 = arith.constant 0 : i32
    %c0_i32_1 = arith.constant 0 : i32
    return %c0_i32, %c0_i32_0 : i32, i32
  }
  func.func @transform_3(%arg0: i32) -> (i32, i32) {
    %c0_i32 = arith.constant 0 : i32
    %c0_i32_0 = arith.constant 0 : i32
    %c0_i32_1 = arith.constant 0 : i32
    return %c0_i32, %c0_i32_0 : i32, i32
  }
  func.func @transform_4(%arg0: i32) -> (i32, i32) {
    %c0_i32 = arith.constant 0 : i32
    %c0_i32_0 = arith.constant 0 : i32
    %c0_i32_1 = arith.constant 0 : i32
    return %c0_i32, %c0_i32_0 : i32, i32
  }
  func.func @transform_5(%arg0: i32) -> (i32, i32) {
    %c0_i32 = arith.constant 0 : i32
    %c0_i32_0 = arith.constant 0 : i32
    %c0_i32_1 = arith.constant 0 : i32
    return %c0_i32, %c0_i32_0 : i32, i32
  }
  func.func @transform_6(%arg0: i32) -> (i32, i32) {
    %c0_i32 = arith.constant 0 : i32
    %c0_i32_0 = arith.constant 0 : i32
    %c0_i32_1 = arith.constant 0 : i32
    return %c0_i32, %c0_i32_0 : i32, i32
  }
  func.func @transform_7(%arg0: i32) -> (i32, i32, i32) {
    %c0_i32 = arith.constant 0 : i32
    %c0_i32_0 = arith.constant 0 : i32
    %c0_i32_1 = arith.constant 0 : i32
    return %arg0, %c0_i32, %c0_i32_0 : i32, i32, i32
  }
  func.func @transform_8(%arg0: i32) -> (i32, i32) {
    %c0_i32 = arith.constant 0 : i32
    %c0_i32_0 = arith.constant 0 : i32
    %c0_i32_1 = arith.constant 0 : i32
    return %c0_i32, %c0_i32_0 : i32, i32
  }
  func.func @transform_9(%arg0: i32) -> (i32, i32) {
    %c0_i32 = arith.constant 0 : i32
    %c0_i32_0 = arith.constant 0 : i32
    %c0_i32_1 = arith.constant 0 : i32
    return %c0_i32, %c0_i32_0 : i32, i32
  }
  func.func @transform_10(%arg0: i32) -> (i32, i32) {
    %c0_i32 = arith.constant 0 : i32
    %c0_i32_0 = arith.constant 0 : i32
    %c0_i32_1 = arith.constant 0 : i32
    return %c0_i32, %c0_i32_0 : i32, i32
  }
  func.func @transform_11(%arg0: i32) -> (i32, i32) {
    %c0_i32 = arith.constant 0 : i32
    %c0_i32_0 = arith.constant 0 : i32
    %c0_i32_1 = arith.constant 0 : i32
    return %c0_i32, %c0_i32_0 : i32, i32
  }
}

</mosaic_0001>

<llo_original>
// kernel: lsnn_sequence.1
$region0: #{lsnn_sequence.1}
  #allocation0 [shape = 'u32[]', space=smem, size = 0x4, offset = 0x4, fixed_abs, tag = 'smem constant byte address 0x4 - core index']
  #allocation1 [shape = 'u32[144,128]{1,0:T(1,128)}', space=vmem, size = 0x12000, scoped, tag = 'internal scratch']
  %s0 = inlined_call_operand.hbm [shape: f32[32,16,64], index: 0, kind: input, shape index: {}]
  %s1 = inlined_call_operand.hbm [shape: f32[16,128], index: 1, kind: input, shape index: {}]
  %s2 = inlined_call_operand.hbm [shape: f32[16,128], index: 2, kind: input, shape index: {}]
  %s3 = inlined_call_operand.hbm [shape: f32[16,128], index: 3, kind: input, shape index: {}]
  %s4 = inlined_call_operand.hbm [shape: f32[16,128], index: 4, kind: input, shape index: {}]
  %s5 = inlined_call_operand.hbm [shape: bf16[64,128], index: 5, kind: input, shape index: {}]
  %s6 = inlined_call_operand.hbm [shape: bf16[128,128], index: 6, kind: input, shape index: {}]
  %s7 = inlined_call_operand.hbm [shape: bf16[32,16,128], index: 7, kind: output, shape index: {0}]
  %s8 = inlined_call_operand.hbm [shape: f32[16,128], index: 8, kind: output, shape index: {1}]
  %s9 = inlined_call_operand.hbm [shape: f32[16,128], index: 9, kind: output, shape index: {2}]
  %s10 = inlined_call_operand.hbm [shape: f32[16,128], index: 10, kind: output, shape index: {3}]
  %s11 = inlined_call_operand.hbm [shape: f32[16,128], index: 11, kind: output, shape index: {4}]
  %12 = xla_tuple %s7, %s8, %s9, %s10, %s11
  %s13 = sld [smem:[#allocation0]]
  $region125: #{lsnn_sequence.1} parent=0
    _
  %s15 = ssub.s32 1, %s13
  %s16 = scalar_select 0, %s15, %s13
  $region1: #{lsnn_sequence.1} parent=0
    #allocation2 [shape = 'u8[262144]{0}', space=vmem, size = 0x40000, scoped, tag = 'input window, operand 0']
    #allocation3 [shape = 's32[2]{0}', space=sflag, size = 0x8, scoped, tag = 'scoped memory for lsnn_sequence.1']
    #allocation4 [shape = 's32[2]{0}', space=sflag, size = 0x8, scoped, tag = 'scoped memory for lsnn_sequence.1']
    #allocation5 [shape = 'u8[8192]{0}', space=vmem, size = 0x2000, scoped, tag = 'input window, operand 1, single buffered']
    #allocation6 [shape = 's32[1]{0}', space=sflag, size = 0x4, scoped, tag = 'scoped memory for lsnn_sequence.1']
    #allocation7 [shape = 'u8[8192]{0}', space=vmem, size = 0x2000, scoped, tag = 'input window, operand 2, single buffered']
    #allocation8 [shape = 'u8[8192]{0}', space=vmem, size = 0x2000, scoped, tag = 'input window, operand 3, single buffered']
    #allocation9 [shape = 's32[1]{0}', space=sflag, size = 0x4, scoped, tag = 'scoped memory for lsnn_sequence.1']
    #allocation10 [shape = 'u8[8192]{0}', space=vmem, size = 0x2000, scoped, tag = 'input window, operand 4, single buffered']
    #allocation11 [shape = 'u8[16384]{0}', space=vmem, size = 0x4000, scoped, tag = 'input window, operand 5, single buffered']
    #allocation12 [shape = 's32[1]{0}', space=sflag, size = 0x4, scoped, tag = 'scoped memory for lsnn_sequence.1']
    #allocation13 [shape = 'u8[32768]{0}', space=vmem, size = 0x8000, scoped, tag = 'input window, operand 6, single buffered']
    #allocation14 [shape = 'u8[131072]{0}', space=vmem, size = 0x20000, scoped, tag = 'output window, operand 0']
    #allocation15 [shape = 'u8[8192]{0}', space=vmem, size = 0x2000, scoped, tag = 'output window, operand 1, single buffered']
    #allocation16 [shape = 's32[1]{0}', space=sflag, size = 0x4, scoped, tag = 'scoped memory for lsnn_sequence.1']
    #allocation17 [shape = 'u8[8192]{0}', space=vmem, size = 0x2000, scoped, tag = 'output window, operand 2, single buffered']
    #allocation18 [shape = 'u8[8192]{0}', space=vmem, size = 0x2000, scoped, tag = 'output window, operand 3, single buffered']
    #allocation19 [shape = 's32[1]{0}', space=sflag, size = 0x4, scoped, tag = 'scoped memory for lsnn_sequence.1']
    #allocation20 [shape = 'u8[8192]{0}', space=vmem, size = 0x2000, scoped, tag = 'output window, operand 4, single buffered']
    %17 = vsyncpa [#allocation3], 0
    %s18 = scalar_lea.sflag [#allocation3], 1
    %19 = vsyncpa %s18, 0
    %20 = vsyncpa [#allocation6], 0
    %21 = vsyncpa [#allocation9], 0
    %22 = vsyncpa [#allocation12], 0
    %23 = vsyncpa [#allocation4], 0
    %s24 = scalar_lea.sflag [#allocation4], 1
    %25 = vsyncpa %s24, 0
    %26 = vsyncpa [#allocation16], 0
    %27 = vsyncpa [#allocation19], 0
    loop: start=0, step=1, limit=4
    $region2: #{lsnn_sequence.1} parent=1 // loop_pre_header
      _
    $region3: #{lsnn_sequence.1} parent=1 // loop_header
      %s29 = sphi 0, %s33
      %p30 = scmp.ge.s32.totalorder %s29, 4
      %s39 = sphi 0, %s41
      %s42 = sphi 0, %s39
      %s43 = sphi 0, %s42
      %s59 = sphi 0, %s43
      %s63 = sphi 0, %s63
      %s65 = sphi 0, %s63
      %s66 = sphi 0, %s65
      %s80 = sphi 0, %s66
      %s84 = sphi 0, %s84
      %s86 = sphi 0, %s84
      %s87 = sphi 0, %s86
      %s101 = sphi 0, %s87
      %s105 = sphi 0, %s105
      %s107 = sphi 0, %s105
      %s108 = sphi 0, %s107
      %s122 = sphi 0, %s108
      %s126 = sphi 0, %s126
      %s128 = sphi 0, %s126
      %s129 = sphi 0, %s128
      %s143 = sphi 0, %s129
      %s147 = sphi 0, %s147
      %s149 = sphi 0, %s147
      %s150 = sphi 0, %s149
      %s164 = sphi 0, %s150
      %s168 = sphi 0, %s168
      %s170 = sphi 0, %s168
      %s171 = sphi 0, %s170
      %s185 = sphi 0, %s171
      %s191 = sphi 0, %s193
      %s194 = sphi 0, %s191
      %s195 = sphi 0, %s194
      %s211 = sphi 0, %s195
      %s215 = sphi 0, %s215
      %s217 = sphi 0, %s215
      %s218 = sphi 0, %s217
      %s232 = sphi 0, %s218
      %s236 = sphi 0, %s236
      %s238 = sphi 0, %s236
      %s239 = sphi 0, %s238
      %s253 = sphi 0, %s239
      %s257 = sphi 0, %s257
      %s259 = sphi 0, %s257
      %s260 = sphi 0, %s259
      %s274 = sphi 0, %s260
      %s278 = sphi 0, %s278
      %s280 = sphi 0, %s278
      %s281 = sphi 0, %s280
      %s295 = sphi 0, %s281
    $region4: #{lsnn_sequence.1} parent=1 // loop_header_branch
      %32 = sbr.rel (%p30) target = $region8
    $region5: #{lsnn_sequence.1} parent=1 // loop_body
      %s34 = ssub.s32 %s29, 1
      %s35 = ssub.s32 %s29, 2
      %s36 = sadd.s32 %s29, 1
      %s37 = ssub.s32 %s29, %s36
      %p38 = scmp.eq.s32.totalorder %s37, 0
      %s40 = sadd.s32 %s39, 1
      %s41 = scalar_select %p38, %s39, %s40
      %p44 = pneg %p38
      %p45 = scmp.eq.s32.totalorder %s29, 1
      %p46 = por %p44, %p45
      %p47 = scmp.ne.s32.totalorder %s39, %s42
      %p48 = scmp.eq.s32.totalorder %s29, 0
      %p49 = por %p47, %p48
      %p50 = scmp.ne.s32.totalorder %s39, %s42
      %p51 = scmp.eq.s32.totalorder %s34, 1
      %p52 = por %p50, %p51
      %p53 = scmp.ne.s32.totalorder %s42, %s43
      %p54 = scmp.eq.s32.totalorder %s34, 0
      %p55 = por %p53, %p54
      %p56 = scmp.ne.s32.totalorder %s42, %s43
      %p57 = scmp.eq.s32.totalorder %s35, 1
      %p58 = por %p56, %p57
      %p60 = scmp.ne.s32.totalorder %s43, %s59
      %p61 = scmp.eq.s32.totalorder %s35, 0
      %p62 = por %p60, %p61
      %s64 = sadd.s32 %s63, 1
      %p67 = scmp.eq.s32.totalorder %s29, 1
      %p68 = scmp.ne.s32.totalorder %s63, %s65
      %p69 = scmp.eq.s32.totalorder %s29, 0
      %p70 = por %p68, %p69
      %p71 = scmp.ne.s32.totalorder %s63, %s65
      %p72 = scmp.eq.s32.totalorder %s34, 1
      %p73 = por %p71, %p72
      %p74 = scmp.ne.s32.totalorder %s65, %s66
      %p75 = scmp.eq.s32.totalorder %s34, 0
      %p76 = por %p74, %p75
      %p77 = scmp.ne.s32.totalorder %s65, %s66
      %p78 = scmp.eq.s32.totalorder %s35, 1
      %p79 = por %p77, %p78
      %p81 = scmp.ne.s32.totalorder %s66, %s80
      %p82 = scmp.eq.s32.totalorder %s35, 0
      %p83 = por %p81, %p82
      %s85 = sadd.s32 %s84, 1
      %p88 = scmp.eq.s32.totalorder %s29, 1
      %p89 = scmp.ne.s32.totalorder %s84, %s86
      %p90 = scmp.eq.s32.totalorder %s29, 0
      %p91 = por %p89, %p90
      %p92 = scmp.ne.s32.totalorder %s84, %s86
      %p93 = scmp.eq.s32.totalorder %s34, 1
      %p94 = por %p92, %p93
      %p95 = scmp.ne.s32.totalorder %s86, %s87
      %p96 = scmp.eq.s32.totalorder %s34, 0
      %p97 = por %p95, %p96
      %p98 = scmp.ne.s32.totalorder %s86, %s87
      %p99 = scmp.eq.s32.totalorder %s35, 1
      %p100 = por %p98, %p99
      %p102 = scmp.ne.s32.totalorder %s87, %s101
      %p103 = scmp.eq.s32.totalorder %s35, 0
      %p104 = por %p102, %p103
      %s106 = sadd.s32 %s105, 1
      %p109 = scmp.eq.s32.totalorder %s29, 1
      %p110 = scmp.ne.s32.totalorder %s105, %s107
      %p111 = scmp.eq.s32.totalorder %s29, 0
      %p112 = por %p110, %p111
      %p113 = scmp.ne.s32.totalorder %s105, %s107
      %p114 = scmp.eq.s32.totalorder %s34, 1
      %p115 = por %p113, %p114
      %p116 = scmp.ne.s32.totalorder %s107, %s108
      %p117 = scmp.eq.s32.totalorder %s34, 0
      %p118 = por %p116, %p117
      %p119 = scmp.ne.s32.totalorder %s107, %s108
      %p120 = scmp.eq.s32.totalorder %s35, 1
      %p121 = por %p119, %p120
      %p123 = scmp.ne.s32.totalorder %s108, %s122
      %p124 = scmp.eq.s32.totalorder %s35, 0
      %p125 = por %p123, %p124
      %s127 = sadd.s32 %s126, 1
      %p130 = scmp.eq.s32.totalorder %s29, 1
      %p131 = scmp.ne.s32.totalorder %s126, %s128
      %p132 = scmp.eq.s32.totalorder %s29, 0
      %p133 = por %p131, %p132
      %p134 = scmp.ne.s32.totalorder %s126, %s128
      %p135 = scmp.eq.s32.totalorder %s34, 1
      %p136 = por %p134, %p135
      %p137 = scmp.ne.s32.totalorder %s128, %s129
      %p138 = scmp.eq.s32.totalorder %s34, 0
      %p139 = por %p137, %p138
      %p140 = scmp.ne.s32.totalorder %s128, %s129
      %p141 = scmp.eq.s32.totalorder %s35, 1
      %p142 = por %p140, %p141
      %p144 = scmp.ne.s32.totalorder %s129, %s143
      %p145 = scmp.eq.s32.totalorder %s35, 0
      %p146 = por %p144, %p145
      %s148 = sadd.s32 %s147, 1
      %p151 = scmp.eq.s32.totalorder %s29, 1
      %p152 = scmp.ne.s32.totalorder %s147, %s149
      %p153 = scmp.eq.s32.totalorder %s29, 0
      %p154 = por %p152, %p153
      %p155 = scmp.ne.s32.totalorder %s147, %s149
      %p156 = scmp.eq.s32.totalorder %s34, 1
      %p157 = por %p155, %p156
      %p158 = scmp.ne.s32.totalorder %s149, %s150
      %p159 = scmp.eq.s32.totalorder %s34, 0
      %p160 = por %p158, %p159
      %p161 = scmp.ne.s32.totalorder %s149, %s150
      %p162 = scmp.eq.s32.totalorder %s35, 1
      %p163 = por %p161, %p162
      %p165 = scmp.ne.s32.totalorder %s150, %s164
      %p166 = scmp.eq.s32.totalorder %s35, 0
      %p167 = por %p165, %p166
      %s169 = sadd.s32 %s168, 1
      %p172 = scmp.eq.s32.totalorder %s29, 1
      %p173 = scmp.ne.s32.totalorder %s168, %s170
      %p174 = scmp.eq.s32.totalorder %s29, 0
      %p175 = por %p173, %p174
      %p176 = scmp.ne.s32.totalorder %s168, %s170
      %p177 = scmp.eq.s32.totalorder %s34, 1
      %p178 = por %p176, %p177
      %p179 = scmp.ne.s32.totalorder %s170, %s171
      %p180 = scmp.eq.s32.totalorder %s34, 0
      %p181 = por %p179, %p180
      %p182 = scmp.ne.s32.totalorder %s170, %s171
      %p183 = scmp.eq.s32.totalorder %s35, 1
      %p184 = por %p182, %p183
      %p186 = scmp.ne.s32.totalorder %s171, %s185
      %p187 = scmp.eq.s32.totalorder %s35, 0
      %p188 = por %p186, %p187
      %s189 = ssub.s32 %s29, %s36
      %p190 = scmp.eq.s32.totalorder %s189, 0
      %s192 = sadd.s32 %s191, 1
      %s193 = scalar_select %p190, %s191, %s192
      %p196 = pneg %p190
      %p197 = scmp.eq.s32.totalorder %s29, 1
      %p198 = por %p196, %p197
      %p199 = scmp.ne.s32.totalorder %s191, %s194
      %p200 = scmp.eq.s32.totalorder %s29, 0
      %p201 = por %p199, %p200
      %p202 = scmp.ne.s32.totalorder %s191, %s194
      %p203 = scmp.eq.s32.totalorder %s34, 1
      %p204 = por %p202, %p203
      %p205 = scmp.ne.s32.totalorder %s194, %s195
      %p206 = scmp.eq.s32.totalorder %s34, 0
      %p207 = por %p205, %p206
      %p208 = scmp.ne.s32.totalorder %s194, %s195
      %p209 = scmp.eq.s32.totalorder %s35, 1
      %p210 = por %p208, %p209
      %p212 = scmp.ne.s32.totalorder %s195, %s211
      %p213 = scmp.eq.s32.totalorder %s35, 0
      %p214 = por %p212, %p213
      %s216 = sadd.s32 %s215, 1
      %p219 = scmp.eq.s32.totalorder %s29, 1
      %p220 = scmp.ne.s32.totalorder %s215, %s217
      %p221 = scmp.eq.s32.totalorder %s29, 0
      %p222 = por %p220, %p221
      %p223 = scmp.ne.s32.totalorder %s215, %s217
      %p224 = scmp.eq.s32.totalorder %s34, 1
      %p225 = por %p223, %p224
      %p226 = scmp.ne.s32.totalorder %s217, %s218
      %p227 = scmp.eq.s32.totalorder %s34, 0
      %p228 = por %p226, %p227
      %p229 = scmp.ne.s32.totalorder %s217, %s218
      %p230 = scmp.eq.s32.totalorder %s35, 1
      %p231 = por %p229, %p230
      %p233 = scmp.ne.s32.totalorder %s218, %s232
      %p234 = scmp.eq.s32.totalorder %s35, 0
      %p235 = por %p233, %p234
      %s237 = sadd.s32 %s236, 1
      %p240 = scmp.eq.s32.totalorder %s29, 1
      %p241 = scmp.ne.s32.totalorder %s236, %s238
      %p242 = scmp.eq.s32.totalorder %s29, 0
      %p243 = por %p241, %p242
      %p244 = scmp.ne.s32.totalorder %s236, %s238
      %p245 = scmp.eq.s32.totalorder %s34, 1
      %p246 = por %p244, %p245
      %p247 = scmp.ne.s32.totalorder %s238, %s239
      %p248 = scmp.eq.s32.totalorder %s34, 0
      %p249 = por %p247, %p248
      %p250 = scmp.ne.s32.totalorder %s238, %s239
      %p251 = scmp.eq.s32.totalorder %s35, 1
      %p252 = por %p250, %p251
      %p254 = scmp.ne.s32.totalorder %s239, %s253
      %p255 = scmp.eq.s32.totalorder %s35, 0
      %p256 = por %p254, %p255
      %s258 = sadd.s32 %s257, 1
      %p261 = scmp.eq.s32.totalorder %s29, 1
      %p262 = scmp.ne.s32.totalorder %s257, %s259
      %p263 = scmp.eq.s32.totalorder %s29, 0
      %p264 = por %p262, %p263
      %p265 = scmp.ne.s32.totalorder %s257, %s259
      %p266 = scmp.eq.s32.totalorder %s34, 1
      %p267 = por %p265, %p266
      %p268 = scmp.ne.s32.totalorder %s259, %s260
      %p269 = scmp.eq.s32.totalorder %s34, 0
      %p270 = por %p268, %p269
      %p271 = scmp.ne.s32.totalorder %s259, %s260
      %p272 = scmp.eq.s32.totalorder %s35, 1
      %p273 = por %p271, %p272
      %p275 = scmp.ne.s32.totalorder %s260, %s274
      %p276 = scmp.eq.s32.totalorder %s35, 0
      %p277 = por %p275, %p276
      %s279 = sadd.s32 %s278, 1
      %p282 = scmp.eq.s32.totalorder %s29, 1
      %p283 = scmp.ne.s32.totalorder %s278, %s280
      %p284 = scmp.eq.s32.totalorder %s29, 0
      %p285 = por %p283, %p284
      %p286 = scmp.ne.s32.totalorder %s278, %s280
      %p287 = scmp.eq.s32.totalorder %s34, 1
      %p288 = por %p286, %p287
      %p289 = scmp.ne.s32.totalorder %s280, %s281
      %p290 = scmp.eq.s32.totalorder %s34, 0
      %p291 = por %p289, %p290
      %p292 = scmp.ne.s32.totalorder %s280, %s281
      %p293 = scmp.eq.s32.totalorder %s35, 1
      %p294 = por %p292, %p293
      %p296 = scmp.ne.s32.totalorder %s281, %s295
      %p297 = scmp.eq.s32.totalorder %s35, 0
      %p298 = por %p296, %p297
      %p299 = scmp.le.s32.totalorder 1, %s29
      %p300 = scmp.lt.s32.totalorder %s29, 3
      %p301 = pnand %p299, %p300
      %p302 = pneg %p301
      // Predicated region
      $region9: #{lsnn_sequence.1} parent=5 // pred_check
        _
      $region10: #{lsnn_sequence.1} parent=5 // pred_check_branch
        %304 = sbr.rel (%p301) target = $region12
      $region11: #{lsnn_sequence.1} parent=5 // pred_region
        %s305 = ssub.s32 %s29, 1
        // Predicated region
        $region13: #{lsnn_sequence.1} parent=11 // pred_check
          %p306 = pneg %p76
        $region14: #{lsnn_sequence.1} parent=11 // pred_check_branch
          %308 = sbr.rel (%p306) target = $region16
        $region15: #{lsnn_sequence.1} parent=11 // pred_region
          %s310 = ssub.s32 256, 256
          %311 = vsyncadd [#allocation6], %s310
          %s312 = sshll.u32 [#allocation5], 4
          %s313 = int_to_ptr.vmem [resolvable:$true] %s312
          %318 = dma.hbm_to_vmem [thread:$0]  %s1, 256, %s313, [#allocation6], 128, 128, 8
        $region16: #{lsnn_sequence.1} parent=11 // pred_fallthru
          _
        // Predicated region
        $region17: #{lsnn_sequence.1} parent=11 // pred_check
          %p319 = pneg %p97
        $region18: #{lsnn_sequence.1} parent=11 // pred_check_branch
          %321 = sbr.rel (%p319) target = $region20
        $region19: #{lsnn_sequence.1} parent=11 // pred_region
          %s323 = ssub.s32 256, 256
          %324 = vsyncadd [#allocation6], %s323
          %s325 = sshll.u32 [#allocation7], 4
          %s326 = int_to_ptr.vmem [resolvable:$true] %s325
          %331 = dma.hbm_to_vmem [thread:$0]  %s2, 256, %s326, [#allocation6], 128, 128, 8
        $region20: #{lsnn_sequence.1} parent=11 // pred_fallthru
          _
        // Predicated region
        $region21: #{lsnn_sequence.1} parent=11 // pred_check
          %p332 = pneg %p118
        $region22: #{lsnn_sequence.1} parent=11 // pred_check_branch
          %334 = sbr.rel (%p332) target = $region24
        $region23: #{lsnn_sequence.1} parent=11 // pred_region
          %s336 = ssub.s32 256, 256
          %337 = vsyncadd [#allocation9], %s336
          %s338 = sshll.u32 [#allocation8], 4
          %s339 = int_to_ptr.vmem [resolvable:$true] %s338
          %344 = dma.hbm_to_vmem [thread:$0]  %s3, 256, %s339, [#allocation9], 128, 128, 8
        $region24: #{lsnn_sequence.1} parent=11 // pred_fallthru
          _
        // Predicated region
        $region25: #{lsnn_sequence.1} parent=11 // pred_check
          %p345 = pneg %p139
        $region26: #{lsnn_sequence.1} parent=11 // pred_check_branch
          %347 = sbr.rel (%p345) target = $region28
        $region27: #{lsnn_sequence.1} parent=11 // pred_region
          %s349 = ssub.s32 256, 256
          %350 = vsyncadd [#allocation9], %s349
          %s351 = sshll.u32 [#allocation10], 4
          %s352 = int_to_ptr.vmem [resolvable:$true] %s351
          %357 = dma.hbm_to_vmem [thread:$0]  %s4, 256, %s352, [#allocation9], 128, 128, 8
        $region28: #{lsnn_sequence.1} parent=11 // pred_fallthru
          _
        // Predicated region
        $region29: #{lsnn_sequence.1} parent=11 // pred_check
          %p358 = pneg %p160
        $region30: #{lsnn_sequence.1} parent=11 // pred_check_branch
          %360 = sbr.rel (%p358) target = $region32
        $region31: #{lsnn_sequence.1} parent=11 // pred_region
          %s362 = ssub.s32 512, 512
          %363 = vsyncadd [#allocation12], %s362
          %s364 = sshll.u32 [#allocation11], 4
          %s365 = int_to_ptr.vmem [resolvable:$true] %s364
          %370 = dma.hbm_to_vmem [thread:$0]  %s5, 512, %s365, [#allocation12], 64, 64, 4
        $region32: #{lsnn_sequence.1} parent=11 // pred_fallthru
          _
        // Predicated region
        $region33: #{lsnn_sequence.1} parent=11 // pred_check
          %p371 = pneg %p181
        $region34: #{lsnn_sequence.1} parent=11 // pred_check_branch
          %373 = sbr.rel (%p371) target = $region36
        $region35: #{lsnn_sequence.1} parent=11 // pred_region
          %s375 = ssub.s32 1024, 1024
          %376 = vsyncadd [#allocation12], %s375
          %s377 = sshll.u32 [#allocation13], 4
          %s378 = int_to_ptr.vmem [resolvable:$true] %s377
          %383 = dma.hbm_to_vmem [thread:$0]  %s6, 1024, %s378, [#allocation12], 64, 64, 4
        $region36: #{lsnn_sequence.1} parent=11 // pred_fallthru
          _
      $region12: #{lsnn_sequence.1} parent=5 // pred_fallthru
        _
      %p384 = scmp.lt.s32.totalorder %s29, 2
      // Predicated region
      $region37: #{lsnn_sequence.1} parent=5 // pred_check
        %p385 = pneg %p384
      $region38: #{lsnn_sequence.1} parent=5 // pred_check_branch
        %387 = sbr.rel (%p385) target = $region40
      $region39: #{lsnn_sequence.1} parent=5 // pred_region
        // Predicated region
        $region41: #{lsnn_sequence.1} parent=39 // pred_check
          %p388 = pneg %p49
        $region42: #{lsnn_sequence.1} parent=39 // pred_check_branch
          %390 = sbr.rel (%p388) target = $region44
        $region43: #{lsnn_sequence.1} parent=39 // pred_region
          %s391 = sand.u32 %s39, 1
          %s392 = scalar_lea.sflag [#allocation3], %s391
          %s393 = sand.u32 %s39, 1
          %s394 = smul.addr %s393, 256
          %s395 = scalar_lea.vmem [#allocation2], %s394
          %s396 = smul.u32 16, %s29
          %s398 = ssub.s32 4096, 4096
          %399 = vsyncadd %s392, %s398
          %s400 = smul.addr %s396, 2
          %s401 = smul.addr %s400, 128
          %s402 = scalar_lea.hbm %s0, %s401
          %s403 = sshll.u32 %s395, 4
          %s404 = int_to_ptr.vmem [resolvable:$true] %s403
          %409 = dma.hbm_to_vmem [thread:$0]  %s402, 4096, %s404, %s392, 128, 128, 8
        $region44: #{lsnn_sequence.1} parent=39 // pred_fallthru
          _
      $region40: #{lsnn_sequence.1} parent=5 // pred_fallthru
        _
      %p410 = scmp.le.s32.totalorder 1, %s29
      %p411 = scmp.lt.s32.totalorder %s29, 3
      %p412 = pnand %p410, %p411
      %p413 = pneg %p412
      // Predicated region
      $region45: #{lsnn_sequence.1} parent=5 // pred_check
        _
      $region46: #{lsnn_sequence.1} parent=5 // pred_check_branch
        %415 = sbr.rel (%p412) target = $region48
      $region47: #{lsnn_sequence.1} parent=5 // pred_region
        %s416 = ssub.s32 %s29, 1
        %s417 = sand.u32 %s42, 1
        %s418 = scalar_lea.sflag [#allocation3], %s417
        %s419 = sand.u32 %s42, 1
        %s420 = smul.addr %s419, 256
        %s421 = scalar_lea.vmem [#allocation2], %s420
        // Predicated region
        $region49: #{lsnn_sequence.1} parent=47 // pred_check
          %p422 = pneg %p55
        $region50: #{lsnn_sequence.1} parent=47 // pred_check_branch
          %424 = sbr.rel (%p422) target = $region52
        $region51: #{lsnn_sequence.1} parent=47 // pred_region
          %425 = dma.done %s418, 4096
        $region52: #{lsnn_sequence.1} parent=47 // pred_fallthru
          _
        // Predicated region
        $region53: #{lsnn_sequence.1} parent=47 // pred_check
          %p426 = pneg %p76
        $region54: #{lsnn_sequence.1} parent=47 // pred_check_branch
          %428 = sbr.rel (%p426) target = $region56
        $region55: #{lsnn_sequence.1} parent=47 // pred_region
          %429 = dma.done [#allocation6], 256
        $region56: #{lsnn_sequence.1} parent=47 // pred_fallthru
          _
        // Predicated region
        $region57: #{lsnn_sequence.1} parent=47 // pred_check
          %p430 = pneg %p97
        $region58: #{lsnn_sequence.1} parent=47 // pred_check_branch
          %432 = sbr.rel (%p430) target = $region60
        $region59: #{lsnn_sequence.1} parent=47 // pred_region
          %433 = dma.done [#allocation6], 256
        $region60: #{lsnn_sequence.1} parent=47 // pred_fallthru
          _
        // Predicated region
        $region61: #{lsnn_sequence.1} parent=47 // pred_check
          %p434 = pneg %p118
        $region62: #{lsnn_sequence.1} parent=47 // pred_check_branch
          %436 = sbr.rel (%p434) target = $region64
        $region63: #{lsnn_sequence.1} parent=47 // pred_region
          %437 = dma.done [#allocation9], 256
        $region64: #{lsnn_sequence.1} parent=47 // pred_fallthru
          _
        // Predicated region
        $region65: #{lsnn_sequence.1} parent=47 // pred_check
          %p438 = pneg %p139
        $region66: #{lsnn_sequence.1} parent=47 // pred_check_branch
          %440 = sbr.rel (%p438) target = $region68
        $region67: #{lsnn_sequence.1} parent=47 // pred_region
          %441 = dma.done [#allocation9], 256
        $region68: #{lsnn_sequence.1} parent=47 // pred_fallthru
          _
        // Predicated region
        $region69: #{lsnn_sequence.1} parent=47 // pred_check
          %p442 = pneg %p160
        $region70: #{lsnn_sequence.1} parent=47 // pred_check_branch
          %444 = sbr.rel (%p442) target = $region72
        $region71: #{lsnn_sequence.1} parent=47 // pred_region
          %445 = dma.done [#allocation12], 512
        $region72: #{lsnn_sequence.1} parent=47 // pred_fallthru
          _
        // Predicated region
        $region73: #{lsnn_sequence.1} parent=47 // pred_check
          %p446 = pneg %p181
        $region74: #{lsnn_sequence.1} parent=47 // pred_check_branch
          %448 = sbr.rel (%p446) target = $region76
        $region75: #{lsnn_sequence.1} parent=47 // pred_region
          %449 = dma.done [#allocation12], 1024
        $region76: #{lsnn_sequence.1} parent=47 // pred_fallthru
          _
        %s450 = sand.u32 %s42, 1
        %s451 = scalar_lea.sflag [#allocation3], %s450
        %s452 = sand.u32 %s42, 1
        %s453 = smul.addr %s452, 256
        %s454 = scalar_lea.vmem [#allocation2], %s453
        %p455 = pneg %p55
        %p456 = pneg %p52
        %p457 = pneg %p76
        %p458 = pneg %p73
        %p459 = pneg %p97
        %p460 = pneg %p94
        %p461 = pneg %p118
        %p462 = pneg %p115
        %p463 = pneg %p139
        %p464 = pneg %p136
        %p465 = pneg %p160
        %p466 = pneg %p157
        %p467 = pneg %p181
        %p468 = pneg %p178
        %p469 = pneg %p207
        %p470 = pneg %p204
        %s471 = sand.u32 %s194, 1
        %s472 = scalar_lea.sflag [#allocation4], %s471
        %s473 = sand.u32 %s194, 1
        %s474 = smul.addr %s473, 128
        %s475 = scalar_lea.vmem [#allocation14], %s474
        %p476 = pneg %p228
        %p477 = pneg %p225
        %p478 = pneg %p249
        %p479 = pneg %p246
        %p480 = pneg %p270
        %p481 = pneg %p267
        %p482 = pneg %p291
        %p483 = pneg %p288
        %s484 = smul.u32 16, %s34
        %s485 = smul.u32 16, %s34
        %p487 = scmp.eq.s32.totalorder %s34, 0
        // Predicated region
        $region77: #{lsnn_sequence.1} parent=47 // pred_check
          %p488 = pneg %p487
        $region78: #{lsnn_sequence.1} parent=47 // pred_check_branch
          %490 = sbr.rel (%p488) target = $region80
        $region79: #{lsnn_sequence.1} parent=47 // pred_region
          %v491 = vld [vmem:[#allocation5] sm:$0xff]
          %v492 = vld [vmem:[#allocation5 + $0x8] sm:$0xff]
          %493 = vst [vmem:[#allocation15] sm:$0xff] %v491
          %494 = vst [vmem:[#allocation15 + $0x8] sm:$0xff] %v492
          %v495 = vld [vmem:[#allocation7] sm:$0xff]
          %v496 = vld [vmem:[#allocation7 + $0x8] sm:$0xff]
          %497 = vst [vmem:[#allocation17] sm:$0xff] %v495
          %498 = vst [vmem:[#allocation17 + $0x8] sm:$0xff] %v496
          %v499 = vld [vmem:[#allocation8] sm:$0xff]
          %v500 = vld [vmem:[#allocation8 + $0x8] sm:$0xff]
          %501 = vst [vmem:[#allocation18] sm:$0xff] %v499
          %502 = vst [vmem:[#allocation18 + $0x8] sm:$0xff] %v500
          %v503 = vld [vmem:[#allocation10] sm:$0xff]
          %v504 = vld [vmem:[#allocation10 + $0x8] sm:$0xff]
          %505 = vst [vmem:[#allocation20] sm:$0xff] %v503
          %506 = vst [vmem:[#allocation20 + $0x8] sm:$0xff] %v504
        $region80: #{lsnn_sequence.1} parent=47 // pred_fallthru
          _
        %v507 = vld [vmem:[#allocation11] sm:$0xf]
        %v508 = vld [vmem:[#allocation11 + $0x4] sm:$0xf]
        %v509 = vld [vmem:[#allocation11 + $0x8] sm:$0xf]
        %v510 = vld [vmem:[#allocation11 + $0xc] sm:$0xf]
        %v511 = vld [vmem:[#allocation11 + $0x10] sm:$0xf]
        %v512 = vld [vmem:[#allocation11 + $0x14] sm:$0xf]
        %v513 = vld [vmem:[#allocation11 + $0x18] sm:$0xf]
        %v514 = vld [vmem:[#allocation11 + $0x1c] sm:$0xf]
        %v515 = vld [vmem:[#allocation13] sm:$0xf]
        %v516 = vld [vmem:[#allocation13 + $0x4] sm:$0xf]
        %v517 = vld [vmem:[#allocation13 + $0x8] sm:$0xf]
        %v518 = vld [vmem:[#allocation13 + $0xc] sm:$0xf]
        %v519 = vld [vmem:[#allocation13 + $0x10] sm:$0xf]
        %v520 = vld [vmem:[#allocation13 + $0x14] sm:$0xf]
        %v521 = vld [vmem:[#allocation13 + $0x18] sm:$0xf]
        %v522 = vld [vmem:[#allocation13 + $0x1c] sm:$0xf]
        %v523 = vld [vmem:[#allocation13 + $0x20] sm:$0xf]
        %v524 = vld [vmem:[#allocation13 + $0x24] sm:$0xf]
        %v525 = vld [vmem:[#allocation13 + $0x28] sm:$0xf]
        %v526 = vld [vmem:[#allocation13 + $0x2c] sm:$0xf]
        %v527 = vld [vmem:[#allocation13 + $0x30] sm:$0xf]
        %v528 = vld [vmem:[#allocation13 + $0x34] sm:$0xf]
        %v529 = vld [vmem:[#allocation13 + $0x38] sm:$0xf]
        %v530 = vld [vmem:[#allocation13 + $0x3c] sm:$0xf]
        %v531 = vld [vmem:[#allocation15] sm:$0xff]
        %v532 = vld [vmem:[#allocation15 + $0x8] sm:$0xff]
        %v533 = vld [vmem:[#allocation17] sm:$0xff]
        %v534 = vld [vmem:[#allocation17 + $0x8] sm:$0xff]
        %v535 = vld [vmem:[#allocation18] sm:$0xff]
        %v536 = vld [vmem:[#allocation18 + $0x8] sm:$0xff]
        %v537 = vld [vmem:[#allocation20] sm:$0xff]
        %v538 = vld [vmem:[#allocation20 + $0x8] sm:$0xff]
        %v539 = vsub.f32 0.0, %v533
        %v540 = vsub.f32 0.0, %v534
        %v541 = vadd.f32 %v539, %v535
        %v542 = vadd.f32 %v540, %v536
        %v543 = vmul.f32 %v541, 0.1
        %v544 = vmul.f32 %v542, 0.1
        %v545 = vadd.f32 %v533, %v543
        %v546 = vadd.f32 %v534, %v544
        %v547 = vmul.f32 %v535, 0.2
        %v548 = vmul.f32 %v536, 0.2
        %v549 = vsub.f32 %v535, %v547
        %v550 = vsub.f32 %v536, %v548
        %v551 = vmul.f32 %v537, 1.4285714e-06
        %v552 = vmul.f32 %v538, 1.4285714e-06
        %v553 = vsub.f32 %v537, %v551
        %v554 = vsub.f32 %v538, %v552
        %v555 = vsub.f32 %v545, 1.0
        %v556 = vsub.f32 %v546, 1.0
        %v557 = vadd.f32 %v555, %v553
        %v558 = vadd.f32 %v556, %v554
        %vm559 = vcmp.gt.f32.partialorder %v557, 0.0
        %vm560 = vcmp.gt.f32.partialorder %v558, 0.0
        %v561 = vsel %vm559, 1, 0
        %v562 = vsel %vm560, 1, 0
        %v563 = vcvt.s32.f32 %v561
        %v564 = vcvt.s32.f32 %v562
        %v565 = vsel %vm559, 0.0, %v545
        %v566 = vsel %vm560, 0.0, %v546
        %v567 = vld [vmem:[%s421] sm:$0xff]
        %v568 = vld [vmem:[%s421 + $0x8] sm:$0xff]
        %v569 = vpack.c.bf16 %v568, %v567
        %v578 = vunpack.c.l.b16 %v507
        %v579 = vunpack.c.l.b16 %v508
        %v580 = vunpack.c.l.b16 %v509
        %v581 = vunpack.c.l.b16 %v510
        %v582 = vunpack.c.l.b16 %v511
        %v583 = vunpack.c.l.b16 %v512
        %v584 = vunpack.c.l.b16 %v513
        %v585 = vunpack.c.l.b16 %v514
        %v586 = vpack.c.b16 %v579, %v578
        %v587 = vpack.c.b16 %v581, %v580
        %v588 = vpack.c.b16 %v583, %v582
        %v589 = vpack.c.b16 %v585, %v584
        %vm594 = vcmask 523264
        %v596 = vsel %vm594, %v569, 0
        %598 = vmatprep.subr.bf16.mxu0 0
        %599 = vmatpush1.bf16.msra.mxu0 0
        %600 = vmatprep.subr.bf16.mxu0 0
        %601 = vmatpush1.bf16.msra.mxu0 0
        %602 = vmatprep.subr.bf16.mxu0 0
        %603 = vmatpush1.bf16.msra.mxu0 0
        %604 = vmatprep.subr.bf16.mxu0 0
        %605 = vmatpush1.bf16.msra.mxu0 0
        %606 = vmatprep.subr.bf16.mxu0 0
        %607 = vmatpush1.bf16.msra.mxu0 %v589
        %608 = vmatprep.subr.bf16.mxu0 0
        %609 = vmatpush1.bf16.msra.mxu0 %v588
        %610 = vmatprep.subr.bf16.mxu0 0
        %611 = vmatpush1.bf16.msra.mxu0 %v587
        %612 = vmatprep.subr.bf16.mxu0 0
        %613 = vmatpush1.bf16.msra.mxu0 %v586
        %614 = vmatprep.subr.bf16.mxu0 0
        %615 = vmatpush2.bf16.msra.mxu0 0
        %616 = vmatprep.subr.bf16.mxu0 0
        %617 = vmatpush2.bf16.msra.mxu0 0
        %618 = vmatprep.subr.bf16.mxu0 0
        %619 = vmatpush2.bf16.msra.mxu0 0
        %620 = vmatprep.subr.bf16.mxu0 0
        %621 = vmatpush2.bf16.msra.mxu0 0
        %622 = vmatprep.subr.bf16.mxu0 0
        %623 = vmatpush2.bf16.msra.mxu0 0
        %624 = vmatprep.subr.bf16.mxu0 0
        %625 = vmatpush2.bf16.msra.mxu0 0
        %626 = vmatprep.subr.bf16.mxu0 0
        %627 = vmatpush2.bf16.msra.mxu0 0
        %628 = vmatprep.subr.bf16.mxu0 0
        %629 = vmatpush2.bf16.msra.mxu0 0
        %630 = vmatprep.mubr.bf16.mxu0 0
        %631 = vmatmul.mubr.bf16.gmra.mxu0 %v596
        %v632 = vpop.f32.mrf.mxu0
        %v633 = vadd.f32 0.0, %v632
        %v634 = vpop.f32.mrf.mxu0
        %v635 = vpop.f32.mrf.mxu0
        %v636 = vadd.f32 0.0, %v635
        %v637 = vpop.f32.mrf.mxu0
        %638 = vdwg.mxu0
        %v639 = vadd.f32 %v549, %v633
        %v640 = vadd.f32 %v550, %v636
        %v641 = vpack.c.bf16 %v532, %v531
        %v658 = vunpack.c.l.b16 %v515
        %v659 = vunpack.c.l.b16 %v516
        %v660 = vunpack.c.l.b16 %v517
        %v661 = vunpack.c.l.b16 %v518
        %v662 = vunpack.c.l.b16 %v519
        %v663 = vunpack.c.l.b16 %v520
        %v664 = vunpack.c.l.b16 %v521
        %v665 = vunpack.c.l.b16 %v522
        %v666 = vunpack.c.l.b16 %v523
        %v667 = vunpack.c.l.b16 %v524
        %v668 = vunpack.c.l.b16 %v525
        %v669 = vunpack.c.l.b16 %v526
        %v670 = vunpack.c.l.b16 %v527
        %v671 = vunpack.c.l.b16 %v528
        %v672 = vunpack.c.l.b16 %v529
        %v673 = vunpack.c.l.b16 %v530
        %v674 = vpack.c.b16 %v659, %v658
        %v675 = vpack.c.b16 %v661, %v660
        %v676 = vpack.c.b16 %v663, %v662
        %v677 = vpack.c.b16 %v665, %v664
        %v678 = vpack.c.b16 %v667, %v666
        %v679 = vpack.c.b16 %v669, %v668
        %v680 = vpack.c.b16 %v671, %v670
        %v681 = vpack.c.b16 %v673, %v672
        %690 = vmatprep.subr.bf16.mxu0 0
        %691 = vmatpush1.bf16.msra.mxu0 %v681
        %692 = vmatprep.subr.bf16.mxu0 0
        %693 = vmatpush1.bf16.msra.mxu0 %v680
        %694 = vmatprep.subr.bf16.mxu0 0
        %695 = vmatpush1.bf16.msra.mxu0 %v679
        %696 = vmatprep.subr.bf16.mxu0 0
        %697 = vmatpush1.bf16.msra.mxu0 %v678
        %698 = vmatprep.subr.bf16.mxu0 0
        %699 = vmatpush1.bf16.msra.mxu0 %v677
        %700 = vmatprep.subr.bf16.mxu0 0
        %701 = vmatpush1.bf16.msra.mxu0 %v676
        %702 = vmatprep.subr.bf16.mxu0 0
        %703 = vmatpush1.bf16.msra.mxu0 %v675
        %704 = vmatprep.subr.bf16.mxu0 0
        %705 = vmatpush1.bf16.msra.mxu0 %v674
        %706 = vmatprep.subr.bf16.mxu0 0
        %707 = vmatpush2.bf16.msra.mxu0 0
        %708 = vmatprep.subr.bf16.mxu0 0
        %709 = vmatpush2.bf16.msra.mxu0 0
        %710 = vmatprep.subr.bf16.mxu0 0
        %711 = vmatpush2.bf16.msra.mxu0 0
        %712 = vmatprep.subr.bf16.mxu0 0
        %713 = vmatpush2.bf16.msra.mxu0 0
        %714 = vmatprep.subr.bf16.mxu0 0
        %715 = vmatpush2.bf16.msra.mxu0 0
        %716 = vmatprep.subr.bf16.mxu0 0
        %717 = vmatpush2.bf16.msra.mxu0 0
        %718 = vmatprep.subr.bf16.mxu0 0
        %719 = vmatpush2.bf16.msra.mxu0 0
        %720 = vmatprep.subr.bf16.mxu0 0
        %721 = vmatpush2.bf16.msra.mxu0 0
        %722 = vmatprep.mubr.bf16.mxu0 0
        %723 = vmatmul.mubr.bf16.gmra.mxu0 %v641
        %v724 = vpop.f32.mrf.mxu0
        %v725 = vadd.f32 0.0, %v724
        %v726 = vpop.f32.mrf.mxu0
        %v727 = vpop.f32.mrf.mxu0
        %v728 = vadd.f32 0.0, %v727
        %v729 = vpop.f32.mrf.mxu0
        %730 = vdwg.mxu0
        %v731 = vadd.f32 %v639, %v725
        %v732 = vadd.f32 %v640, %v728
        %v733 = vmul.f32 %v563, 1.8
        %v734 = vmul.f32 %v564, 1.8
        %v735 = vadd.f32 %v553, %v733
        %v736 = vadd.f32 %v554, %v734
        %v737 = vpack.c.bf16 %v564, %v563
        %v739 = vunpack.c.l.b16 %v737
        %v740 = vunpack.c.h.b16 %v737
        %v741 = vpack.c.b16 %v739, %v739
        %v742 = vpack.c.b16 %v740, %v740
        %745 = vst [vmem:[%s475] sm:$0xf] %v741
        %746 = vst [vmem:[%s475 + $0x4] sm:$0xf] %v742
        %v747 = vsub.f32 0.0, %v565
        %v748 = vsub.f32 0.0, %v566
        %v749 = vadd.f32 %v747, %v731
        %v750 = vadd.f32 %v748, %v732
        %v751 = vmul.f32 %v749, 0.1
        %v752 = vmul.f32 %v750, 0.1
        %v753 = vadd.f32 %v565, %v751
        %v754 = vadd.f32 %v566, %v752
        %v755 = vmul.f32 %v731, 0.2
        %v756 = vmul.f32 %v732, 0.2
        %v757 = vsub.f32 %v731, %v755
        %v758 = vsub.f32 %v732, %v756
        %v759 = vmul.f32 %v735, 1.4285714e-06
        %v760 = vmul.f32 %v736, 1.4285714e-06
        %v761 = vsub.f32 %v735, %v759
        %v762 = vsub.f32 %v736, %v760
        %v763 = vsub.f32 %v753, 1.0
        %v764 = vsub.f32 %v754, 1.0
        %v765 = vadd.f32 %v763, %v761
        %v766 = vadd.f32 %v764, %v762
        %vm767 = vcmp.gt.f32.partialorder %v765, 0.0
        %vm768 = vcmp.gt.f32.partialorder %v766, 0.0
        %v769 = vsel %vm767, 1, 0
        %v770 = vsel %vm768, 1, 0
        %v771 = vcvt.s32.f32 %v769
        %v772 = vcvt.s32.f32 %v770
        %v773 = vsel %vm767, 0.0, %v753
        %v774 = vsel %vm768, 0.0, %v754
        %s775 = scalar_lea.vmem %s421, 16 [#allocation2]
        %v776 = vld [vmem:[%s775] sm:$0xff]
        %v777 = vld [vmem:[%s775 + $0x8] sm:$0xff]
        %v778 = vpack.c.bf16 %v777, %v776
        %v780 = vsel %vm594, %v778, 0
        %782 = vmatprep.subr.bf16.mxu0 0
        %783 = vmatpush1.bf16.msra.mxu0 0
        %784 = vmatprep.subr.bf16.mxu0 0
        %785 = vmatpush1.bf16.msra.mxu0 0
        %786 = vmatprep.subr.bf16.mxu0 0
        %787 = vmatpush1.bf16.msra.mxu0 0
        %788 = vmatprep.subr.bf16.mxu0 0
        %789 = vmatpush1.bf16.msra.mxu0 0
        %790 = vmatprep.subr.bf16.mxu0 0
        %791 = vmatpush1.bf16.msra.mxu0 %v589
        %792 = vmatprep.subr.bf16.mxu0 0
        %793 = vmatpush1.bf16.msra.mxu0 %v588
        %794 = vmatprep.subr.bf16.mxu0 0
        %795 = vmatpush1.bf16.msra.mxu0 %v587
        %796 = vmatprep.subr.bf16.mxu0 0
        %797 = vmatpush1.bf16.msra.mxu0 %v586
        %798 = vmatprep.subr.bf16.mxu0 0
        %799 = vmatpush2.bf16.msra.mxu0 0
        %800 = vmatprep.subr.bf16.mxu0 0
        %801 = vmatpush2.bf16.msra.mxu0 0
        %802 = vmatprep.subr.bf16.mxu0 0
        %803 = vmatpush2.bf16.msra.mxu0 0
        %804 = vmatprep.subr.bf16.mxu0 0
        %805 = vmatpush2.bf16.msra.mxu0 0
        %806 = vmatprep.subr.bf16.mxu0 0
        %807 = vmatpush2.bf16.msra.mxu0 0
        %808 = vmatprep.subr.bf16.mxu0 0
        %809 = vmatpush2.bf16.msra.mxu0 0
        %810 = vmatprep.subr.bf16.mxu0 0
        %811 = vmatpush2.bf16.msra.mxu0 0
        %812 = vmatprep.subr.bf16.mxu0 0
        %813 = vmatpush2.bf16.msra.mxu0 0
        %814 = vmatprep.mubr.bf16.mxu0 0
        %815 = vmatmul.mubr.bf16.gmra.mxu0 %v780
        %v816 = vpop.f32.mrf.mxu0
        %v817 = vadd.f32 0.0, %v816
        %v818 = vpop.f32.mrf.mxu0
        %v819 = vpop.f32.mrf.mxu0
        %v820 = vadd.f32 0.0, %v819
        %v821 = vpop.f32.mrf.mxu0
        %822 = vdwg.mxu0
        %v823 = vadd.f32 %v757, %v817
        %v824 = vadd.f32 %v758, %v820
        %825 = vmatprep.subr.bf16.mxu0 0
        %826 = vmatpush1.bf16.msra.mxu0 %v681
        %827 = vmatprep.subr.bf16.mxu0 0
        %828 = vmatpush1.bf16.msra.mxu0 %v680
        %829 = vmatprep.subr.bf16.mxu0 0
        %830 = vmatpush1.bf16.msra.mxu0 %v679
        %831 = vmatprep.subr.bf16.mxu0 0
        %832 = vmatpush1.bf16.msra.mxu0 %v678
        %833 = vmatprep.subr.bf16.mxu0 0
        %834 = vmatpush1.bf16.msra.mxu0 %v677
        %835 = vmatprep.subr.bf16.mxu0 0
        %836 = vmatpush1.bf16.msra.mxu0 %v676
        %837 = vmatprep.subr.bf16.mxu0 0
        %838 = vmatpush1.bf16.msra.mxu0 %v675
        %839 = vmatprep.subr.bf16.mxu0 0
        %840 = vmatpush1.bf16.msra.mxu0 %v674
        %841 = vmatprep.subr.bf16.mxu0 0
        %842 = vmatpush2.bf16.msra.mxu0 0
        %843 = vmatprep.subr.bf16.mxu0 0
        %844 = vmatpush2.bf16.msra.mxu0 0
        %845 = vmatprep.subr.bf16.mxu0 0
        %846 = vmatpush2.bf16.msra.mxu0 0
        %847 = vmatprep.subr.bf16.mxu0 0
        %848 = vmatpush2.bf16.msra.mxu0 0
        %849 = vmatprep.subr.bf16.mxu0 0
        %850 = vmatpush2.bf16.msra.mxu0 0
        %851 = vmatprep.subr.bf16.mxu0 0
        %852 = vmatpush2.bf16.msra.mxu0 0
        %853 = vmatprep.subr.bf16.mxu0 0
        %854 = vmatpush2.bf16.msra.mxu0 0
        %855 = vmatprep.subr.bf16.mxu0 0
        %856 = vmatpush2.bf16.msra.mxu0 0
        %857 = vmatprep.mubr.bf16.mxu0 0
        %858 = vmatmul.mubr.bf16.gmra.mxu0 %v737
        %v859 = vpop.f32.mrf.mxu0
        %v860 = vadd.f32 0.0, %v859
        %v861 = vpop.f32.mrf.mxu0
        %v862 = vpop.f32.mrf.mxu0
        %v863 = vadd.f32 0.0, %v862
        %v864 = vpop.f32.mrf.mxu0
        %865 = vdwg.mxu0
        %v866 = vadd.f32 %v823, %v860
        %v867 = vadd.f32 %v824, %v863
        %v868 = vmul.f32 %v771, 1.8
        %v869 = vmul.f32 %v772, 1.8
        %v870 = vadd.f32 %v761, %v868
        %v871 = vadd.f32 %v762, %v869
        %v872 = vpack.c.bf16 %v772, %v771
        %v874 = vunpack.c.l.b16 %v872
        %v875 = vunpack.c.h.b16 %v872
        %v876 = vpack.c.b16 %v874, %v874
        %v877 = vpack.c.b16 %v875, %v875
        %s880 = scalar_lea.vmem %s475, 8 [#allocation14]
        %881 = vst [vmem:[%s880] sm:$0xf] %v876
        %882 = vst [vmem:[%s880 + $0x4] sm:$0xf] %v877
        %v883 = vsub.f32 0.0, %v773
        %v884 = vsub.f32 0.0, %v774
        %v885 = vadd.f32 %v883, %v866
        %v886 = vadd.f32 %v884, %v867
        %v887 = vmul.f32 %v885, 0.1
        %v888 = vmul.f32 %v886, 0.1
        %v889 = vadd.f32 %v773, %v887
        %v890 = vadd.f32 %v774, %v888
        %v891 = vmul.f32 %v866, 0.2
        %v892 = vmul.f32 %v867, 0.2
        %v893 = vsub.f32 %v866, %v891
        %v894 = vsub.f32 %v867, %v892
        %v895 = vmul.f32 %v870, 1.4285714e-06
        %v896 = vmul.f32 %v871, 1.4285714e-06
        %v897 = vsub.f32 %v870, %v895
        %v898 = vsub.f32 %v871, %v896
        %v899 = vsub.f32 %v889, 1.0
        %v900 = vsub.f32 %v890, 1.0
        %v901 = vadd.f32 %v899, %v897
        %v902 = vadd.f32 %v900, %v898
        %vm903 = vcmp.gt.f32.partialorder %v901, 0.0
        %vm904 = vcmp.gt.f32.partialorder %v902, 0.0
        %v905 = vsel %vm903, 1, 0
        %v906 = vsel %vm904, 1, 0
        %v907 = vcvt.s32.f32 %v905
        %v908 = vcvt.s32.f32 %v906
        %v909 = vsel %vm903, 0.0, %v889
        %v910 = vsel %vm904, 0.0, %v890
        %s911 = scalar_lea.vmem %s421, 32 [#allocation2]
        %v912 = vld [vmem:[%s911] sm:$0xff]
        %v913 = vld [vmem:[%s911 + $0x8] sm:$0xff]
        %v914 = vpack.c.bf16 %v913, %v912
        %v916 = vsel %vm594, %v914, 0
        %918 = vmatprep.subr.bf16.mxu0 0
        %919 = vmatpush1.bf16.msra.mxu0 0
        %920 = vmatprep.subr.bf16.mxu0 0
        %921 = vmatpush1.bf16.msra.mxu0 0
        %922 = vmatprep.subr.bf16.mxu0 0
        %923 = vmatpush1.bf16.msra.mxu0 0
        %924 = vmatprep.subr.bf16.mxu0 0
        %925 = vmatpush1.bf16.msra.mxu0 0
        %926 = vmatprep.subr.bf16.mxu0 0
        %927 = vmatpush1.bf16.msra.mxu0 %v589
        %928 = vmatprep.subr.bf16.mxu0 0
        %929 = vmatpush1.bf16.msra.mxu0 %v588
        %930 = vmatprep.subr.bf16.mxu0 0
        %931 = vmatpush1.bf16.msra.mxu0 %v587
        %932 = vmatprep.subr.bf16.mxu0 0
        %933 = vmatpush1.bf16.msra.mxu0 %v586
        %934 = vmatprep.subr.bf16.mxu0 0
        %935 = vmatpush2.bf16.msra.mxu0 0
        %936 = vmatprep.subr.bf16.mxu0 0
        %937 = vmatpush2.bf16.msra.mxu0 0
        %938 = vmatprep.subr.bf16.mxu0 0
        %939 = vmatpush2.bf16.msra.mxu0 0
        %940 = vmatprep.subr.bf16.mxu0 0
        %941 = vmatpush2.bf16.msra.mxu0 0
        %942 = vmatprep.subr.bf16.mxu0 0
        %943 = vmatpush2.bf16.msra.mxu0 0
        %944 = vmatprep.subr.bf16.mxu0 0
        %945 = vmatpush2.bf16.msra.mxu0 0
        %946 = vmatprep.subr.bf16.mxu0 0
        %947 = vmatpush2.bf16.msra.mxu0 0
        %948 = vmatprep.subr.bf16.mxu0 0
        %949 = vmatpush2.bf16.msra.mxu0 0
        %950 = vmatprep.mubr.bf16.mxu0 0
        %951 = vmatmul.mubr.bf16.gmra.mxu0 %v916
        %v952 = vpop.f32.mrf.mxu0
        %v953 = vadd.f32 0.0, %v952
        %v954 = vpop.f32.mrf.mxu0
        %v955 = vpop.f32.mrf.mxu0
        %v956 = vadd.f32 0.0, %v955
        %v957 = vpop.f32.mrf.mxu0
        %958 = vdwg.mxu0
        %v959 = vadd.f32 %v893, %v953
        %v960 = vadd.f32 %v894, %v956
        %961 = vmatprep.subr.bf16.mxu0 0
        %962 = vmatpush1.bf16.msra.mxu0 %v681
        %963 = vmatprep.subr.bf16.mxu0 0
        %964 = vmatpush1.bf16.msra.mxu0 %v680
        %965 = vmatprep.subr.bf16.mxu0 0
        %966 = vmatpush1.bf16.msra.mxu0 %v679
        %967 = vmatprep.subr.bf16.mxu0 0
        %968 = vmatpush1.bf16.msra.mxu0 %v678
        %969 = vmatprep.subr.bf16.mxu0 0
        %970 = vmatpush1.bf16.msra.mxu0 %v677
        %971 = vmatprep.subr.bf16.mxu0 0
        %972 = vmatpush1.bf16.msra.mxu0 %v676
        %973 = vmatprep.subr.bf16.mxu0 0
        %974 = vmatpush1.bf16.msra.mxu0 %v675
        %975 = vmatprep.subr.bf16.mxu0 0
        %976 = vmatpush1.bf16.msra.mxu0 %v674
        %977 = vmatprep.subr.bf16.mxu0 0
        %978 = vmatpush2.bf16.msra.mxu0 0
        %979 = vmatprep.subr.bf16.mxu0 0
        %980 = vmatpush2.bf16.msra.mxu0 0
        %981 = vmatprep.subr.bf16.mxu0 0
        %982 = vmatpush2.bf16.msra.mxu0 0
        %983 = vmatprep.subr.bf16.mxu0 0
        %984 = vmatpush2.bf16.msra.mxu0 0
        %985 = vmatprep.subr.bf16.mxu0 0
        %986 = vmatpush2.bf16.msra.mxu0 0
        %987 = vmatprep.subr.bf16.mxu0 0
        %988 = vmatpush2.bf16.msra.mxu0 0
        %989 = vmatprep.subr.bf16.mxu0 0
        %990 = vmatpush2.bf16.msra.mxu0 0
        %991 = vmatprep.subr.bf16.mxu0 0
        %992 = vmatpush2.bf16.msra.mxu0 0
        %993 = vmatprep.mubr.bf16.mxu0 0
        %994 = vmatmul.mubr.bf16.gmra.mxu0 %v872
        %v995 = vpop.f32.mrf.mxu0
        %v996 = vadd.f32 0.0, %v995
        %v997 = vpop.f32.mrf.mxu0
        %v998 = vpop.f32.mrf.mxu0
        %v999 = vadd.f32 0.0, %v998
        %v1000 = vpop.f32.mrf.mxu0
        %1001 = vdwg.mxu0
        %v1002 = vadd.f32 %v959, %v996
        %v1003 = vadd.f32 %v960, %v999
        %v1004 = vmul.f32 %v907, 1.8
        %v1005 = vmul.f32 %v908, 1.8
        %v1006 = vadd.f32 %v897, %v1004
        %v1007 = vadd.f32 %v898, %v1005
        %v1008 = vpack.c.bf16 %v908, %v907
        %v1010 = vunpack.c.l.b16 %v1008
        %v1011 = vunpack.c.h.b16 %v1008
        %v1012 = vpack.c.b16 %v1010, %v1010
        %v1013 = vpack.c.b16 %v1011, %v1011
        %s1016 = scalar_lea.vmem %s475, 16 [#allocation14]
        %1017 = vst [vmem:[%s1016] sm:$0xf] %v1012
        %1018 = vst [vmem:[%s1016 + $0x4] sm:$0xf] %v1013
        %v1019 = vsub.f32 0.0, %v909
        %v1020 = vsub.f32 0.0, %v910
        %v1021 = vadd.f32 %v1019, %v1002
        %v1022 = vadd.f32 %v1020, %v1003
        %v1023 = vmul.f32 %v1021, 0.1
        %v1024 = vmul.f32 %v1022, 0.1
        %v1025 = vadd.f32 %v909, %v1023
        %v1026 = vadd.f32 %v910, %v1024
        %v1027 = vmul.f32 %v1002, 0.2
        %v1028 = vmul.f32 %v1003, 0.2
        %v1029 = vsub.f32 %v1002, %v1027
        %v1030 = vsub.f32 %v1003, %v1028
        %v1031 = vmul.f32 %v1006, 1.4285714e-06
        %v1032 = vmul.f32 %v1007, 1.4285714e-06
        %v1033 = vsub.f32 %v1006, %v1031
        %v1034 = vsub.f32 %v1007, %v1032
        %v1035 = vsub.f32 %v1025, 1.0
        %v1036 = vsub.f32 %v1026, 1.0
        %v1037 = vadd.f32 %v1035, %v1033
        %v1038 = vadd.f32 %v1036, %v1034
        %vm1039 = vcmp.gt.f32.partialorder %v1037, 0.0
        %vm1040 = vcmp.gt.f32.partialorder %v1038, 0.0
        %v1041 = vsel %vm1039, 1, 0
        %v1042 = vsel %vm1040, 1, 0
        %v1043 = vcvt.s32.f32 %v1041
        %v1044 = vcvt.s32.f32 %v1042
        %v1045 = vsel %vm1039, 0.0, %v1025
        %v1046 = vsel %vm1040, 0.0, %v1026
        %s1047 = scalar_lea.vmem %s421, 48 [#allocation2]
        %v1048 = vld [vmem:[%s1047] sm:$0xff]
        %v1049 = vld [vmem:[%s1047 + $0x8] sm:$0xff]
        %v1050 = vpack.c.bf16 %v1049, %v1048
        %v1052 = vsel %vm594, %v1050, 0
        %1054 = vmatprep.subr.bf16.mxu0 0
        %1055 = vmatpush1.bf16.msra.mxu0 0
        %1056 = vmatprep.subr.bf16.mxu0 0
        %1057 = vmatpush1.bf16.msra.mxu0 0
        %1058 = vmatprep.subr.bf16.mxu0 0
        %1059 = vmatpush1.bf16.msra.mxu0 0
        %1060 = vmatprep.subr.bf16.mxu0 0
        %1061 = vmatpush1.bf16.msra.mxu0 0
        %1062 = vmatprep.subr.bf16.mxu0 0
        %1063 = vmatpush1.bf16.msra.mxu0 %v589
        %1064 = vmatprep.subr.bf16.mxu0 0
        %1065 = vmatpush1.bf16.msra.mxu0 %v588
        %1066 = vmatprep.subr.bf16.mxu0 0
        %1067 = vmatpush1.bf16.msra.mxu0 %v587
        %1068 = vmatprep.subr.bf16.mxu0 0
        %1069 = vmatpush1.bf16.msra.mxu0 %v586
        %1070 = vmatprep.subr.bf16.mxu0 0
        %1071 = vmatpush2.bf16.msra.mxu0 0
        %1072 = vmatprep.subr.bf16.mxu0 0
        %1073 = vmatpush2.bf16.msra.mxu0 0
        %1074 = vmatprep.subr.bf16.mxu0 0
        %1075 = vmatpush2.bf16.msra.mxu0 0
        %1076 = vmatprep.subr.bf16.mxu0 0
        %1077 = vmatpush2.bf16.msra.mxu0 0
        %1078 = vmatprep.subr.bf16.mxu0 0
        %1079 = vmatpush2.bf16.msra.mxu0 0
        %1080 = vmatprep.subr.bf16.mxu0 0
        %1081 = vmatpush2.bf16.msra.mxu0 0
        %1082 = vmatprep.subr.bf16.mxu0 0
        %1083 = vmatpush2.bf16.msra.mxu0 0
        %1084 = vmatprep.subr.bf16.mxu0 0
        %1085 = vmatpush2.bf16.msra.mxu0 0
        %1086 = vmatprep.mubr.bf16.mxu0 0
        %1087 = vmatmul.mubr.bf16.gmra.mxu0 %v1052
        %v1088 = vpop.f32.mrf.mxu0
        %v1089 = vadd.f32 0.0, %v1088
        %v1090 = vpop.f32.mrf.mxu0
        %v1091 = vpop.f32.mrf.mxu0
        %v1092 = vadd.f32 0.0, %v1091
        %v1093 = vpop.f32.mrf.mxu0
        %1094 = vdwg.mxu0
        %v1095 = vadd.f32 %v1029, %v1089
        %v1096 = vadd.f32 %v1030, %v1092
        %1097 = vmatprep.subr.bf16.mxu0 0
        %1098 = vmatpush1.bf16.msra.mxu0 %v681
        %1099 = vmatprep.subr.bf16.mxu0 0
        %1100 = vmatpush1.bf16.msra.mxu0 %v680
        %1101 = vmatprep.subr.bf16.mxu0 0
        %1102 = vmatpush1.bf16.msra.mxu0 %v679
        %1103 = vmatprep.subr.bf16.mxu0 0
        %1104 = vmatpush1.bf16.msra.mxu0 %v678
        %1105 = vmatprep.subr.bf16.mxu0 0
        %1106 = vmatpush1.bf16.msra.mxu0 %v677
        %1107 = vmatprep.subr.bf16.mxu0 0
        %1108 = vmatpush1.bf16.msra.mxu0 %v676
        %1109 = vmatprep.subr.bf16.mxu0 0
        %1110 = vmatpush1.bf16.msra.mxu0 %v675
        %1111 = vmatprep.subr.bf16.mxu0 0
        %1112 = vmatpush1.bf16.msra.mxu0 %v674
        %1113 = vmatprep.subr.bf16.mxu0 0
        %1114 = vmatpush2.bf16.msra.mxu0 0
        %1115 = vmatprep.subr.bf16.mxu0 0
        %1116 = vmatpush2.bf16.msra.mxu0 0
        %1117 = vmatprep.subr.bf16.mxu0 0
        %1118 = vmatpush2.bf16.msra.mxu0 0
        %1119 = vmatprep.subr.bf16.mxu0 0
        %1120 = vmatpush2.bf16.msra.mxu0 0
        %1121 = vmatprep.subr.bf16.mxu0 0
        %1122 = vmatpush2.bf16.msra.mxu0 0
        %1123 = vmatprep.subr.bf16.mxu0 0
        %1124 = vmatpush2.bf16.msra.mxu0 0
        %1125 = vmatprep.subr.bf16.mxu0 0
        %1126 = vmatpush2.bf16.msra.mxu0 0
        %1127 = vmatprep.subr.bf16.mxu0 0
        %1128 = vmatpush2.bf16.msra.mxu0 0
        %1129 = vmatprep.mubr.bf16.mxu0 0
        %1130 = vmatmul.mubr.bf16.gmra.mxu0 %v1008
        %v1131 = vpop.f32.mrf.mxu0
        %v1132 = vadd.f32 0.0, %v1131
        %v1133 = vpop.f32.mrf.mxu0
        %v1134 = vpop.f32.mrf.mxu0
        %v1135 = vadd.f32 0.0, %v1134
        %v1136 = vpop.f32.mrf.mxu0
        %1137 = vdwg.mxu0
        %v1138 = vadd.f32 %v1095, %v1132
        %v1139 = vadd.f32 %v1096, %v1135
        %v1140 = vmul.f32 %v1043, 1.8
        %v1141 = vmul.f32 %v1044, 1.8
        %v1142 = vadd.f32 %v1033, %v1140
        %v1143 = vadd.f32 %v1034, %v1141
        %v1144 = vpack.c.bf16 %v1044, %v1043
        %v1146 = vunpack.c.l.b16 %v1144
        %v1147 = vunpack.c.h.b16 %v1144
        %v1148 = vpack.c.b16 %v1146, %v1146
        %v1149 = vpack.c.b16 %v1147, %v1147
        %s1152 = scalar_lea.vmem %s475, 24 [#allocation14]
        %1153 = vst [vmem:[%s1152] sm:$0xf] %v1148
        %1154 = vst [vmem:[%s1152 + $0x4] sm:$0xf] %v1149
        %v1155 = vsub.f32 0.0, %v1045
        %v1156 = vsub.f32 0.0, %v1046
        %v1157 = vadd.f32 %v1155, %v1138
        %v1158 = vadd.f32 %v1156, %v1139
        %v1159 = vmul.f32 %v1157, 0.1
        %v1160 = vmul.f32 %v1158, 0.1
        %v1161 = vadd.f32 %v1045, %v1159
        %v1162 = vadd.f32 %v1046, %v1160
        %v1163 = vmul.f32 %v1138, 0.2
        %v1164 = vmul.f32 %v1139, 0.2
        %v1165 = vsub.f32 %v1138, %v1163
        %v1166 = vsub.f32 %v1139, %v1164
        %v1167 = vmul.f32 %v1142, 1.4285714e-06
        %v1168 = vmul.f32 %v1143, 1.4285714e-06
        %v1169 = vsub.f32 %v1142, %v1167
        %v1170 = vsub.f32 %v1143, %v1168
        %v1171 = vsub.f32 %v1161, 1.0
        %v1172 = vsub.f32 %v1162, 1.0
        %v1173 = vadd.f32 %v1171, %v1169
        %v1174 = vadd.f32 %v1172, %v1170
        %vm1175 = vcmp.gt.f32.partialorder %v1173, 0.0
        %vm1176 = vcmp.gt.f32.partialorder %v1174, 0.0
        %v1177 = vsel %vm1175, 1, 0
        %v1178 = vsel %vm1176, 1, 0
        %v1179 = vcvt.s32.f32 %v1177
        %v1180 = vcvt.s32.f32 %v1178
        %v1181 = vsel %vm1175, 0.0, %v1161
        %v1182 = vsel %vm1176, 0.0, %v1162
        %s1183 = scalar_lea.vmem %s421, 64 [#allocation2]
        %v1184 = vld [vmem:[%s1183] sm:$0xff]
        %v1185 = vld [vmem:[%s1183 + $0x8] sm:$0xff]
        %v1186 = vpack.c.bf16 %v1185, %v1184
        %v1188 = vsel %vm594, %v1186, 0
        %1190 = vmatprep.subr.bf16.mxu0 0
        %1191 = vmatpush1.bf16.msra.mxu0 0
        %1192 = vmatprep.subr.bf16.mxu0 0
        %1193 = vmatpush1.bf16.msra.mxu0 0
        %1194 = vmatprep.subr.bf16.mxu0 0
        %1195 = vmatpush1.bf16.msra.mxu0 0
        %1196 = vmatprep.subr.bf16.mxu0 0
        %1197 = vmatpush1.bf16.msra.mxu0 0
        %1198 = vmatprep.subr.bf16.mxu0 0
        %1199 = vmatpush1.bf16.msra.mxu0 %v589
        %1200 = vmatprep.subr.bf16.mxu0 0
        %1201 = vmatpush1.bf16.msra.mxu0 %v588
        %1202 = vmatprep.subr.bf16.mxu0 0
        %1203 = vmatpush1.bf16.msra.mxu0 %v587
        %1204 = vmatprep.subr.bf16.mxu0 0
        %1205 = vmatpush1.bf16.msra.mxu0 %v586
        %1206 = vmatprep.subr.bf16.mxu0 0
        %1207 = vmatpush2.bf16.msra.mxu0 0
        %1208 = vmatprep.subr.bf16.mxu0 0
        %1209 = vmatpush2.bf16.msra.mxu0 0
        %1210 = vmatprep.subr.bf16.mxu0 0
        %1211 = vmatpush2.bf16.msra.mxu0 0
        %1212 = vmatprep.subr.bf16.mxu0 0
        %1213 = vmatpush2.bf16.msra.mxu0 0
        %1214 = vmatprep.subr.bf16.mxu0 0
        %1215 = vmatpush2.bf16.msra.mxu0 0
        %1216 = vmatprep.subr.bf16.mxu0 0
        %1217 = vmatpush2.bf16.msra.mxu0 0
        %1218 = vmatprep.subr.bf16.mxu0 0
        %1219 = vmatpush2.bf16.msra.mxu0 0
        %1220 = vmatprep.subr.bf16.mxu0 0
        %1221 = vmatpush2.bf16.msra.mxu0 0
        %1222 = vmatprep.mubr.bf16.mxu0 0
        %1223 = vmatmul.mubr.bf16.gmra.mxu0 %v1188
        %v1224 = vpop.f32.mrf.mxu0
        %v1225 = vadd.f32 0.0, %v1224
        %v1226 = vpop.f32.mrf.mxu0
        %v1227 = vpop.f32.mrf.mxu0
        %v1228 = vadd.f32 0.0, %v1227
        %v1229 = vpop.f32.mrf.mxu0
        %1230 = vdwg.mxu0
        %v1231 = vadd.f32 %v1165, %v1225
        %v1232 = vadd.f32 %v1166, %v1228
        %1233 = vmatprep.subr.bf16.mxu0 0
        %1234 = vmatpush1.bf16.msra.mxu0 %v681
        %1235 = vmatprep.subr.bf16.mxu0 0
        %1236 = vmatpush1.bf16.msra.mxu0 %v680
        %1237 = vmatprep.subr.bf16.mxu0 0
        %1238 = vmatpush1.bf16.msra.mxu0 %v679
        %1239 = vmatprep.subr.bf16.mxu0 0
        %1240 = vmatpush1.bf16.msra.mxu0 %v678
        %1241 = vmatprep.subr.bf16.mxu0 0
        %1242 = vmatpush1.bf16.msra.mxu0 %v677
        %1243 = vmatprep.subr.bf16.mxu0 0
        %1244 = vmatpush1.bf16.msra.mxu0 %v676
        %1245 = vmatprep.subr.bf16.mxu0 0
        %1246 = vmatpush1.bf16.msra.mxu0 %v675
        %1247 = vmatprep.subr.bf16.mxu0 0
        %1248 = vmatpush1.bf16.msra.mxu0 %v674
        %1249 = vmatprep.subr.bf16.mxu0 0
        %1250 = vmatpush2.bf16.msra.mxu0 0
        %1251 = vmatprep.subr.bf16.mxu0 0
        %1252 = vmatpush2.bf16.msra.mxu0 0
        %1253 = vmatprep.subr.bf16.mxu0 0
        %1254 = vmatpush2.bf16.msra.mxu0 0
        %1255 = vmatprep.subr.bf16.mxu0 0
        %1256 = vmatpush2.bf16.msra.mxu0 0
        %1257 = vmatprep.subr.bf16.mxu0 0
        %1258 = vmatpush2.bf16.msra.mxu0 0
        %1259 = vmatprep.subr.bf16.mxu0 0
        %1260 = vmatpush2.bf16.msra.mxu0 0
        %1261 = vmatprep.subr.bf16.mxu0 0
        %1262 = vmatpush2.bf16.msra.mxu0 0
        %1263 = vmatprep.subr.bf16.mxu0 0
        %1264 = vmatpush2.bf16.msra.mxu0 0
        %1265 = vmatprep.mubr.bf16.mxu0 0
        %1266 = vmatmul.mubr.bf16.gmra.mxu0 %v1144
        %v1267 = vpop.f32.mrf.mxu0
        %v1268 = vadd.f32 0.0, %v1267
        %v1269 = vpop.f32.mrf.mxu0
        %v1270 = vpop.f32.mrf.mxu0
        %v1271 = vadd.f32 0.0, %v1270
        %v1272 = vpop.f32.mrf.mxu0
        %1273 = vdwg.mxu0
        %v1274 = vadd.f32 %v1231, %v1268
        %v1275 = vadd.f32 %v1232, %v1271
        %v1276 = vmul.f32 %v1179, 1.8
        %v1277 = vmul.f32 %v1180, 1.8
        %v1278 = vadd.f32 %v1169, %v1276
        %v1279 = vadd.f32 %v1170, %v1277
        %v1280 = vpack.c.bf16 %v1180, %v1179
        %v1282 = vunpack.c.l.b16 %v1280
        %v1283 = vunpack.c.h.b16 %v1280
        %v1284 = vpack.c.b16 %v1282, %v1282
        %v1285 = vpack.c.b16 %v1283, %v1283
        %s1288 = scalar_lea.vmem %s475, 32 [#allocation14]
        %1289 = vst [vmem:[%s1288] sm:$0xf] %v1284
        %1290 = vst [vmem:[%s1288 + $0x4] sm:$0xf] %v1285
        %v1291 = vsub.f32 0.0, %v1181
        %v1292 = vsub.f32 0.0, %v1182
        %v1293 = vadd.f32 %v1291, %v1274
        %v1294 = vadd.f32 %v1292, %v1275
        %v1295 = vmul.f32 %v1293, 0.1
        %v1296 = vmul.f32 %v1294, 0.1
        %v1297 = vadd.f32 %v1181, %v1295
        %v1298 = vadd.f32 %v1182, %v1296
        %v1299 = vmul.f32 %v1274, 0.2
        %v1300 = vmul.f32 %v1275, 0.2
        %v1301 = vsub.f32 %v1274, %v1299
        %v1302 = vsub.f32 %v1275, %v1300
        %v1303 = vmul.f32 %v1278, 1.4285714e-06
        %v1304 = vmul.f32 %v1279, 1.4285714e-06
        %v1305 = vsub.f32 %v1278, %v1303
        %v1306 = vsub.f32 %v1279, %v1304
        %v1307 = vsub.f32 %v1297, 1.0
        %v1308 = vsub.f32 %v1298, 1.0
        %v1309 = vadd.f32 %v1307, %v1305
        %v1310 = vadd.f32 %v1308, %v1306
        %vm1311 = vcmp.gt.f32.partialorder %v1309, 0.0
        %vm1312 = vcmp.gt.f32.partialorder %v1310, 0.0
        %v1313 = vsel %vm1311, 1, 0
        %v1314 = vsel %vm1312, 1, 0
        %v1315 = vcvt.s32.f32 %v1313
        %v1316 = vcvt.s32.f32 %v1314
        %v1317 = vsel %vm1311, 0.0, %v1297
        %v1318 = vsel %vm1312, 0.0, %v1298
        %s1319 = scalar_lea.vmem %s421, 80 [#allocation2]
        %v1320 = vld [vmem:[%s1319] sm:$0xff]
        %v1321 = vld [vmem:[%s1319 + $0x8] sm:$0xff]
        %v1322 = vpack.c.bf16 %v1321, %v1320
        %v1324 = vsel %vm594, %v1322, 0
        %1326 = vmatprep.subr.bf16.mxu0 0
        %1327 = vmatpush1.bf16.msra.mxu0 0
        %1328 = vmatprep.subr.bf16.mxu0 0
        %1329 = vmatpush1.bf16.msra.mxu0 0
        %1330 = vmatprep.subr.bf16.mxu0 0
        %1331 = vmatpush1.bf16.msra.mxu0 0
        %1332 = vmatprep.subr.bf16.mxu0 0
        %1333 = vmatpush1.bf16.msra.mxu0 0
        %1334 = vmatprep.subr.bf16.mxu0 0
        %1335 = vmatpush1.bf16.msra.mxu0 %v589
        %1336 = vmatprep.subr.bf16.mxu0 0
        %1337 = vmatpush1.bf16.msra.mxu0 %v588
        %1338 = vmatprep.subr.bf16.mxu0 0
        %1339 = vmatpush1.bf16.msra.mxu0 %v587
        %1340 = vmatprep.subr.bf16.mxu0 0
        %1341 = vmatpush1.bf16.msra.mxu0 %v586
        %1342 = vmatprep.subr.bf16.mxu0 0
        %1343 = vmatpush2.bf16.msra.mxu0 0
        %1344 = vmatprep.subr.bf16.mxu0 0
        %1345 = vmatpush2.bf16.msra.mxu0 0
        %1346 = vmatprep.subr.bf16.mxu0 0
        %1347 = vmatpush2.bf16.msra.mxu0 0
        %1348 = vmatprep.subr.bf16.mxu0 0
        %1349 = vmatpush2.bf16.msra.mxu0 0
        %1350 = vmatprep.subr.bf16.mxu0 0
        %1351 = vmatpush2.bf16.msra.mxu0 0
        %1352 = vmatprep.subr.bf16.mxu0 0
        %1353 = vmatpush2.bf16.msra.mxu0 0
        %1354 = vmatprep.subr.bf16.mxu0 0
        %1355 = vmatpush2.bf16.msra.mxu0 0
        %1356 = vmatprep.subr.bf16.mxu0 0
        %1357 = vmatpush2.bf16.msra.mxu0 0
        %1358 = vmatprep.mubr.bf16.mxu0 0
        %1359 = vmatmul.mubr.bf16.gmra.mxu0 %v1324
        %v1360 = vpop.f32.mrf.mxu0
        %v1361 = vadd.f32 0.0, %v1360
        %v1362 = vpop.f32.mrf.mxu0
        %v1363 = vpop.f32.mrf.mxu0
        %v1364 = vadd.f32 0.0, %v1363
        %v1365 = vpop.f32.mrf.mxu0
        %1366 = vdwg.mxu0
        %v1367 = vadd.f32 %v1301, %v1361
        %v1368 = vadd.f32 %v1302, %v1364
        %1369 = vmatprep.subr.bf16.mxu0 0
        %1370 = vmatpush1.bf16.msra.mxu0 %v681
        %1371 = vmatprep.subr.bf16.mxu0 0
        %1372 = vmatpush1.bf16.msra.mxu0 %v680
        %1373 = vmatprep.subr.bf16.mxu0 0
        %1374 = vmatpush1.bf16.msra.mxu0 %v679
        %1375 = vmatprep.subr.bf16.mxu0 0
        %1376 = vmatpush1.bf16.msra.mxu0 %v678
        %1377 = vmatprep.subr.bf16.mxu0 0
        %1378 = vmatpush1.bf16.msra.mxu0 %v677
        %1379 = vmatprep.subr.bf16.mxu0 0
        %1380 = vmatpush1.bf16.msra.mxu0 %v676
        %1381 = vmatprep.subr.bf16.mxu0 0
        %1382 = vmatpush1.bf16.msra.mxu0 %v675
        %1383 = vmatprep.subr.bf16.mxu0 0
        %1384 = vmatpush1.bf16.msra.mxu0 %v674
        %1385 = vmatprep.subr.bf16.mxu0 0
        %1386 = vmatpush2.bf16.msra.mxu0 0
        %1387 = vmatprep.subr.bf16.mxu0 0
        %1388 = vmatpush2.bf16.msra.mxu0 0
        %1389 = vmatprep.subr.bf16.mxu0 0
        %1390 = vmatpush2.bf16.msra.mxu0 0
        %1391 = vmatprep.subr.bf16.mxu0 0
        %1392 = vmatpush2.bf16.msra.mxu0 0
        %1393 = vmatprep.subr.bf16.mxu0 0
        %1394 = vmatpush2.bf16.msra.mxu0 0
        %1395 = vmatprep.subr.bf16.mxu0 0
        %1396 = vmatpush2.bf16.msra.mxu0 0
        %1397 = vmatprep.subr.bf16.mxu0 0
        %1398 = vmatpush2.bf16.msra.mxu0 0
        %1399 = vmatprep.subr.bf16.mxu0 0
        %1400 = vmatpush2.bf16.msra.mxu0 0
        %1401 = vmatprep.mubr.bf16.mxu0 0
        %1402 = vmatmul.mubr.bf16.gmra.mxu0 %v1280
        %v1403 = vpop.f32.mrf.mxu0
        %v1404 = vadd.f32 0.0, %v1403
        %v1405 = vpop.f32.mrf.mxu0
        %v1406 = vpop.f32.mrf.mxu0
        %v1407 = vadd.f32 0.0, %v1406
        %v1408 = vpop.f32.mrf.mxu0
        %1409 = vdwg.mxu0
        %v1410 = vadd.f32 %v1367, %v1404
        %v1411 = vadd.f32 %v1368, %v1407
        %v1412 = vmul.f32 %v1315, 1.8
        %v1413 = vmul.f32 %v1316, 1.8
        %v1414 = vadd.f32 %v1305, %v1412
        %v1415 = vadd.f32 %v1306, %v1413
        %v1416 = vpack.c.bf16 %v1316, %v1315
        %v1418 = vunpack.c.l.b16 %v1416
        %v1419 = vunpack.c.h.b16 %v1416
        %v1420 = vpack.c.b16 %v1418, %v1418
        %v1421 = vpack.c.b16 %v1419, %v1419
        %s1424 = scalar_lea.vmem %s475, 40 [#allocation14]
        %1425 = vst [vmem:[%s1424] sm:$0xf] %v1420
        %1426 = vst [vmem:[%s1424 + $0x4] sm:$0xf] %v1421
        %v1427 = vsub.f32 0.0, %v1317
        %v1428 = vsub.f32 0.0, %v1318
        %v1429 = vadd.f32 %v1427, %v1410
        %v1430 = vadd.f32 %v1428, %v1411
        %v1431 = vmul.f32 %v1429, 0.1
        %v1432 = vmul.f32 %v1430, 0.1
        %v1433 = vadd.f32 %v1317, %v1431
        %v1434 = vadd.f32 %v1318, %v1432
        %v1435 = vmul.f32 %v1410, 0.2
        %v1436 = vmul.f32 %v1411, 0.2
        %v1437 = vsub.f32 %v1410, %v1435
        %v1438 = vsub.f32 %v1411, %v1436
        %v1439 = vmul.f32 %v1414, 1.4285714e-06
        %v1440 = vmul.f32 %v1415, 1.4285714e-06
        %v1441 = vsub.f32 %v1414, %v1439
        %v1442 = vsub.f32 %v1415, %v1440
        %v1443 = vsub.f32 %v1433, 1.0
        %v1444 = vsub.f32 %v1434, 1.0
        %v1445 = vadd.f32 %v1443, %v1441
        %v1446 = vadd.f32 %v1444, %v1442
        %vm1447 = vcmp.gt.f32.partialorder %v1445, 0.0
        %vm1448 = vcmp.gt.f32.partialorder %v1446, 0.0
        %v1449 = vsel %vm1447, 1, 0
        %v1450 = vsel %vm1448, 1, 0
        %v1451 = vcvt.s32.f32 %v1449
        %v1452 = vcvt.s32.f32 %v1450
        %v1453 = vsel %vm1447, 0.0, %v1433
        %v1454 = vsel %vm1448, 0.0, %v1434
        %s1455 = scalar_lea.vmem %s421, 96 [#allocation2]
        %v1456 = vld [vmem:[%s1455] sm:$0xff]
        %v1457 = vld [vmem:[%s1455 + $0x8] sm:$0xff]
        %v1458 = vpack.c.bf16 %v1457, %v1456
        %v1460 = vsel %vm594, %v1458, 0
        %1462 = vmatprep.subr.bf16.mxu0 0
        %1463 = vmatpush1.bf16.msra.mxu0 0
        %1464 = vmatprep.subr.bf16.mxu0 0
        %1465 = vmatpush1.bf16.msra.mxu0 0
        %1466 = vmatprep.subr.bf16.mxu0 0
        %1467 = vmatpush1.bf16.msra.mxu0 0
        %1468 = vmatprep.subr.bf16.mxu0 0
        %1469 = vmatpush1.bf16.msra.mxu0 0
        %1470 = vmatprep.subr.bf16.mxu0 0
        %1471 = vmatpush1.bf16.msra.mxu0 %v589
        %1472 = vmatprep.subr.bf16.mxu0 0
        %1473 = vmatpush1.bf16.msra.mxu0 %v588
        %1474 = vmatprep.subr.bf16.mxu0 0
        %1475 = vmatpush1.bf16.msra.mxu0 %v587
        %1476 = vmatprep.subr.bf16.mxu0 0
        %1477 = vmatpush1.bf16.msra.mxu0 %v586
        %1478 = vmatprep.subr.bf16.mxu0 0
        %1479 = vmatpush2.bf16.msra.mxu0 0
        %1480 = vmatprep.subr.bf16.mxu0 0
        %1481 = vmatpush2.bf16.msra.mxu0 0
        %1482 = vmatprep.subr.bf16.mxu0 0
        %1483 = vmatpush2.bf16.msra.mxu0 0
        %1484 = vmatprep.subr.bf16.mxu0 0
        %1485 = vmatpush2.bf16.msra.mxu0 0
        %1486 = vmatprep.subr.bf16.mxu0 0
        %1487 = vmatpush2.bf16.msra.mxu0 0
        %1488 = vmatprep.subr.bf16.mxu0 0
        %1489 = vmatpush2.bf16.msra.mxu0 0
        %1490 = vmatprep.subr.bf16.mxu0 0
        %1491 = vmatpush2.bf16.msra.mxu0 0
        %1492 = vmatprep.subr.bf16.mxu0 0
        %1493 = vmatpush2.bf16.msra.mxu0 0
        %1494 = vmatprep.mubr.bf16.mxu0 0
        %1495 = vmatmul.mubr.bf16.gmra.mxu0 %v1460
        %v1496 = vpop.f32.mrf.mxu0
        %v1497 = vadd.f32 0.0, %v1496
        %v1498 = vpop.f32.mrf.mxu0
        %v1499 = vpop.f32.mrf.mxu0
        %v1500 = vadd.f32 0.0, %v1499
        %v1501 = vpop.f32.mrf.mxu0
        %1502 = vdwg.mxu0
        %v1503 = vadd.f32 %v1437, %v1497
        %v1504 = vadd.f32 %v1438, %v1500
        %1505 = vmatprep.subr.bf16.mxu0 0
        %1506 = vmatpush1.bf16.msra.mxu0 %v681
        %1507 = vmatprep.subr.bf16.mxu0 0
        %1508 = vmatpush1.bf16.msra.mxu0 %v680
        %1509 = vmatprep.subr.bf16.mxu0 0
        %1510 = vmatpush1.bf16.msra.mxu0 %v679
        %1511 = vmatprep.subr.bf16.mxu0 0
        %1512 = vmatpush1.bf16.msra.mxu0 %v678
        %1513 = vmatprep.subr.bf16.mxu0 0
        %1514 = vmatpush1.bf16.msra.mxu0 %v677
        %1515 = vmatprep.subr.bf16.mxu0 0
        %1516 = vmatpush1.bf16.msra.mxu0 %v676
        %1517 = vmatprep.subr.bf16.mxu0 0
        %1518 = vmatpush1.bf16.msra.mxu0 %v675
        %1519 = vmatprep.subr.bf16.mxu0 0
        %1520 = vmatpush1.bf16.msra.mxu0 %v674
        %1521 = vmatprep.subr.bf16.mxu0 0
        %1522 = vmatpush2.bf16.msra.mxu0 0
        %1523 = vmatprep.subr.bf16.mxu0 0
        %1524 = vmatpush2.bf16.msra.mxu0 0
        %1525 = vmatprep.subr.bf16.mxu0 0
        %1526 = vmatpush2.bf16.msra.mxu0 0
        %1527 = vmatprep.subr.bf16.mxu0 0
        %1528 = vmatpush2.bf16.msra.mxu0 0
        %1529 = vmatprep.subr.bf16.mxu0 0
        %1530 = vmatpush2.bf16.msra.mxu0 0
        %1531 = vmatprep.subr.bf16.mxu0 0
        %1532 = vmatpush2.bf16.msra.mxu0 0
        %1533 = vmatprep.subr.bf16.mxu0 0
        %1534 = vmatpush2.bf16.msra.mxu0 0
        %1535 = vmatprep.subr.bf16.mxu0 0
        %1536 = vmatpush2.bf16.msra.mxu0 0
        %1537 = vmatprep.mubr.bf16.mxu0 0
        %1538 = vmatmul.mubr.bf16.gmra.mxu0 %v1416
        %v1539 = vpop.f32.mrf.mxu0
        %v1540 = vadd.f32 0.0, %v1539
        %v1541 = vpop.f32.mrf.mxu0
        %v1542 = vpop.f32.mrf.mxu0
        %v1543 = vadd.f32 0.0, %v1542
        %v1544 = vpop.f32.mrf.mxu0
        %1545 = vdwg.mxu0
        %v1546 = vadd.f32 %v1503, %v1540
        %v1547 = vadd.f32 %v1504, %v1543
        %v1548 = vmul.f32 %v1451, 1.8
        %v1549 = vmul.f32 %v1452, 1.8
        %v1550 = vadd.f32 %v1441, %v1548
        %v1551 = vadd.f32 %v1442, %v1549
        %v1552 = vpack.c.bf16 %v1452, %v1451
        %v1554 = vunpack.c.l.b16 %v1552
        %v1555 = vunpack.c.h.b16 %v1552
        %v1556 = vpack.c.b16 %v1554, %v1554
        %v1557 = vpack.c.b16 %v1555, %v1555
        %s1560 = scalar_lea.vmem %s475, 48 [#allocation14]
        %1561 = vst [vmem:[%s1560] sm:$0xf] %v1556
        %1562 = vst [vmem:[%s1560 + $0x4] sm:$0xf] %v1557
        %v1563 = vsub.f32 0.0, %v1453
        %v1564 = vsub.f32 0.0, %v1454
        %v1565 = vadd.f32 %v1563, %v1546
        %v1566 = vadd.f32 %v1564, %v1547
        %v1567 = vmul.f32 %v1565, 0.1
        %v1568 = vmul.f32 %v1566, 0.1
        %v1569 = vadd.f32 %v1453, %v1567
        %v1570 = vadd.f32 %v1454, %v1568
        %v1571 = vmul.f32 %v1546, 0.2
        %v1572 = vmul.f32 %v1547, 0.2
        %v1573 = vsub.f32 %v1546, %v1571
        %v1574 = vsub.f32 %v1547, %v1572
        %v1575 = vmul.f32 %v1550, 1.4285714e-06
        %v1576 = vmul.f32 %v1551, 1.4285714e-06
        %v1577 = vsub.f32 %v1550, %v1575
        %v1578 = vsub.f32 %v1551, %v1576
        %v1579 = vsub.f32 %v1569, 1.0
        %v1580 = vsub.f32 %v1570, 1.0
        %v1581 = vadd.f32 %v1579, %v1577
        %v1582 = vadd.f32 %v1580, %v1578
        %vm1583 = vcmp.gt.f32.partialorder %v1581, 0.0
        %vm1584 = vcmp.gt.f32.partialorder %v1582, 0.0
        %v1585 = vsel %vm1583, 1, 0
        %v1586 = vsel %vm1584, 1, 0
        %v1587 = vcvt.s32.f32 %v1585
        %v1588 = vcvt.s32.f32 %v1586
        %v1589 = vsel %vm1583, 0.0, %v1569
        %v1590 = vsel %vm1584, 0.0, %v1570
        %s1591 = scalar_lea.vmem %s421, 112 [#allocation2]
        %v1592 = vld [vmem:[%s1591] sm:$0xff]
        %v1593 = vld [vmem:[%s1591 + $0x8] sm:$0xff]
        %v1594 = vpack.c.bf16 %v1593, %v1592
        %v1596 = vsel %vm594, %v1594, 0
        %1598 = vmatprep.subr.bf16.mxu0 0
        %1599 = vmatpush1.bf16.msra.mxu0 0
        %1600 = vmatprep.subr.bf16.mxu0 0
        %1601 = vmatpush1.bf16.msra.mxu0 0
        %1602 = vmatprep.subr.bf16.mxu0 0
        %1603 = vmatpush1.bf16.msra.mxu0 0
        %1604 = vmatprep.subr.bf16.mxu0 0
        %1605 = vmatpush1.bf16.msra.mxu0 0
        %1606 = vmatprep.subr.bf16.mxu0 0
        %1607 = vmatpush1.bf16.msra.mxu0 %v589
        %1608 = vmatprep.subr.bf16.mxu0 0
        %1609 = vmatpush1.bf16.msra.mxu0 %v588
        %1610 = vmatprep.subr.bf16.mxu0 0
        %1611 = vmatpush1.bf16.msra.mxu0 %v587
        %1612 = vmatprep.subr.bf16.mxu0 0
        %1613 = vmatpush1.bf16.msra.mxu0 %v586
        %1614 = vmatprep.subr.bf16.mxu0 0
        %1615 = vmatpush2.bf16.msra.mxu0 0
        %1616 = vmatprep.subr.bf16.mxu0 0
        %1617 = vmatpush2.bf16.msra.mxu0 0
        %1618 = vmatprep.subr.bf16.mxu0 0
        %1619 = vmatpush2.bf16.msra.mxu0 0
        %1620 = vmatprep.subr.bf16.mxu0 0
        %1621 = vmatpush2.bf16.msra.mxu0 0
        %1622 = vmatprep.subr.bf16.mxu0 0
        %1623 = vmatpush2.bf16.msra.mxu0 0
        %1624 = vmatprep.subr.bf16.mxu0 0
        %1625 = vmatpush2.bf16.msra.mxu0 0
        %1626 = vmatprep.subr.bf16.mxu0 0
        %1627 = vmatpush2.bf16.msra.mxu0 0
        %1628 = vmatprep.subr.bf16.mxu0 0
        %1629 = vmatpush2.bf16.msra.mxu0 0
        %1630 = vmatprep.mubr.bf16.mxu0 0
        %1631 = vmatmul.mubr.bf16.gmra.mxu0 %v1596
        %v1632 = vpop.f32.mrf.mxu0
        %v1633 = vadd.f32 0.0, %v1632
        %v1634 = vpop.f32.mrf.mxu0
        %v1635 = vpop.f32.mrf.mxu0
        %v1636 = vadd.f32 0.0, %v1635
        %v1637 = vpop.f32.mrf.mxu0
        %1638 = vdwg.mxu0
        %v1639 = vadd.f32 %v1573, %v1633
        %v1640 = vadd.f32 %v1574, %v1636
        %1641 = vmatprep.subr.bf16.mxu0 0
        %1642 = vmatpush1.bf16.msra.mxu0 %v681
        %1643 = vmatprep.subr.bf16.mxu0 0
        %1644 = vmatpush1.bf16.msra.mxu0 %v680
        %1645 = vmatprep.subr.bf16.mxu0 0
        %1646 = vmatpush1.bf16.msra.mxu0 %v679
        %1647 = vmatprep.subr.bf16.mxu0 0
        %1648 = vmatpush1.bf16.msra.mxu0 %v678
        %1649 = vmatprep.subr.bf16.mxu0 0
        %1650 = vmatpush1.bf16.msra.mxu0 %v677
        %1651 = vmatprep.subr.bf16.mxu0 0
        %1652 = vmatpush1.bf16.msra.mxu0 %v676
        %1653 = vmatprep.subr.bf16.mxu0 0
        %1654 = vmatpush1.bf16.msra.mxu0 %v675
        %1655 = vmatprep.subr.bf16.mxu0 0
        %1656 = vmatpush1.bf16.msra.mxu0 %v674
        %1657 = vmatprep.subr.bf16.mxu0 0
        %1658 = vmatpush2.bf16.msra.mxu0 0
        %1659 = vmatprep.subr.bf16.mxu0 0
        %1660 = vmatpush2.bf16.msra.mxu0 0
        %1661 = vmatprep.subr.bf16.mxu0 0
        %1662 = vmatpush2.bf16.msra.mxu0 0
        %1663 = vmatprep.subr.bf16.mxu0 0
        %1664 = vmatpush2.bf16.msra.mxu0 0
        %1665 = vmatprep.subr.bf16.mxu0 0
        %1666 = vmatpush2.bf16.msra.mxu0 0
        %1667 = vmatprep.subr.bf16.mxu0 0
        %1668 = vmatpush2.bf16.msra.mxu0 0
        %1669 = vmatprep.subr.bf16.mxu0 0
        %1670 = vmatpush2.bf16.msra.mxu0 0
        %1671 = vmatprep.subr.bf16.mxu0 0
        %1672 = vmatpush2.bf16.msra.mxu0 0
        %1673 = vmatprep.mubr.bf16.mxu0 0
        %1674 = vmatmul.mubr.bf16.gmra.mxu0 %v1552
        %v1675 = vpop.f32.mrf.mxu0
        %v1676 = vadd.f32 0.0, %v1675
        %v1677 = vpop.f32.mrf.mxu0
        %v1678 = vpop.f32.mrf.mxu0
        %v1679 = vadd.f32 0.0, %v1678
        %v1680 = vpop.f32.mrf.mxu0
        %1681 = vdwg.mxu0
        %v1682 = vadd.f32 %v1639, %v1676
        %v1683 = vadd.f32 %v1640, %v1679
        %v1684 = vmul.f32 %v1587, 1.8
        %v1685 = vmul.f32 %v1588, 1.8
        %v1686 = vadd.f32 %v1577, %v1684
        %v1687 = vadd.f32 %v1578, %v1685
        %v1688 = vpack.c.bf16 %v1588, %v1587
        %v1690 = vunpack.c.l.b16 %v1688
        %v1691 = vunpack.c.h.b16 %v1688
        %v1692 = vpack.c.b16 %v1690, %v1690
        %v1693 = vpack.c.b16 %v1691, %v1691
        %s1696 = scalar_lea.vmem %s475, 56 [#allocation14]
        %1697 = vst [vmem:[%s1696] sm:$0xf] %v1692
        %1698 = vst [vmem:[%s1696 + $0x4] sm:$0xf] %v1693
        %v1699 = vsub.f32 0.0, %v1589
        %v1700 = vsub.f32 0.0, %v1590
        %v1701 = vadd.f32 %v1699, %v1682
        %v1702 = vadd.f32 %v1700, %v1683
        %v1703 = vmul.f32 %v1701, 0.1
        %v1704 = vmul.f32 %v1702, 0.1
        %v1705 = vadd.f32 %v1589, %v1703
        %v1706 = vadd.f32 %v1590, %v1704
        %v1707 = vmul.f32 %v1682, 0.2
        %v1708 = vmul.f32 %v1683, 0.2
        %v1709 = vsub.f32 %v1682, %v1707
        %v1710 = vsub.f32 %v1683, %v1708
        %v1711 = vmul.f32 %v1686, 1.4285714e-06
        %v1712 = vmul.f32 %v1687, 1.4285714e-06
        %v1713 = vsub.f32 %v1686, %v1711
        %v1714 = vsub.f32 %v1687, %v1712
        %v1715 = vsub.f32 %v1705, 1.0
        %v1716 = vsub.f32 %v1706, 1.0
        %v1717 = vadd.f32 %v1715, %v1713
        %v1718 = vadd.f32 %v1716, %v1714
        %vm1719 = vcmp.gt.f32.partialorder %v1717, 0.0
        %vm1720 = vcmp.gt.f32.partialorder %v1718, 0.0
        %v1721 = vsel %vm1719, 1, 0
        %v1722 = vsel %vm1720, 1, 0
        %v1723 = vcvt.s32.f32 %v1721
        %v1724 = vcvt.s32.f32 %v1722
        %v1725 = vsel %vm1719, 0.0, %v1705
        %v1726 = vsel %vm1720, 0.0, %v1706
        %s1727 = scalar_lea.vmem %s421, 128 [#allocation2]
        %v1728 = vld [vmem:[%s1727] sm:$0xff]
        %v1729 = vld [vmem:[%s1727 + $0x8] sm:$0xff]
        %v1730 = vpack.c.bf16 %v1729, %v1728
        %v1732 = vsel %vm594, %v1730, 0
        %1734 = vmatprep.subr.bf16.mxu0 0
        %1735 = vmatpush1.bf16.msra.mxu0 0
        %1736 = vmatprep.subr.bf16.mxu0 0
        %1737 = vmatpush1.bf16.msra.mxu0 0
        %1738 = vmatprep.subr.bf16.mxu0 0
        %1739 = vmatpush1.bf16.msra.mxu0 0
        %1740 = vmatprep.subr.bf16.mxu0 0
        %1741 = vmatpush1.bf16.msra.mxu0 0
        %1742 = vmatprep.subr.bf16.mxu0 0
        %1743 = vmatpush1.bf16.msra.mxu0 %v589
        %1744 = vmatprep.subr.bf16.mxu0 0
        %1745 = vmatpush1.bf16.msra.mxu0 %v588
        %1746 = vmatprep.subr.bf16.mxu0 0
        %1747 = vmatpush1.bf16.msra.mxu0 %v587
        %1748 = vmatprep.subr.bf16.mxu0 0
        %1749 = vmatpush1.bf16.msra.mxu0 %v586
        %1750 = vmatprep.subr.bf16.mxu0 0
        %1751 = vmatpush2.bf16.msra.mxu0 0
        %1752 = vmatprep.subr.bf16.mxu0 0
        %1753 = vmatpush2.bf16.msra.mxu0 0
        %1754 = vmatprep.subr.bf16.mxu0 0
        %1755 = vmatpush2.bf16.msra.mxu0 0
        %1756 = vmatprep.subr.bf16.mxu0 0
        %1757 = vmatpush2.bf16.msra.mxu0 0
        %1758 = vmatprep.subr.bf16.mxu0 0
        %1759 = vmatpush2.bf16.msra.mxu0 0
        %1760 = vmatprep.subr.bf16.mxu0 0
        %1761 = vmatpush2.bf16.msra.mxu0 0
        %1762 = vmatprep.subr.bf16.mxu0 0
        %1763 = vmatpush2.bf16.msra.mxu0 0
        %1764 = vmatprep.subr.bf16.mxu0 0
        %1765 = vmatpush2.bf16.msra.mxu0 0
        %1766 = vmatprep.mubr.bf16.mxu0 0
        %1767 = vmatmul.mubr.bf16.gmra.mxu0 %v1732
        %v1768 = vpop.f32.mrf.mxu0
        %v1769 = vadd.f32 0.0, %v1768
        %v1770 = vpop.f32.mrf.mxu0
        %v1771 = vpop.f32.mrf.mxu0
        %v1772 = vadd.f32 0.0, %v1771
        %v1773 = vpop.f32.mrf.mxu0
        %1774 = vdwg.mxu0
        %v1775 = vadd.f32 %v1709, %v1769
        %v1776 = vadd.f32 %v1710, %v1772
        %1777 = vmatprep.subr.bf16.mxu0 0
        %1778 = vmatpush1.bf16.msra.mxu0 %v681
        %1779 = vmatprep.subr.bf16.mxu0 0
        %1780 = vmatpush1.bf16.msra.mxu0 %v680
        %1781 = vmatprep.subr.bf16.mxu0 0
        %1782 = vmatpush1.bf16.msra.mxu0 %v679
        %1783 = vmatprep.subr.bf16.mxu0 0
        %1784 = vmatpush1.bf16.msra.mxu0 %v678
        %1785 = vmatprep.subr.bf16.mxu0 0
        %1786 = vmatpush1.bf16.msra.mxu0 %v677
        %1787 = vmatprep.subr.bf16.mxu0 0
        %1788 = vmatpush1.bf16.msra.mxu0 %v676
        %1789 = vmatprep.subr.bf16.mxu0 0
        %1790 = vmatpush1.bf16.msra.mxu0 %v675
        %1791 = vmatprep.subr.bf16.mxu0 0
        %1792 = vmatpush1.bf16.msra.mxu0 %v674
        %1793 = vmatprep.subr.bf16.mxu0 0
        %1794 = vmatpush2.bf16.msra.mxu0 0
        %1795 = vmatprep.subr.bf16.mxu0 0
        %1796 = vmatpush2.bf16.msra.mxu0 0
        %1797 = vmatprep.subr.bf16.mxu0 0
        %1798 = vmatpush2.bf16.msra.mxu0 0
        %1799 = vmatprep.subr.bf16.mxu0 0
        %1800 = vmatpush2.bf16.msra.mxu0 0
        %1801 = vmatprep.subr.bf16.mxu0 0
        %1802 = vmatpush2.bf16.msra.mxu0 0
        %1803 = vmatprep.subr.bf16.mxu0 0
        %1804 = vmatpush2.bf16.msra.mxu0 0
        %1805 = vmatprep.subr.bf16.mxu0 0
        %1806 = vmatpush2.bf16.msra.mxu0 0
        %1807 = vmatprep.subr.bf16.mxu0 0
        %1808 = vmatpush2.bf16.msra.mxu0 0
        %1809 = vmatprep.mubr.bf16.mxu0 0
        %1810 = vmatmul.mubr.bf16.gmra.mxu0 %v1688
        %v1811 = vpop.f32.mrf.mxu0
        %v1812 = vadd.f32 0.0, %v1811
        %v1813 = vpop.f32.mrf.mxu0
        %v1814 = vpop.f32.mrf.mxu0
        %v1815 = vadd.f32 0.0, %v1814
        %v1816 = vpop.f32.mrf.mxu0
        %1817 = vdwg.mxu0
        %v1818 = vadd.f32 %v1775, %v1812
        %v1819 = vadd.f32 %v1776, %v1815
        %v1820 = vmul.f32 %v1723, 1.8
        %v1821 = vmul.f32 %v1724, 1.8
        %v1822 = vadd.f32 %v1713, %v1820
        %v1823 = vadd.f32 %v1714, %v1821
        %v1824 = vpack.c.bf16 %v1724, %v1723
        %v1826 = vunpack.c.l.b16 %v1824
        %v1827 = vunpack.c.h.b16 %v1824
        %v1828 = vpack.c.b16 %v1826, %v1826
        %v1829 = vpack.c.b16 %v1827, %v1827
        %s1832 = scalar_lea.vmem %s475, 64 [#allocation14]
        %1833 = vst [vmem:[%s1832] sm:$0xf] %v1828
        %1834 = vst [vmem:[%s1832 + $0x4] sm:$0xf] %v1829
        %v1835 = vsub.f32 0.0, %v1725
        %v1836 = vsub.f32 0.0, %v1726
        %v1837 = vadd.f32 %v1835, %v1818
        %v1838 = vadd.f32 %v1836, %v1819
        %v1839 = vmul.f32 %v1837, 0.1
        %v1840 = vmul.f32 %v1838, 0.1
        %v1841 = vadd.f32 %v1725, %v1839
        %v1842 = vadd.f32 %v1726, %v1840
        %v1843 = vmul.f32 %v1818, 0.2
        %v1844 = vmul.f32 %v1819, 0.2
        %v1845 = vsub.f32 %v1818, %v1843
        %v1846 = vsub.f32 %v1819, %v1844
        %v1847 = vmul.f32 %v1822, 1.4285714e-06
        %v1848 = vmul.f32 %v1823, 1.4285714e-06
        %v1849 = vsub.f32 %v1822, %v1847
        %v1850 = vsub.f32 %v1823, %v1848
        %v1851 = vsub.f32 %v1841, 1.0
        %v1852 = vsub.f32 %v1842, 1.0
        %v1853 = vadd.f32 %v1851, %v1849
        %v1854 = vadd.f32 %v1852, %v1850
        %vm1855 = vcmp.gt.f32.partialorder %v1853, 0.0
        %vm1856 = vcmp.gt.f32.partialorder %v1854, 0.0
        %v1857 = vsel %vm1855, 1, 0
        %v1858 = vsel %vm1856, 1, 0
        %v1859 = vcvt.s32.f32 %v1857
        %v1860 = vcvt.s32.f32 %v1858
        %v1861 = vsel %vm1855, 0.0, %v1841
        %v1862 = vsel %vm1856, 0.0, %v1842
        %s1863 = scalar_lea.vmem %s421, 144 [#allocation2]
        %v1864 = vld [vmem:[%s1863] sm:$0xff]
        %v1865 = vld [vmem:[%s1863 + $0x8] sm:$0xff]
        %v1866 = vpack.c.bf16 %v1865, %v1864
        %v1868 = vsel %vm594, %v1866, 0
        %1870 = vmatprep.subr.bf16.mxu0 0
        %1871 = vmatpush1.bf16.msra.mxu0 0
        %1872 = vmatprep.subr.bf16.mxu0 0
        %1873 = vmatpush1.bf16.msra.mxu0 0
        %1874 = vmatprep.subr.bf16.mxu0 0
        %1875 = vmatpush1.bf16.msra.mxu0 0
        %1876 = vmatprep.subr.bf16.mxu0 0
        %1877 = vmatpush1.bf16.msra.mxu0 0
        %1878 = vmatprep.subr.bf16.mxu0 0
        %1879 = vmatpush1.bf16.msra.mxu0 %v589
        %1880 = vmatprep.subr.bf16.mxu0 0
        %1881 = vmatpush1.bf16.msra.mxu0 %v588
        %1882 = vmatprep.subr.bf16.mxu0 0
        %1883 = vmatpush1.bf16.msra.mxu0 %v587
        %1884 = vmatprep.subr.bf16.mxu0 0
        %1885 = vmatpush1.bf16.msra.mxu0 %v586
        %1886 = vmatprep.subr.bf16.mxu0 0
        %1887 = vmatpush2.bf16.msra.mxu0 0
        %1888 = vmatprep.subr.bf16.mxu0 0
        %1889 = vmatpush2.bf16.msra.mxu0 0
        %1890 = vmatprep.subr.bf16.mxu0 0
        %1891 = vmatpush2.bf16.msra.mxu0 0
        %1892 = vmatprep.subr.bf16.mxu0 0
        %1893 = vmatpush2.bf16.msra.mxu0 0
        %1894 = vmatprep.subr.bf16.mxu0 0
        %1895 = vmatpush2.bf16.msra.mxu0 0
        %1896 = vmatprep.subr.bf16.mxu0 0
        %1897 = vmatpush2.bf16.msra.mxu0 0
        %1898 = vmatprep.subr.bf16.mxu0 0
        %1899 = vmatpush2.bf16.msra.mxu0 0
        %1900 = vmatprep.subr.bf16.mxu0 0
        %1901 = vmatpush2.bf16.msra.mxu0 0
        %1902 = vmatprep.mubr.bf16.mxu0 0
        %1903 = vmatmul.mubr.bf16.gmra.mxu0 %v1868
        %v1904 = vpop.f32.mrf.mxu0
        %v1905 = vadd.f32 0.0, %v1904
        %v1906 = vpop.f32.mrf.mxu0
        %v1907 = vpop.f32.mrf.mxu0
        %v1908 = vadd.f32 0.0, %v1907
        %v1909 = vpop.f32.mrf.mxu0
        %1910 = vdwg.mxu0
        %v1911 = vadd.f32 %v1845, %v1905
        %v1912 = vadd.f32 %v1846, %v1908
        %1913 = vmatprep.subr.bf16.mxu0 0
        %1914 = vmatpush1.bf16.msra.mxu0 %v681
        %1915 = vmatprep.subr.bf16.mxu0 0
        %1916 = vmatpush1.bf16.msra.mxu0 %v680
        %1917 = vmatprep.subr.bf16.mxu0 0
        %1918 = vmatpush1.bf16.msra.mxu0 %v679
        %1919 = vmatprep.subr.bf16.mxu0 0
        %1920 = vmatpush1.bf16.msra.mxu0 %v678
        %1921 = vmatprep.subr.bf16.mxu0 0
        %1922 = vmatpush1.bf16.msra.mxu0 %v677
        %1923 = vmatprep.subr.bf16.mxu0 0
        %1924 = vmatpush1.bf16.msra.mxu0 %v676
        %1925 = vmatprep.subr.bf16.mxu0 0
        %1926 = vmatpush1.bf16.msra.mxu0 %v675
        %1927 = vmatprep.subr.bf16.mxu0 0
        %1928 = vmatpush1.bf16.msra.mxu0 %v674
        %1929 = vmatprep.subr.bf16.mxu0 0
        %1930 = vmatpush2.bf16.msra.mxu0 0
        %1931 = vmatprep.subr.bf16.mxu0 0
        %1932 = vmatpush2.bf16.msra.mxu0 0
        %1933 = vmatprep.subr.bf16.mxu0 0
        %1934 = vmatpush2.bf16.msra.mxu0 0
        %1935 = vmatprep.subr.bf16.mxu0 0
        %1936 = vmatpush2.bf16.msra.mxu0 0
        %1937 = vmatprep.subr.bf16.mxu0 0
        %1938 = vmatpush2.bf16.msra.mxu0 0
        %1939 = vmatprep.subr.bf16.mxu0 0
        %1940 = vmatpush2.bf16.msra.mxu0 0
        %1941 = vmatprep.subr.bf16.mxu0 0
        %1942 = vmatpush2.bf16.msra.mxu0 0
        %1943 = vmatprep.subr.bf16.mxu0 0
        %1944 = vmatpush2.bf16.msra.mxu0 0
        %1945 = vmatprep.mubr.bf16.mxu0 0
        %1946 = vmatmul.mubr.bf16.gmra.mxu0 %v1824
        %v1947 = vpop.f32.mrf.mxu0
        %v1948 = vadd.f32 0.0, %v1947
        %v1949 = vpop.f32.mrf.mxu0
        %v1950 = vpop.f32.mrf.mxu0
        %v1951 = vadd.f32 0.0, %v1950
        %v1952 = vpop.f32.mrf.mxu0
        %1953 = vdwg.mxu0
        %v1954 = vadd.f32 %v1911, %v1948
        %v1955 = vadd.f32 %v1912, %v1951
        %v1956 = vmul.f32 %v1859, 1.8
        %v1957 = vmul.f32 %v1860, 1.8
        %v1958 = vadd.f32 %v1849, %v1956
        %v1959 = vadd.f32 %v1850, %v1957
        %v1960 = vpack.c.bf16 %v1860, %v1859
        %v1962 = vunpack.c.l.b16 %v1960
        %v1963 = vunpack.c.h.b16 %v1960
        %v1964 = vpack.c.b16 %v1962, %v1962
        %v1965 = vpack.c.b16 %v1963, %v1963
        %s1968 = scalar_lea.vmem %s475, 72 [#allocation14]
        %1969 = vst [vmem:[%s1968] sm:$0xf] %v1964
        %1970 = vst [vmem:[%s1968 + $0x4] sm:$0xf] %v1965
        %v1971 = vsub.f32 0.0, %v1861
        %v1972 = vsub.f32 0.0, %v1862
        %v1973 = vadd.f32 %v1971, %v1954
        %v1974 = vadd.f32 %v1972, %v1955
        %v1975 = vmul.f32 %v1973, 0.1
        %v1976 = vmul.f32 %v1974, 0.1
        %v1977 = vadd.f32 %v1861, %v1975
        %v1978 = vadd.f32 %v1862, %v1976
        %v1979 = vmul.f32 %v1954, 0.2
        %v1980 = vmul.f32 %v1955, 0.2
        %v1981 = vsub.f32 %v1954, %v1979
        %v1982 = vsub.f32 %v1955, %v1980
        %v1983 = vmul.f32 %v1958, 1.4285714e-06
        %v1984 = vmul.f32 %v1959, 1.4285714e-06
        %v1985 = vsub.f32 %v1958, %v1983
        %v1986 = vsub.f32 %v1959, %v1984
        %v1987 = vsub.f32 %v1977, 1.0
        %v1988 = vsub.f32 %v1978, 1.0
        %v1989 = vadd.f32 %v1987, %v1985
        %v1990 = vadd.f32 %v1988, %v1986
        %vm1991 = vcmp.gt.f32.partialorder %v1989, 0.0
        %vm1992 = vcmp.gt.f32.partialorder %v1990, 0.0
        %v1993 = vsel %vm1991, 1, 0
        %v1994 = vsel %vm1992, 1, 0
        %v1995 = vcvt.s32.f32 %v1993
        %v1996 = vcvt.s32.f32 %v1994
        %v1997 = vsel %vm1991, 0.0, %v1977
        %v1998 = vsel %vm1992, 0.0, %v1978
        %s1999 = scalar_lea.vmem %s421, 160 [#allocation2]
        %v2000 = vld [vmem:[%s1999] sm:$0xff]
        %v2001 = vld [vmem:[%s1999 + $0x8] sm:$0xff]
        %v2002 = vpack.c.bf16 %v2001, %v2000
        %v2004 = vsel %vm594, %v2002, 0
        %2006 = vmatprep.subr.bf16.mxu0 0
        %2007 = vmatpush1.bf16.msra.mxu0 0
        %2008 = vmatprep.subr.bf16.mxu0 0
        %2009 = vmatpush1.bf16.msra.mxu0 0
        %2010 = vmatprep.subr.bf16.mxu0 0
        %2011 = vmatpush1.bf16.msra.mxu0 0
        %2012 = vmatprep.subr.bf16.mxu0 0
        %2013 = vmatpush1.bf16.msra.mxu0 0
        %2014 = vmatprep.subr.bf16.mxu0 0
        %2015 = vmatpush1.bf16.msra.mxu0 %v589
        %2016 = vmatprep.subr.bf16.mxu0 0
        %2017 = vmatpush1.bf16.msra.mxu0 %v588
        %2018 = vmatprep.subr.bf16.mxu0 0
        %2019 = vmatpush1.bf16.msra.mxu0 %v587
        %2020 = vmatprep.subr.bf16.mxu0 0
        %2021 = vmatpush1.bf16.msra.mxu0 %v586
        %2022 = vmatprep.subr.bf16.mxu0 0
        %2023 = vmatpush2.bf16.msra.mxu0 0
        %2024 = vmatprep.subr.bf16.mxu0 0
        %2025 = vmatpush2.bf16.msra.mxu0 0
        %2026 = vmatprep.subr.bf16.mxu0 0
        %2027 = vmatpush2.bf16.msra.mxu0 0
        %2028 = vmatprep.subr.bf16.mxu0 0
        %2029 = vmatpush2.bf16.msra.mxu0 0
        %2030 = vmatprep.subr.bf16.mxu0 0
        %2031 = vmatpush2.bf16.msra.mxu0 0
        %2032 = vmatprep.subr.bf16.mxu0 0
        %2033 = vmatpush2.bf16.msra.mxu0 0
        %2034 = vmatprep.subr.bf16.mxu0 0
        %2035 = vmatpush2.bf16.msra.mxu0 0
        %2036 = vmatprep.subr.bf16.mxu0 0
        %2037 = vmatpush2.bf16.msra.mxu0 0
        %2038 = vmatprep.mubr.bf16.mxu0 0
        %2039 = vmatmul.mubr.bf16.gmra.mxu0 %v2004
        %v2040 = vpop.f32.mrf.mxu0
        %v2041 = vadd.f32 0.0, %v2040
        %v2042 = vpop.f32.mrf.mxu0
        %v2043 = vpop.f32.mrf.mxu0
        %v2044 = vadd.f32 0.0, %v2043
        %v2045 = vpop.f32.mrf.mxu0
        %2046 = vdwg.mxu0
        %v2047 = vadd.f32 %v1981, %v2041
        %v2048 = vadd.f32 %v1982, %v2044
        %2049 = vmatprep.subr.bf16.mxu0 0
        %2050 = vmatpush1.bf16.msra.mxu0 %v681
        %2051 = vmatprep.subr.bf16.mxu0 0
        %2052 = vmatpush1.bf16.msra.mxu0 %v680
        %2053 = vmatprep.subr.bf16.mxu0 0
        %2054 = vmatpush1.bf16.msra.mxu0 %v679
        %2055 = vmatprep.subr.bf16.mxu0 0
        %2056 = vmatpush1.bf16.msra.mxu0 %v678
        %2057 = vmatprep.subr.bf16.mxu0 0
        %2058 = vmatpush1.bf16.msra.mxu0 %v677
        %2059 = vmatprep.subr.bf16.mxu0 0
        %2060 = vmatpush1.bf16.msra.mxu0 %v676
        %2061 = vmatprep.subr.bf16.mxu0 0
        %2062 = vmatpush1.bf16.msra.mxu0 %v675
        %2063 = vmatprep.subr.bf16.mxu0 0
        %2064 = vmatpush1.bf16.msra.mxu0 %v674
        %2065 = vmatprep.subr.bf16.mxu0 0
        %2066 = vmatpush2.bf16.msra.mxu0 0
        %2067 = vmatprep.subr.bf16.mxu0 0
        %2068 = vmatpush2.bf16.msra.mxu0 0
        %2069 = vmatprep.subr.bf16.mxu0 0
        %2070 = vmatpush2.bf16.msra.mxu0 0
        %2071 = vmatprep.subr.bf16.mxu0 0
        %2072 = vmatpush2.bf16.msra.mxu0 0
        %2073 = vmatprep.subr.bf16.mxu0 0
        %2074 = vmatpush2.bf16.msra.mxu0 0
        %2075 = vmatprep.subr.bf16.mxu0 0
        %2076 = vmatpush2.bf16.msra.mxu0 0
        %2077 = vmatprep.subr.bf16.mxu0 0
        %2078 = vmatpush2.bf16.msra.mxu0 0
        %2079 = vmatprep.subr.bf16.mxu0 0
        %2080 = vmatpush2.bf16.msra.mxu0 0
        %2081 = vmatprep.mubr.bf16.mxu0 0
        %2082 = vmatmul.mubr.bf16.gmra.mxu0 %v1960
        %v2083 = vpop.f32.mrf.mxu0
        %v2084 = vadd.f32 0.0, %v2083
        %v2085 = vpop.f32.mrf.mxu0
        %v2086 = vpop.f32.mrf.mxu0
        %v2087 = vadd.f32 0.0, %v2086
        %v2088 = vpop.f32.mrf.mxu0
        %2089 = vdwg.mxu0
        %v2090 = vadd.f32 %v2047, %v2084
        %v2091 = vadd.f32 %v2048, %v2087
        %v2092 = vmul.f32 %v1995, 1.8
        %v2093 = vmul.f32 %v1996, 1.8
        %v2094 = vadd.f32 %v1985, %v2092
        %v2095 = vadd.f32 %v1986, %v2093
        %v2096 = vpack.c.bf16 %v1996, %v1995
        %v2098 = vunpack.c.l.b16 %v2096
        %v2099 = vunpack.c.h.b16 %v2096
        %v2100 = vpack.c.b16 %v2098, %v2098
        %v2101 = vpack.c.b16 %v2099, %v2099
        %s2104 = scalar_lea.vmem %s475, 80 [#allocation14]
        %2105 = vst [vmem:[%s2104] sm:$0xf] %v2100
        %2106 = vst [vmem:[%s2104 + $0x4] sm:$0xf] %v2101
        %v2107 = vsub.f32 0.0, %v1997
        %v2108 = vsub.f32 0.0, %v1998
        %v2109 = vadd.f32 %v2107, %v2090
        %v2110 = vadd.f32 %v2108, %v2091
        %v2111 = vmul.f32 %v2109, 0.1
        %v2112 = vmul.f32 %v2110, 0.1
        %v2113 = vadd.f32 %v1997, %v2111
        %v2114 = vadd.f32 %v1998, %v2112
        %v2115 = vmul.f32 %v2090, 0.2
        %v2116 = vmul.f32 %v2091, 0.2
        %v2117 = vsub.f32 %v2090, %v2115
        %v2118 = vsub.f32 %v2091, %v2116
        %v2119 = vmul.f32 %v2094, 1.4285714e-06
        %v2120 = vmul.f32 %v2095, 1.4285714e-06
        %v2121 = vsub.f32 %v2094, %v2119
        %v2122 = vsub.f32 %v2095, %v2120
        %v2123 = vsub.f32 %v2113, 1.0
        %v2124 = vsub.f32 %v2114, 1.0
        %v2125 = vadd.f32 %v2123, %v2121
        %v2126 = vadd.f32 %v2124, %v2122
        %vm2127 = vcmp.gt.f32.partialorder %v2125, 0.0
        %vm2128 = vcmp.gt.f32.partialorder %v2126, 0.0
        %v2129 = vsel %vm2127, 1, 0
        %v2130 = vsel %vm2128, 1, 0
        %v2131 = vcvt.s32.f32 %v2129
        %v2132 = vcvt.s32.f32 %v2130
        %v2133 = vsel %vm2127, 0.0, %v2113
        %v2134 = vsel %vm2128, 0.0, %v2114
        %s2135 = scalar_lea.vmem %s421, 176 [#allocation2]
        %v2136 = vld [vmem:[%s2135] sm:$0xff]
        %v2137 = vld [vmem:[%s2135 + $0x8] sm:$0xff]
        %v2138 = vpack.c.bf16 %v2137, %v2136
        %v2140 = vsel %vm594, %v2138, 0
        %2142 = vmatprep.subr.bf16.mxu0 0
        %2143 = vmatpush1.bf16.msra.mxu0 0
        %2144 = vmatprep.subr.bf16.mxu0 0
        %2145 = vmatpush1.bf16.msra.mxu0 0
        %2146 = vmatprep.subr.bf16.mxu0 0
        %2147 = vmatpush1.bf16.msra.mxu0 0
        %2148 = vmatprep.subr.bf16.mxu0 0
        %2149 = vmatpush1.bf16.msra.mxu0 0
        %2150 = vmatprep.subr.bf16.mxu0 0
        %2151 = vmatpush1.bf16.msra.mxu0 %v589
        %2152 = vmatprep.subr.bf16.mxu0 0
        %2153 = vmatpush1.bf16.msra.mxu0 %v588
        %2154 = vmatprep.subr.bf16.mxu0 0
        %2155 = vmatpush1.bf16.msra.mxu0 %v587
        %2156 = vmatprep.subr.bf16.mxu0 0
        %2157 = vmatpush1.bf16.msra.mxu0 %v586
        %2158 = vmatprep.subr.bf16.mxu0 0
        %2159 = vmatpush2.bf16.msra.mxu0 0
        %2160 = vmatprep.subr.bf16.mxu0 0
        %2161 = vmatpush2.bf16.msra.mxu0 0
        %2162 = vmatprep.subr.bf16.mxu0 0
        %2163 = vmatpush2.bf16.msra.mxu0 0
        %2164 = vmatprep.subr.bf16.mxu0 0
        %2165 = vmatpush2.bf16.msra.mxu0 0
        %2166 = vmatprep.subr.bf16.mxu0 0
        %2167 = vmatpush2.bf16.msra.mxu0 0
        %2168 = vmatprep.subr.bf16.mxu0 0
        %2169 = vmatpush2.bf16.msra.mxu0 0
        %2170 = vmatprep.subr.bf16.mxu0 0
        %2171 = vmatpush2.bf16.msra.mxu0 0
        %2172 = vmatprep.subr.bf16.mxu0 0
        %2173 = vmatpush2.bf16.msra.mxu0 0
        %2174 = vmatprep.mubr.bf16.mxu0 0
        %2175 = vmatmul.mubr.bf16.gmra.mxu0 %v2140
        %v2176 = vpop.f32.mrf.mxu0
        %v2177 = vadd.f32 0.0, %v2176
        %v2178 = vpop.f32.mrf.mxu0
        %v2179 = vpop.f32.mrf.mxu0
        %v2180 = vadd.f32 0.0, %v2179
        %v2181 = vpop.f32.mrf.mxu0
        %2182 = vdwg.mxu0
        %v2183 = vadd.f32 %v2117, %v2177
        %v2184 = vadd.f32 %v2118, %v2180
        %2185 = vmatprep.subr.bf16.mxu0 0
        %2186 = vmatpush1.bf16.msra.mxu0 %v681
        %2187 = vmatprep.subr.bf16.mxu0 0
        %2188 = vmatpush1.bf16.msra.mxu0 %v680
        %2189 = vmatprep.subr.bf16.mxu0 0
        %2190 = vmatpush1.bf16.msra.mxu0 %v679
        %2191 = vmatprep.subr.bf16.mxu0 0
        %2192 = vmatpush1.bf16.msra.mxu0 %v678
        %2193 = vmatprep.subr.bf16.mxu0 0
        %2194 = vmatpush1.bf16.msra.mxu0 %v677
        %2195 = vmatprep.subr.bf16.mxu0 0
        %2196 = vmatpush1.bf16.msra.mxu0 %v676
        %2197 = vmatprep.subr.bf16.mxu0 0
        %2198 = vmatpush1.bf16.msra.mxu0 %v675
        %2199 = vmatprep.subr.bf16.mxu0 0
        %2200 = vmatpush1.bf16.msra.mxu0 %v674
        %2201 = vmatprep.subr.bf16.mxu0 0
        %2202 = vmatpush2.bf16.msra.mxu0 0
        %2203 = vmatprep.subr.bf16.mxu0 0
        %2204 = vmatpush2.bf16.msra.mxu0 0
        %2205 = vmatprep.subr.bf16.mxu0 0
        %2206 = vmatpush2.bf16.msra.mxu0 0
        %2207 = vmatprep.subr.bf16.mxu0 0
        %2208 = vmatpush2.bf16.msra.mxu0 0
        %2209 = vmatprep.subr.bf16.mxu0 0
        %2210 = vmatpush2.bf16.msra.mxu0 0
        %2211 = vmatprep.subr.bf16.mxu0 0
        %2212 = vmatpush2.bf16.msra.mxu0 0
        %2213 = vmatprep.subr.bf16.mxu0 0
        %2214 = vmatpush2.bf16.msra.mxu0 0
        %2215 = vmatprep.subr.bf16.mxu0 0
        %2216 = vmatpush2.bf16.msra.mxu0 0
        %2217 = vmatprep.mubr.bf16.mxu0 0
        %2218 = vmatmul.mubr.bf16.gmra.mxu0 %v2096
        %v2219 = vpop.f32.mrf.mxu0
        %v2220 = vadd.f32 0.0, %v2219
        %v2221 = vpop.f32.mrf.mxu0
        %v2222 = vpop.f32.mrf.mxu0
        %v2223 = vadd.f32 0.0, %v2222
        %v2224 = vpop.f32.mrf.mxu0
        %2225 = vdwg.mxu0
        %v2226 = vadd.f32 %v2183, %v2220
        %v2227 = vadd.f32 %v2184, %v2223
        %v2228 = vmul.f32 %v2131, 1.8
        %v2229 = vmul.f32 %v2132, 1.8
        %v2230 = vadd.f32 %v2121, %v2228
        %v2231 = vadd.f32 %v2122, %v2229
        %v2232 = vpack.c.bf16 %v2132, %v2131
        %v2234 = vunpack.c.l.b16 %v2232
        %v2235 = vunpack.c.h.b16 %v2232
        %v2236 = vpack.c.b16 %v2234, %v2234
        %v2237 = vpack.c.b16 %v2235, %v2235
        %s2240 = scalar_lea.vmem %s475, 88 [#allocation14]
        %2241 = vst [vmem:[%s2240] sm:$0xf] %v2236
        %2242 = vst [vmem:[%s2240 + $0x4] sm:$0xf] %v2237
        %v2243 = vsub.f32 0.0, %v2133
        %v2244 = vsub.f32 0.0, %v2134
        %v2245 = vadd.f32 %v2243, %v2226
        %v2246 = vadd.f32 %v2244, %v2227
        %v2247 = vmul.f32 %v2245, 0.1
        %v2248 = vmul.f32 %v2246, 0.1
        %v2249 = vadd.f32 %v2133, %v2247
        %v2250 = vadd.f32 %v2134, %v2248
        %v2251 = vmul.f32 %v2226, 0.2
        %v2252 = vmul.f32 %v2227, 0.2
        %v2253 = vsub.f32 %v2226, %v2251
        %v2254 = vsub.f32 %v2227, %v2252
        %v2255 = vmul.f32 %v2230, 1.4285714e-06
        %v2256 = vmul.f32 %v2231, 1.4285714e-06
        %v2257 = vsub.f32 %v2230, %v2255
        %v2258 = vsub.f32 %v2231, %v2256
        %v2259 = vsub.f32 %v2249, 1.0
        %v2260 = vsub.f32 %v2250, 1.0
        %v2261 = vadd.f32 %v2259, %v2257
        %v2262 = vadd.f32 %v2260, %v2258
        %vm2263 = vcmp.gt.f32.partialorder %v2261, 0.0
        %vm2264 = vcmp.gt.f32.partialorder %v2262, 0.0
        %v2265 = vsel %vm2263, 1, 0
        %v2266 = vsel %vm2264, 1, 0
        %v2267 = vcvt.s32.f32 %v2265
        %v2268 = vcvt.s32.f32 %v2266
        %v2269 = vsel %vm2263, 0.0, %v2249
        %v2270 = vsel %vm2264, 0.0, %v2250
        %s2271 = scalar_lea.vmem %s421, 192 [#allocation2]
        %v2272 = vld [vmem:[%s2271] sm:$0xff]
        %v2273 = vld [vmem:[%s2271 + $0x8] sm:$0xff]
        %v2274 = vpack.c.bf16 %v2273, %v2272
        %v2276 = vsel %vm594, %v2274, 0
        %2278 = vmatprep.subr.bf16.mxu0 0
        %2279 = vmatpush1.bf16.msra.mxu0 0
        %2280 = vmatprep.subr.bf16.mxu0 0
        %2281 = vmatpush1.bf16.msra.mxu0 0
        %2282 = vmatprep.subr.bf16.mxu0 0
        %2283 = vmatpush1.bf16.msra.mxu0 0
        %2284 = vmatprep.subr.bf16.mxu0 0
        %2285 = vmatpush1.bf16.msra.mxu0 0
        %2286 = vmatprep.subr.bf16.mxu0 0
        %2287 = vmatpush1.bf16.msra.mxu0 %v589
        %2288 = vmatprep.subr.bf16.mxu0 0
        %2289 = vmatpush1.bf16.msra.mxu0 %v588
        %2290 = vmatprep.subr.bf16.mxu0 0
        %2291 = vmatpush1.bf16.msra.mxu0 %v587
        %2292 = vmatprep.subr.bf16.mxu0 0
        %2293 = vmatpush1.bf16.msra.mxu0 %v586
        %2294 = vmatprep.subr.bf16.mxu0 0
        %2295 = vmatpush2.bf16.msra.mxu0 0
        %2296 = vmatprep.subr.bf16.mxu0 0
        %2297 = vmatpush2.bf16.msra.mxu0 0
        %2298 = vmatprep.subr.bf16.mxu0 0
        %2299 = vmatpush2.bf16.msra.mxu0 0
        %2300 = vmatprep.subr.bf16.mxu0 0
        %2301 = vmatpush2.bf16.msra.mxu0 0
        %2302 = vmatprep.subr.bf16.mxu0 0
        %2303 = vmatpush2.bf16.msra.mxu0 0
        %2304 = vmatprep.subr.bf16.mxu0 0
        %2305 = vmatpush2.bf16.msra.mxu0 0
        %2306 = vmatprep.subr.bf16.mxu0 0
        %2307 = vmatpush2.bf16.msra.mxu0 0
        %2308 = vmatprep.subr.bf16.mxu0 0
        %2309 = vmatpush2.bf16.msra.mxu0 0
        %2310 = vmatprep.mubr.bf16.mxu0 0
        %2311 = vmatmul.mubr.bf16.gmra.mxu0 %v2276
        %v2312 = vpop.f32.mrf.mxu0
        %v2313 = vadd.f32 0.0, %v2312
        %v2314 = vpop.f32.mrf.mxu0
        %v2315 = vpop.f32.mrf.mxu0
        %v2316 = vadd.f32 0.0, %v2315
        %v2317 = vpop.f32.mrf.mxu0
        %2318 = vdwg.mxu0
        %v2319 = vadd.f32 %v2253, %v2313
        %v2320 = vadd.f32 %v2254, %v2316
        %2321 = vmatprep.subr.bf16.mxu0 0
        %2322 = vmatpush1.bf16.msra.mxu0 %v681
        %2323 = vmatprep.subr.bf16.mxu0 0
        %2324 = vmatpush1.bf16.msra.mxu0 %v680
        %2325 = vmatprep.subr.bf16.mxu0 0
        %2326 = vmatpush1.bf16.msra.mxu0 %v679
        %2327 = vmatprep.subr.bf16.mxu0 0
        %2328 = vmatpush1.bf16.msra.mxu0 %v678
        %2329 = vmatprep.subr.bf16.mxu0 0
        %2330 = vmatpush1.bf16.msra.mxu0 %v677
        %2331 = vmatprep.subr.bf16.mxu0 0
        %2332 = vmatpush1.bf16.msra.mxu0 %v676
        %2333 = vmatprep.subr.bf16.mxu0 0
        %2334 = vmatpush1.bf16.msra.mxu0 %v675
        %2335 = vmatprep.subr.bf16.mxu0 0
        %2336 = vmatpush1.bf16.msra.mxu0 %v674
        %2337 = vmatprep.subr.bf16.mxu0 0
        %2338 = vmatpush2.bf16.msra.mxu0 0
        %2339 = vmatprep.subr.bf16.mxu0 0
        %2340 = vmatpush2.bf16.msra.mxu0 0
        %2341 = vmatprep.subr.bf16.mxu0 0
        %2342 = vmatpush2.bf16.msra.mxu0 0
        %2343 = vmatprep.subr.bf16.mxu0 0
        %2344 = vmatpush2.bf16.msra.mxu0 0
        %2345 = vmatprep.subr.bf16.mxu0 0
        %2346 = vmatpush2.bf16.msra.mxu0 0
        %2347 = vmatprep.subr.bf16.mxu0 0
        %2348 = vmatpush2.bf16.msra.mxu0 0
        %2349 = vmatprep.subr.bf16.mxu0 0
        %2350 = vmatpush2.bf16.msra.mxu0 0
        %2351 = vmatprep.subr.bf16.mxu0 0
        %2352 = vmatpush2.bf16.msra.mxu0 0
        %2353 = vmatprep.mubr.bf16.mxu0 0
        %2354 = vmatmul.mubr.bf16.gmra.mxu0 %v2232
        %v2355 = vpop.f32.mrf.mxu0
        %v2356 = vadd.f32 0.0, %v2355
        %v2357 = vpop.f32.mrf.mxu0
        %v2358 = vpop.f32.mrf.mxu0
        %v2359 = vadd.f32 0.0, %v2358
        %v2360 = vpop.f32.mrf.mxu0
        %2361 = vdwg.mxu0
        %v2362 = vadd.f32 %v2319, %v2356
        %v2363 = vadd.f32 %v2320, %v2359
        %v2364 = vmul.f32 %v2267, 1.8
        %v2365 = vmul.f32 %v2268, 1.8
        %v2366 = vadd.f32 %v2257, %v2364
        %v2367 = vadd.f32 %v2258, %v2365
        %v2368 = vpack.c.bf16 %v2268, %v2267
        %v2370 = vunpack.c.l.b16 %v2368
        %v2371 = vunpack.c.h.b16 %v2368
        %v2372 = vpack.c.b16 %v2370, %v2370
        %v2373 = vpack.c.b16 %v2371, %v2371
        %s2376 = scalar_lea.vmem %s475, 96 [#allocation14]
        %2377 = vst [vmem:[%s2376] sm:$0xf] %v2372
        %2378 = vst [vmem:[%s2376 + $0x4] sm:$0xf] %v2373
        %v2379 = vsub.f32 0.0, %v2269
        %v2380 = vsub.f32 0.0, %v2270
        %v2381 = vadd.f32 %v2379, %v2362
        %v2382 = vadd.f32 %v2380, %v2363
        %v2383 = vmul.f32 %v2381, 0.1
        %v2384 = vmul.f32 %v2382, 0.1
        %v2385 = vadd.f32 %v2269, %v2383
        %v2386 = vadd.f32 %v2270, %v2384
        %v2387 = vmul.f32 %v2362, 0.2
        %v2388 = vmul.f32 %v2363, 0.2
        %v2389 = vsub.f32 %v2362, %v2387
        %v2390 = vsub.f32 %v2363, %v2388
        %v2391 = vmul.f32 %v2366, 1.4285714e-06
        %v2392 = vmul.f32 %v2367, 1.4285714e-06
        %v2393 = vsub.f32 %v2366, %v2391
        %v2394 = vsub.f32 %v2367, %v2392
        %v2395 = vsub.f32 %v2385, 1.0
        %v2396 = vsub.f32 %v2386, 1.0
        %v2397 = vadd.f32 %v2395, %v2393
        %v2398 = vadd.f32 %v2396, %v2394
        %vm2399 = vcmp.gt.f32.partialorder %v2397, 0.0
        %vm2400 = vcmp.gt.f32.partialorder %v2398, 0.0
        %v2401 = vsel %vm2399, 1, 0
        %v2402 = vsel %vm2400, 1, 0
        %v2403 = vcvt.s32.f32 %v2401
        %v2404 = vcvt.s32.f32 %v2402
        %v2405 = vsel %vm2399, 0.0, %v2385
        %v2406 = vsel %vm2400, 0.0, %v2386
        %s2407 = scalar_lea.vmem %s421, 208 [#allocation2]
        %v2408 = vld [vmem:[%s2407] sm:$0xff]
        %v2409 = vld [vmem:[%s2407 + $0x8] sm:$0xff]
        %v2410 = vpack.c.bf16 %v2409, %v2408
        %v2412 = vsel %vm594, %v2410, 0
        %2414 = vmatprep.subr.bf16.mxu0 0
        %2415 = vmatpush1.bf16.msra.mxu0 0
        %2416 = vmatprep.subr.bf16.mxu0 0
        %2417 = vmatpush1.bf16.msra.mxu0 0
        %2418 = vmatprep.subr.bf16.mxu0 0
        %2419 = vmatpush1.bf16.msra.mxu0 0
        %2420 = vmatprep.subr.bf16.mxu0 0
        %2421 = vmatpush1.bf16.msra.mxu0 0
        %2422 = vmatprep.subr.bf16.mxu0 0
        %2423 = vmatpush1.bf16.msra.mxu0 %v589
        %2424 = vmatprep.subr.bf16.mxu0 0
        %2425 = vmatpush1.bf16.msra.mxu0 %v588
        %2426 = vmatprep.subr.bf16.mxu0 0
        %2427 = vmatpush1.bf16.msra.mxu0 %v587
        %2428 = vmatprep.subr.bf16.mxu0 0
        %2429 = vmatpush1.bf16.msra.mxu0 %v586
        %2430 = vmatprep.subr.bf16.mxu0 0
        %2431 = vmatpush2.bf16.msra.mxu0 0
        %2432 = vmatprep.subr.bf16.mxu0 0
        %2433 = vmatpush2.bf16.msra.mxu0 0
        %2434 = vmatprep.subr.bf16.mxu0 0
        %2435 = vmatpush2.bf16.msra.mxu0 0
        %2436 = vmatprep.subr.bf16.mxu0 0
        %2437 = vmatpush2.bf16.msra.mxu0 0
        %2438 = vmatprep.subr.bf16.mxu0 0
        %2439 = vmatpush2.bf16.msra.mxu0 0
        %2440 = vmatprep.subr.bf16.mxu0 0
        %2441 = vmatpush2.bf16.msra.mxu0 0
        %2442 = vmatprep.subr.bf16.mxu0 0
        %2443 = vmatpush2.bf16.msra.mxu0 0
        %2444 = vmatprep.subr.bf16.mxu0 0
        %2445 = vmatpush2.bf16.msra.mxu0 0
        %2446 = vmatprep.mubr.bf16.mxu0 0
        %2447 = vmatmul.mubr.bf16.gmra.mxu0 %v2412
        %v2448 = vpop.f32.mrf.mxu0
        %v2449 = vadd.f32 0.0, %v2448
        %v2450 = vpop.f32.mrf.mxu0
        %v2451 = vpop.f32.mrf.mxu0
        %v2452 = vadd.f32 0.0, %v2451
        %v2453 = vpop.f32.mrf.mxu0
        %2454 = vdwg.mxu0
        %v2455 = vadd.f32 %v2389, %v2449
        %v2456 = vadd.f32 %v2390, %v2452
        %2457 = vmatprep.subr.bf16.mxu0 0
        %2458 = vmatpush1.bf16.msra.mxu0 %v681
        %2459 = vmatprep.subr.bf16.mxu0 0
        %2460 = vmatpush1.bf16.msra.mxu0 %v680
        %2461 = vmatprep.subr.bf16.mxu0 0
        %2462 = vmatpush1.bf16.msra.mxu0 %v679
        %2463 = vmatprep.subr.bf16.mxu0 0
        %2464 = vmatpush1.bf16.msra.mxu0 %v678
        %2465 = vmatprep.subr.bf16.mxu0 0
        %2466 = vmatpush1.bf16.msra.mxu0 %v677
        %2467 = vmatprep.subr.bf16.mxu0 0
        %2468 = vmatpush1.bf16.msra.mxu0 %v676
        %2469 = vmatprep.subr.bf16.mxu0 0
        %2470 = vmatpush1.bf16.msra.mxu0 %v675
        %2471 = vmatprep.subr.bf16.mxu0 0
        %2472 = vmatpush1.bf16.msra.mxu0 %v674
        %2473 = vmatprep.subr.bf16.mxu0 0
        %2474 = vmatpush2.bf16.msra.mxu0 0
        %2475 = vmatprep.subr.bf16.mxu0 0
        %2476 = vmatpush2.bf16.msra.mxu0 0
        %2477 = vmatprep.subr.bf16.mxu0 0
        %2478 = vmatpush2.bf16.msra.mxu0 0
        %2479 = vmatprep.subr.bf16.mxu0 0
        %2480 = vmatpush2.bf16.msra.mxu0 0
        %2481 = vmatprep.subr.bf16.mxu0 0
        %2482 = vmatpush2.bf16.msra.mxu0 0
        %2483 = vmatprep.subr.bf16.mxu0 0
        %2484 = vmatpush2.bf16.msra.mxu0 0
        %2485 = vmatprep.subr.bf16.mxu0 0
        %2486 = vmatpush2.bf16.msra.mxu0 0
        %2487 = vmatprep.subr.bf16.mxu0 0
        %2488 = vmatpush2.bf16.msra.mxu0 0
        %2489 = vmatprep.mubr.bf16.mxu0 0
        %2490 = vmatmul.mubr.bf16.gmra.mxu0 %v2368
        %v2491 = vpop.f32.mrf.mxu0
        %v2492 = vadd.f32 0.0, %v2491
        %v2493 = vpop.f32.mrf.mxu0
        %v2494 = vpop.f32.mrf.mxu0
        %v2495 = vadd.f32 0.0, %v2494
        %v2496 = vpop.f32.mrf.mxu0
        %2497 = vdwg.mxu0
        %v2498 = vadd.f32 %v2455, %v2492
        %v2499 = vadd.f32 %v2456, %v2495
        %v2500 = vmul.f32 %v2403, 1.8
        %v2501 = vmul.f32 %v2404, 1.8
        %v2502 = vadd.f32 %v2393, %v2500
        %v2503 = vadd.f32 %v2394, %v2501
        %v2504 = vpack.c.bf16 %v2404, %v2403
        %v2506 = vunpack.c.l.b16 %v2504
        %v2507 = vunpack.c.h.b16 %v2504
        %v2508 = vpack.c.b16 %v2506, %v2506
        %v2509 = vpack.c.b16 %v2507, %v2507
        %s2512 = scalar_lea.vmem %s475, 104 [#allocation14]
        %2513 = vst [vmem:[%s2512] sm:$0xf] %v2508
        %2514 = vst [vmem:[%s2512 + $0x4] sm:$0xf] %v2509
        %v2515 = vsub.f32 0.0, %v2405
        %v2516 = vsub.f32 0.0, %v2406
        %v2517 = vadd.f32 %v2515, %v2498
        %v2518 = vadd.f32 %v2516, %v2499
        %v2519 = vmul.f32 %v2517, 0.1
        %v2520 = vmul.f32 %v2518, 0.1
        %v2521 = vadd.f32 %v2405, %v2519
        %v2522 = vadd.f32 %v2406, %v2520
        %v2523 = vmul.f32 %v2498, 0.2
        %v2524 = vmul.f32 %v2499, 0.2
        %v2525 = vsub.f32 %v2498, %v2523
        %v2526 = vsub.f32 %v2499, %v2524
        %v2527 = vmul.f32 %v2502, 1.4285714e-06
        %v2528 = vmul.f32 %v2503, 1.4285714e-06
        %v2529 = vsub.f32 %v2502, %v2527
        %v2530 = vsub.f32 %v2503, %v2528
        %v2531 = vsub.f32 %v2521, 1.0
        %v2532 = vsub.f32 %v2522, 1.0
        %v2533 = vadd.f32 %v2531, %v2529
        %v2534 = vadd.f32 %v2532, %v2530
        %vm2535 = vcmp.gt.f32.partialorder %v2533, 0.0
        %vm2536 = vcmp.gt.f32.partialorder %v2534, 0.0
        %v2537 = vsel %vm2535, 1, 0
        %v2538 = vsel %vm2536, 1, 0
        %v2539 = vcvt.s32.f32 %v2537
        %v2540 = vcvt.s32.f32 %v2538
        %v2541 = vsel %vm2535, 0.0, %v2521
        %v2542 = vsel %vm2536, 0.0, %v2522
        %s2543 = scalar_lea.vmem %s421, 224 [#allocation2]
        %v2544 = vld [vmem:[%s2543] sm:$0xff]
        %v2545 = vld [vmem:[%s2543 + $0x8] sm:$0xff]
        %v2546 = vpack.c.bf16 %v2545, %v2544
        %v2548 = vsel %vm594, %v2546, 0
        %2550 = vmatprep.subr.bf16.mxu0 0
        %2551 = vmatpush1.bf16.msra.mxu0 0
        %2552 = vmatprep.subr.bf16.mxu0 0
        %2553 = vmatpush1.bf16.msra.mxu0 0
        %2554 = vmatprep.subr.bf16.mxu0 0
        %2555 = vmatpush1.bf16.msra.mxu0 0
        %2556 = vmatprep.subr.bf16.mxu0 0
        %2557 = vmatpush1.bf16.msra.mxu0 0
        %2558 = vmatprep.subr.bf16.mxu0 0
        %2559 = vmatpush1.bf16.msra.mxu0 %v589
        %2560 = vmatprep.subr.bf16.mxu0 0
        %2561 = vmatpush1.bf16.msra.mxu0 %v588
        %2562 = vmatprep.subr.bf16.mxu0 0
        %2563 = vmatpush1.bf16.msra.mxu0 %v587
        %2564 = vmatprep.subr.bf16.mxu0 0
        %2565 = vmatpush1.bf16.msra.mxu0 %v586
        %2566 = vmatprep.subr.bf16.mxu0 0
        %2567 = vmatpush2.bf16.msra.mxu0 0
        %2568 = vmatprep.subr.bf16.mxu0 0
        %2569 = vmatpush2.bf16.msra.mxu0 0
        %2570 = vmatprep.subr.bf16.mxu0 0
        %2571 = vmatpush2.bf16.msra.mxu0 0
        %2572 = vmatprep.subr.bf16.mxu0 0
        %2573 = vmatpush2.bf16.msra.mxu0 0
        %2574 = vmatprep.subr.bf16.mxu0 0
        %2575 = vmatpush2.bf16.msra.mxu0 0
        %2576 = vmatprep.subr.bf16.mxu0 0
        %2577 = vmatpush2.bf16.msra.mxu0 0
        %2578 = vmatprep.subr.bf16.mxu0 0
        %2579 = vmatpush2.bf16.msra.mxu0 0
        %2580 = vmatprep.subr.bf16.mxu0 0
        %2581 = vmatpush2.bf16.msra.mxu0 0
        %2582 = vmatprep.mubr.bf16.mxu0 0
        %2583 = vmatmul.mubr.bf16.gmra.mxu0 %v2548
        %v2584 = vpop.f32.mrf.mxu0
        %v2585 = vadd.f32 0.0, %v2584
        %v2586 = vpop.f32.mrf.mxu0
        %v2587 = vpop.f32.mrf.mxu0
        %v2588 = vadd.f32 0.0, %v2587
        %v2589 = vpop.f32.mrf.mxu0
        %2590 = vdwg.mxu0
        %v2591 = vadd.f32 %v2525, %v2585
        %v2592 = vadd.f32 %v2526, %v2588
        %2593 = vmatprep.subr.bf16.mxu0 0
        %2594 = vmatpush1.bf16.msra.mxu0 %v681
        %2595 = vmatprep.subr.bf16.mxu0 0
        %2596 = vmatpush1.bf16.msra.mxu0 %v680
        %2597 = vmatprep.subr.bf16.mxu0 0
        %2598 = vmatpush1.bf16.msra.mxu0 %v679
        %2599 = vmatprep.subr.bf16.mxu0 0
        %2600 = vmatpush1.bf16.msra.mxu0 %v678
        %2601 = vmatprep.subr.bf16.mxu0 0
        %2602 = vmatpush1.bf16.msra.mxu0 %v677
        %2603 = vmatprep.subr.bf16.mxu0 0
        %2604 = vmatpush1.bf16.msra.mxu0 %v676
        %2605 = vmatprep.subr.bf16.mxu0 0
        %2606 = vmatpush1.bf16.msra.mxu0 %v675
        %2607 = vmatprep.subr.bf16.mxu0 0
        %2608 = vmatpush1.bf16.msra.mxu0 %v674
        %2609 = vmatprep.subr.bf16.mxu0 0
        %2610 = vmatpush2.bf16.msra.mxu0 0
        %2611 = vmatprep.subr.bf16.mxu0 0
        %2612 = vmatpush2.bf16.msra.mxu0 0
        %2613 = vmatprep.subr.bf16.mxu0 0
        %2614 = vmatpush2.bf16.msra.mxu0 0
        %2615 = vmatprep.subr.bf16.mxu0 0
        %2616 = vmatpush2.bf16.msra.mxu0 0
        %2617 = vmatprep.subr.bf16.mxu0 0
        %2618 = vmatpush2.bf16.msra.mxu0 0
        %2619 = vmatprep.subr.bf16.mxu0 0
        %2620 = vmatpush2.bf16.msra.mxu0 0
        %2621 = vmatprep.subr.bf16.mxu0 0
        %2622 = vmatpush2.bf16.msra.mxu0 0
        %2623 = vmatprep.subr.bf16.mxu0 0
        %2624 = vmatpush2.bf16.msra.mxu0 0
        %2625 = vmatprep.mubr.bf16.mxu0 0
        %2626 = vmatmul.mubr.bf16.gmra.mxu0 %v2504
        %v2627 = vpop.f32.mrf.mxu0
        %v2628 = vadd.f32 0.0, %v2627
        %v2629 = vpop.f32.mrf.mxu0
        %v2630 = vpop.f32.mrf.mxu0
        %v2631 = vadd.f32 0.0, %v2630
        %v2632 = vpop.f32.mrf.mxu0
        %2633 = vdwg.mxu0
        %v2634 = vadd.f32 %v2591, %v2628
        %v2635 = vadd.f32 %v2592, %v2631
        %v2636 = vmul.f32 %v2539, 1.8
        %v2637 = vmul.f32 %v2540, 1.8
        %v2638 = vadd.f32 %v2529, %v2636
        %v2639 = vadd.f32 %v2530, %v2637
        %v2640 = vpack.c.bf16 %v2540, %v2539
        %v2642 = vunpack.c.l.b16 %v2640
        %v2643 = vunpack.c.h.b16 %v2640
        %v2644 = vpack.c.b16 %v2642, %v2642
        %v2645 = vpack.c.b16 %v2643, %v2643
        %s2648 = scalar_lea.vmem %s475, 112 [#allocation14]
        %2649 = vst [vmem:[%s2648] sm:$0xf] %v2644
        %2650 = vst [vmem:[%s2648 + $0x4] sm:$0xf] %v2645
        %v2651 = vsub.f32 0.0, %v2541
        %v2652 = vsub.f32 0.0, %v2542
        %v2653 = vadd.f32 %v2651, %v2634
        %v2654 = vadd.f32 %v2652, %v2635
        %v2655 = vmul.f32 %v2653, 0.1
        %v2656 = vmul.f32 %v2654, 0.1
        %v2657 = vadd.f32 %v2541, %v2655
        %v2658 = vadd.f32 %v2542, %v2656
        %v2659 = vmul.f32 %v2634, 0.2
        %v2660 = vmul.f32 %v2635, 0.2
        %v2661 = vsub.f32 %v2634, %v2659
        %v2662 = vsub.f32 %v2635, %v2660
        %v2663 = vmul.f32 %v2638, 1.4285714e-06
        %v2664 = vmul.f32 %v2639, 1.4285714e-06
        %v2665 = vsub.f32 %v2638, %v2663
        %v2666 = vsub.f32 %v2639, %v2664
        %v2667 = vsub.f32 %v2657, 1.0
        %v2668 = vsub.f32 %v2658, 1.0
        %v2669 = vadd.f32 %v2667, %v2665
        %v2670 = vadd.f32 %v2668, %v2666
        %vm2671 = vcmp.gt.f32.partialorder %v2669, 0.0
        %vm2672 = vcmp.gt.f32.partialorder %v2670, 0.0
        %v2673 = vsel %vm2671, 1, 0
        %v2674 = vsel %vm2672, 1, 0
        %v2675 = vcvt.s32.f32 %v2673
        %v2676 = vcvt.s32.f32 %v2674
        %v2677 = vsel %vm2671, 0.0, %v2657
        %v2678 = vsel %vm2672, 0.0, %v2658
        %s2679 = scalar_lea.vmem %s421, 240 [#allocation2]
        %v2680 = vld [vmem:[%s2679] sm:$0xff]
        %v2681 = vld [vmem:[%s2679 + $0x8] sm:$0xff]
        %v2682 = vpack.c.bf16 %v2681, %v2680
        %v2684 = vsel %vm594, %v2682, 0
        %2686 = vmatprep.subr.bf16.mxu0 0
        %2687 = vmatpush1.bf16.msra.mxu0 0
        %2688 = vmatprep.subr.bf16.mxu0 0
        %2689 = vmatpush1.bf16.msra.mxu0 0
        %2690 = vmatprep.subr.bf16.mxu0 0
        %2691 = vmatpush1.bf16.msra.mxu0 0
        %2692 = vmatprep.subr.bf16.mxu0 0
        %2693 = vmatpush1.bf16.msra.mxu0 0
        %2694 = vmatprep.subr.bf16.mxu0 0
        %2695 = vmatpush1.bf16.msra.mxu0 %v589
        %2696 = vmatprep.subr.bf16.mxu0 0
        %2697 = vmatpush1.bf16.msra.mxu0 %v588
        %2698 = vmatprep.subr.bf16.mxu0 0
        %2699 = vmatpush1.bf16.msra.mxu0 %v587
        %2700 = vmatprep.subr.bf16.mxu0 0
        %2701 = vmatpush1.bf16.msra.mxu0 %v586
        %2702 = vmatprep.subr.bf16.mxu0 0
        %2703 = vmatpush2.bf16.msra.mxu0 0
        %2704 = vmatprep.subr.bf16.mxu0 0
        %2705 = vmatpush2.bf16.msra.mxu0 0
        %2706 = vmatprep.subr.bf16.mxu0 0
        %2707 = vmatpush2.bf16.msra.mxu0 0
        %2708 = vmatprep.subr.bf16.mxu0 0
        %2709 = vmatpush2.bf16.msra.mxu0 0
        %2710 = vmatprep.subr.bf16.mxu0 0
        %2711 = vmatpush2.bf16.msra.mxu0 0
        %2712 = vmatprep.subr.bf16.mxu0 0
        %2713 = vmatpush2.bf16.msra.mxu0 0
        %2714 = vmatprep.subr.bf16.mxu0 0
        %2715 = vmatpush2.bf16.msra.mxu0 0
        %2716 = vmatprep.subr.bf16.mxu0 0
        %2717 = vmatpush2.bf16.msra.mxu0 0
        %2718 = vmatprep.mubr.bf16.mxu0 0
        %2719 = vmatmul.mubr.bf16.gmra.mxu0 %v2684
        %v2720 = vpop.f32.mrf.mxu0
        %v2721 = vadd.f32 0.0, %v2720
        %v2722 = vpop.f32.mrf.mxu0
        %v2723 = vpop.f32.mrf.mxu0
        %v2724 = vadd.f32 0.0, %v2723
        %v2725 = vpop.f32.mrf.mxu0
        %2726 = vdwg.mxu0
        %v2727 = vadd.f32 %v2661, %v2721
        %v2728 = vadd.f32 %v2662, %v2724
        %2729 = vmatprep.subr.bf16.mxu0 0
        %2730 = vmatpush1.bf16.msra.mxu0 %v681
        %2731 = vmatprep.subr.bf16.mxu0 0
        %2732 = vmatpush1.bf16.msra.mxu0 %v680
        %2733 = vmatprep.subr.bf16.mxu0 0
        %2734 = vmatpush1.bf16.msra.mxu0 %v679
        %2735 = vmatprep.subr.bf16.mxu0 0
        %2736 = vmatpush1.bf16.msra.mxu0 %v678
        %2737 = vmatprep.subr.bf16.mxu0 0
        %2738 = vmatpush1.bf16.msra.mxu0 %v677
        %2739 = vmatprep.subr.bf16.mxu0 0
        %2740 = vmatpush1.bf16.msra.mxu0 %v676
        %2741 = vmatprep.subr.bf16.mxu0 0
        %2742 = vmatpush1.bf16.msra.mxu0 %v675
        %2743 = vmatprep.subr.bf16.mxu0 0
        %2744 = vmatpush1.bf16.msra.mxu0 %v674
        %2745 = vmatprep.subr.bf16.mxu0 0
        %2746 = vmatpush2.bf16.msra.mxu0 0
        %2747 = vmatprep.subr.bf16.mxu0 0
        %2748 = vmatpush2.bf16.msra.mxu0 0
        %2749 = vmatprep.subr.bf16.mxu0 0
        %2750 = vmatpush2.bf16.msra.mxu0 0
        %2751 = vmatprep.subr.bf16.mxu0 0
        %2752 = vmatpush2.bf16.msra.mxu0 0
        %2753 = vmatprep.subr.bf16.mxu0 0
        %2754 = vmatpush2.bf16.msra.mxu0 0
        %2755 = vmatprep.subr.bf16.mxu0 0
        %2756 = vmatpush2.bf16.msra.mxu0 0
        %2757 = vmatprep.subr.bf16.mxu0 0
        %2758 = vmatpush2.bf16.msra.mxu0 0
        %2759 = vmatprep.subr.bf16.mxu0 0
        %2760 = vmatpush2.bf16.msra.mxu0 0
        %2761 = vmatprep.mubr.bf16.mxu0 0
        %2762 = vmatmul.mubr.bf16.gmra.mxu0 %v2640
        %v2763 = vpop.f32.mrf.mxu0
        %v2764 = vadd.f32 0.0, %v2763
        %v2765 = vpop.f32.mrf.mxu0
        %v2766 = vpop.f32.mrf.mxu0
        %v2767 = vadd.f32 0.0, %v2766
        %v2768 = vpop.f32.mrf.mxu0
        %2769 = vdwg.mxu0
        %v2770 = vadd.f32 %v2727, %v2764
        %v2771 = vadd.f32 %v2728, %v2767
        %v2772 = vmul.f32 %v2675, 1.8
        %v2773 = vmul.f32 %v2676, 1.8
        %v2774 = vadd.f32 %v2665, %v2772
        %v2775 = vadd.f32 %v2666, %v2773
        %v2776 = vpack.c.bf16 %v2676, %v2675
        %v2778 = vunpack.c.l.b16 %v2776
        %v2779 = vunpack.c.h.b16 %v2776
        %v2780 = vpack.c.b16 %v2778, %v2778
        %v2781 = vpack.c.b16 %v2779, %v2779
        %s2784 = scalar_lea.vmem %s475, 120 [#allocation14]
        %2785 = vst [vmem:[%s2784] sm:$0xf] %v2780
        %2786 = vst [vmem:[%s2784 + $0x4] sm:$0xf] %v2781
        %2787 = vst [vmem:[#allocation15] sm:$0xff] %v2675
        %2788 = vst [vmem:[#allocation15 + $0x8] sm:$0xff] %v2676
        %2789 = vst [vmem:[#allocation17] sm:$0xff] %v2677
        %2790 = vst [vmem:[#allocation17 + $0x8] sm:$0xff] %v2678
        %2791 = vst [vmem:[#allocation18] sm:$0xff] %v2770
        %2792 = vst [vmem:[#allocation18 + $0x8] sm:$0xff] %v2771
        %2793 = vst [vmem:[#allocation20] sm:$0xff] %v2774
        %2794 = vst [vmem:[#allocation20 + $0x8] sm:$0xff] %v2775
        %s2795 = sand.u32 %s194, 1
        %s2796 = scalar_lea.sflag [#allocation4], %s2795
        %s2797 = sand.u32 %s194, 1
        %s2798 = smul.addr %s2797, 128
        %s2799 = scalar_lea.vmem [#allocation14], %s2798
        // Predicated region
        $region81: #{lsnn_sequence.1} parent=47 // pred_check
          %p2800 = pneg %p204
        $region82: #{lsnn_sequence.1} parent=47 // pred_check_branch
          %2802 = sbr.rel (%p2800) target = $region84
        $region83: #{lsnn_sequence.1} parent=47 // pred_region
          %s2803 = smul.u32 16, %s34
          %s2805 = ssub.s32 2048, 2048
          %2806 = vsyncadd %s2796, %s2805
          %s2807 = smul.addr %s2803, 2
          %s2808 = smul.addr %s2807, 64
          %s2809 = scalar_lea.hbm %s7, %s2808
          %s2810 = sshll.u32 %s2799, 4
          %s2811 = int_to_ptr.vmem [resolvable:$true] %s2810
          %2816 = dma.vmem_to_hbm [thread:$0]  %s2811, 2048, %s2809, %s2796, 64, 64, 4
        $region84: #{lsnn_sequence.1} parent=47 // pred_fallthru
          _
        // Predicated region
        $region85: #{lsnn_sequence.1} parent=47 // pred_check
          %p2817 = pneg %p225
        $region86: #{lsnn_sequence.1} parent=47 // pred_check_branch
          %2819 = sbr.rel (%p2817) target = $region88
        $region87: #{lsnn_sequence.1} parent=47 // pred_region
          %s2821 = ssub.s32 256, 256
          %2822 = vsyncadd [#allocation16], %s2821
          %s2823 = sshll.u32 [#allocation15], 4
          %s2824 = int_to_ptr.vmem [resolvable:$true] %s2823
          %2829 = dma.vmem_to_hbm [thread:$0]  %s2824, 256, %s8, [#allocation16], 128, 128, 8
        $region88: #{lsnn_sequence.1} parent=47 // pred_fallthru
          _
        // Predicated region
        $region89: #{lsnn_sequence.1} parent=47 // pred_check
          %p2830 = pneg %p246
        $region90: #{lsnn_sequence.1} parent=47 // pred_check_branch
          %2832 = sbr.rel (%p2830) target = $region92
        $region91: #{lsnn_sequence.1} parent=47 // pred_region
          %s2834 = ssub.s32 256, 256
          %2835 = vsyncadd [#allocation16], %s2834
          %s2836 = sshll.u32 [#allocation17], 4
          %s2837 = int_to_ptr.vmem [resolvable:$true] %s2836
          %2842 = dma.vmem_to_hbm [thread:$0]  %s2837, 256, %s9, [#allocation16], 128, 128, 8
        $region92: #{lsnn_sequence.1} parent=47 // pred_fallthru
          _
        // Predicated region
        $region93: #{lsnn_sequence.1} parent=47 // pred_check
          %p2843 = pneg %p267
        $region94: #{lsnn_sequence.1} parent=47 // pred_check_branch
          %2845 = sbr.rel (%p2843) target = $region96
        $region95: #{lsnn_sequence.1} parent=47 // pred_region
          %s2847 = ssub.s32 256, 256
          %2848 = vsyncadd [#allocation19], %s2847
          %s2849 = sshll.u32 [#allocation18], 4
          %s2850 = int_to_ptr.vmem [resolvable:$true] %s2849
          %2855 = dma.vmem_to_hbm [thread:$0]  %s2850, 256, %s10, [#allocation19], 128, 128, 8
        $region96: #{lsnn_sequence.1} parent=47 // pred_fallthru
          _
        // Predicated region
        $region97: #{lsnn_sequence.1} parent=47 // pred_check
          %p2856 = pneg %p288
        $region98: #{lsnn_sequence.1} parent=47 // pred_check_branch
          %2858 = sbr.rel (%p2856) target = $region100
        $region99: #{lsnn_sequence.1} parent=47 // pred_region
          %s2860 = ssub.s32 256, 256
          %2861 = vsyncadd [#allocation19], %s2860
          %s2862 = sshll.u32 [#allocation20], 4
          %s2863 = int_to_ptr.vmem [resolvable:$true] %s2862
          %2868 = dma.vmem_to_hbm [thread:$0]  %s2863, 256, %s11, [#allocation19], 128, 128, 8
        $region100: #{lsnn_sequence.1} parent=47 // pred_fallthru
          _
        // Predicated region
        $region101: #{lsnn_sequence.1} parent=47 // pred_check
          %p2869 = pneg %p225
        $region102: #{lsnn_sequence.1} parent=47 // pred_check_branch
          %2871 = sbr.rel (%p2869) target = $region104
        $region103: #{lsnn_sequence.1} parent=47 // pred_region
          %2872 = dma.done [#allocation16], 256
        $region104: #{lsnn_sequence.1} parent=47 // pred_fallthru
          _
        // Predicated region
        $region105: #{lsnn_sequence.1} parent=47 // pred_check
          %p2873 = pneg %p246
        $region106: #{lsnn_sequence.1} parent=47 // pred_check_branch
          %2875 = sbr.rel (%p2873) target = $region108
        $region107: #{lsnn_sequence.1} parent=47 // pred_region
          %2876 = dma.done [#allocation16], 256
        $region108: #{lsnn_sequence.1} parent=47 // pred_fallthru
          _
        // Predicated region
        $region109: #{lsnn_sequence.1} parent=47 // pred_check
          %p2877 = pneg %p267
        $region110: #{lsnn_sequence.1} parent=47 // pred_check_branch
          %2879 = sbr.rel (%p2877) target = $region112
        $region111: #{lsnn_sequence.1} parent=47 // pred_region
          %2880 = dma.done [#allocation19], 256
        $region112: #{lsnn_sequence.1} parent=47 // pred_fallthru
          _
        // Predicated region
        $region113: #{lsnn_sequence.1} parent=47 // pred_check
          %p2881 = pneg %p288
        $region114: #{lsnn_sequence.1} parent=47 // pred_check_branch
          %2883 = sbr.rel (%p2881) target = $region116
        $region115: #{lsnn_sequence.1} parent=47 // pred_region
          %2884 = dma.done [#allocation19], 256
        $region116: #{lsnn_sequence.1} parent=47 // pred_fallthru
          _
      $region48: #{lsnn_sequence.1} parent=5 // pred_fallthru
        _
      %p2885 = scmp.le.s32.totalorder 2, %s29
      // Predicated region
      $region117: #{lsnn_sequence.1} parent=5 // pred_check
        %p2886 = pneg %p2885
      $region118: #{lsnn_sequence.1} parent=5 // pred_check_branch
        %2888 = sbr.rel (%p2886) target = $region120
      $region119: #{lsnn_sequence.1} parent=5 // pred_region
        %s2889 = ssub.s32 %s29, 2
        // Predicated region
        $region121: #{lsnn_sequence.1} parent=119 // pred_check
          %p2890 = pneg %p210
        $region122: #{lsnn_sequence.1} parent=119 // pred_check_branch
          %2892 = sbr.rel (%p2890) target = $region124
        $region123: #{lsnn_sequence.1} parent=119 // pred_region
          %s2893 = sand.u32 %s195, 1
          %s2894 = scalar_lea.sflag [#allocation4], %s2893
          %s2895 = sand.u32 %s195, 1
          %s2896 = smul.addr %s2895, 128
          %s2897 = scalar_lea.vmem [#allocation14], %s2896
          %2898 = dma.done %s2894, 2048
        $region124: #{lsnn_sequence.1} parent=119 // pred_fallthru
          _
      $region120: #{lsnn_sequence.1} parent=5 // pred_fallthru
        _
    $region6: #{lsnn_sequence.1} parent=1 // loop_footer
      %s33 = sadd.s32 1, %s29
    $region7: #{lsnn_sequence.1} parent=1 // loop_footer_branch
      %28 = sbr.rel target = $region3
    $region8: #{lsnn_sequence.1} parent=1 // loop_exit
      _
    %2899 = vsyncpa [#allocation3], 1
    %s2900 = scalar_lea.sflag [#allocation3], 1
    %2901 = vsyncpa %s2900, 1
    %2902 = vsyncpa [#allocation6], 1
    %2903 = vsyncpa [#allocation9], 1
    %2904 = vsyncpa [#allocation12], 1
    %2905 = vsyncpa [#allocation4], 1
    %s2906 = scalar_lea.sflag [#allocation4], 1
    %2907 = vsyncpa %s2906, 1
    %2908 = vsyncpa [#allocation16], 1
    %2909 = vsyncpa [#allocation19], 1

</llo_original>
